<compile_context>
chip_gen: v7x
topology: tpu7x:2x2x1
jax: 0.10.0
libtpu: 0.0.40
codegen_flags: <defaults>
</compile_context>

<pallas_src>
import functools

import jax
import jax.numpy as jnp
from jax.experimental import pallas as pl
from jax.experimental.pallas import tpu as pltpu


# ----------------------------------------------------------------------------
# Pallas kernel: full encoder stack.  grid = (n_layers,), activations carried
# across layer steps in VMEM scratch `h_ref`; full batch processed per step.
# ----------------------------------------------------------------------------
def encoder_kernel(x_ref,
                   wqkv_ref, bqkv_ref,
                   wo_ref, bo_ref,
                   g1_ref, be1_ref,
                   w1_ref, b1_ref, w2_ref, b2_ref,
                   g2_ref, be2_ref,
                   o_ref,
                   h_ref, att_ref,
                   *, n_heads, batch, seq_len, compute_dtype):
    layer = pl.program_id(0)

    # Load the (embedded + positionally-encoded) input only once, at layer 0.
    @pl.when(layer == 0)
    def _():
        h_ref[...] = x_ref[...]

    x = h_ref[...]                                  # (B*S, E) float32
    BS, E = x.shape
    Dh = E // n_heads
    inv_scale = 1.0 / (float(E) ** 0.5)             # module divides by sqrt(embed_dim)

    def mm(a, b):
        return jnp.dot(a.astype(compute_dtype), b.astype(compute_dtype),
                       preferred_element_type=jnp.float32)

    # --- fused Q|K|V projection: one (BS, E) x (E, 3E) matmul ---
    qkv = mm(x, wqkv_ref[...]) + bqkv_ref[...]      # (BS, 3E)

    # --- multi-head scaled dot-product attention ---
    # Static unroll over (batch, head); head outputs written into VMEM scratch
    # at static column offsets (preserves column order h*Dh..(h+1)*Dh).
    for b in range(batch):
        rows = slice(b * seq_len, (b + 1) * seq_len)
        for h in range(n_heads):
            c0 = h * Dh
            qh = qkv[rows, c0:c0 + Dh]
            kh = qkv[rows, E + c0:E + c0 + Dh]
            vh = qkv[rows, 2 * E + c0:2 * E + c0 + Dh]
            energy = mm(qh, kh.T) * inv_scale
            energy = energy - jnp.max(energy, axis=-1, keepdims=True)
            p = jnp.exp(energy)
            inv_den = pl.reciprocal(jnp.sum(p, axis=-1, keepdims=True), approx=True)
            attn = p * inv_den
            att_ref[rows, c0:c0 + Dh] = mm(attn, vh)

    att_out = mm(att_ref[...], wo_ref[...]) + bo_ref[...]

    # --- residual + LayerNorm 1 (f32) ---
    h1 = x + att_out
    mu1 = jnp.mean(h1, axis=-1, keepdims=True)
    var1 = jnp.mean((h1 - mu1) ** 2, axis=-1, keepdims=True)
    ln1 = (h1 - mu1) * jax.lax.rsqrt(var1 + 1e-5) * g1_ref[...] + be1_ref[...]

    # --- position-wise feed-forward (ReLU) ---
    f1 = jnp.maximum(mm(ln1, w1_ref[...]) + b1_ref[...], 0.0)
    f2 = mm(f1, w2_ref[...]) + b2_ref[...]

    # --- residual + LayerNorm 2 (f32) ---
    h2 = ln1 + f2
    mu2 = jnp.mean(h2, axis=-1, keepdims=True)
    var2 = jnp.mean((h2 - mu2) ** 2, axis=-1, keepdims=True)
    ln2 = (h2 - mu2) * jax.lax.rsqrt(var2 + 1e-5) * g2_ref[...] + be2_ref[...]

    # Carry activations to the next layer step.
    h_ref[...] = ln2

    # Emit the final result once, after the last layer.
    @pl.when(layer == pl.num_programs(0) - 1)
    def _():
        o_ref[...] = ln2


# ----------------------------------------------------------------------------
# Wrapper: embedding + positional encoding in JAX, single pallas_call for all layers.
# ----------------------------------------------------------------------------
def encoder_forward(tokens, emb_weight, params, n_heads,
                    compute_dtype=jnp.float32):
    B, S = tokens.shape
    E = emb_weight.shape[1]
    L = params["wqkv"].shape[0]
    F = params["w1"].shape[2]
    BS = B * S

    # Embedding lookup scaled by sqrt(E) + raw-index positional encoding (X_mask=None path).
    x = emb_weight[tokens] * (float(E) ** 0.5)                         # (B, S, E)
    pos = jnp.broadcast_to(jnp.arange(S, dtype=jnp.float32)[:, None], (S, E))
    x2d = (x + pos[None]).reshape(BS, E)

    def w_spec(d1, d2):
        # per-layer weight block; leading layer dim squeezed out of the kernel ref
        return pl.BlockSpec((pl.Squeezed(), d1, d2), lambda l: (l, 0, 0))

    in_specs = [
        pl.BlockSpec((BS, E), lambda l: (0, 0)),      # activations (resident across layers)
        w_spec(E, 3 * E), w_spec(1, 3 * E),           # fused wqkv, bqkv
        w_spec(E, E), w_spec(1, E),                   # wo, bo
        w_spec(1, E), w_spec(1, E),                   # ln1 gamma, beta
        w_spec(E, F), w_spec(1, F),                   # ffn w1, b1
        w_spec(F, E), w_spec(1, E),                   # ffn w2, b2
        w_spec(1, E), w_spec(1, E),                   # ln2 gamma, beta
    ]
    out_spec = pl.BlockSpec((BS, E), lambda l: (0, 0))

    kernel = functools.partial(encoder_kernel, n_heads=n_heads, batch=B,
                               seq_len=S, compute_dtype=compute_dtype)

    out2d = pl.pallas_call(
        kernel,
        out_shape=jax.ShapeDtypeStruct((BS, E), jnp.float32),
        grid_spec=pltpu.PrefetchScalarGridSpec(
            num_scalar_prefetch=0,
            grid=(L,),
            in_specs=in_specs,
            out_specs=out_spec,
            scratch_shapes=[
                pltpu.VMEM((BS, E), jnp.float32),     # carried activations
                pltpu.VMEM((BS, E), jnp.float32),     # attention head outputs
            ],
        ),
        compiler_params=pltpu.CompilerParams(
            dimension_semantics=("arbitrary",),       # layers are sequential
            vmem_limit_bytes=64 * 1024 * 1024,
        ),
    )(x2d,
      params["wqkv"], params["bqkv"], params["wo"], params["bo"],
      params["g1"], params["be1"],
      params["w1"], params["b1"], params["w2"], params["b2"],
      params["g2"], params["be2"])
    return out2d.reshape(B, S, E)


# ----------------------------------------------------------------------------
# Pure-JAX reference (same math) for correctness check
# ----------------------------------------------------------------------------
def encoder_forward_ref(tokens, emb_weight, layer_params, n_heads):
    B, S = tokens.shape
    E = emb_weight.shape[1]
    x = emb_weight[tokens] * (float(E) ** 0.5)
    pos = jnp.broadcast_to(jnp.arange(S, dtype=jnp.float32)[:, None], (S, E))
    x = x + pos[None]
    Dh = E // n_heads
    for p in layer_params:
        q = x @ p["wq"] + p["bq"][0]
        k = x @ p["wk"] + p["bk"][0]
        v = x @ p["wv"] + p["bv"][0]
        qh = q.reshape(B, S, n_heads, Dh).transpose(0, 2, 1, 3)
        kh = k.reshape(B, S, n_heads, Dh).transpose(0, 2, 1, 3)
        vh = v.reshape(B, S, n_heads, Dh).transpose(0, 2, 1, 3)
        energy = jnp.einsum("bhqd,bhkd->bhqk", qh, kh) / (float(E) ** 0.5)
        attn = jax.nn.softmax(energy, axis=-1)
        w = jnp.einsum("bhqk,bhkd->bhqd", attn, vh)
        w = w.transpose(0, 2, 1, 3).reshape(B, S, E)
        att_out = w @ p["wo"] + p["bo"][0]
        h1 = x + att_out
        mu = jnp.mean(h1, -1, keepdims=True)
        var = jnp.mean((h1 - mu) ** 2, -1, keepdims=True)
        ln1 = (h1 - mu) * jax.lax.rsqrt(var + 1e-5) * p["g1"][0] + p["be1"][0]
        f1 = jnp.maximum(ln1 @ p["w1"] + p["b1"][0], 0.0)
        f2 = f1 @ p["w2"] + p["b2"][0]
        h2 = ln1 + f2
        mu2 = jnp.mean(h2, -1, keepdims=True)
        var2 = jnp.mean((h2 - mu2) ** 2, -1, keepdims=True)
        x = (h2 - mu2) * jax.lax.rsqrt(var2 + 1e-5) * p["g2"][0] + p["be2"][0]
    return x


# ----------------------------------------------------------------------------
# Deterministic parameter init (per-layer dicts) + packing for the kernel
# ----------------------------------------------------------------------------
def init_layer_params(key, embed_dim, posff_dim):
    ks = jax.random.split(key, 10)
    s = 0.05
    E, F = embed_dim, posff_dim
    return {
        "wq": jax.random.normal(ks[0], (E, E), jnp.float32) * s,
        "bq": jax.random.normal(ks[1], (1, E), jnp.float32) * s,
        "wk": jax.random.normal(ks[2], (E, E), jnp.float32) * s,
        "bk": jax.random.normal(ks[3], (1, E), jnp.float32) * s,
        "wv": jax.random.normal(ks[4], (E, E), jnp.float32) * s,
        "bv": jax.random.normal(ks[5], (1, E), jnp.float32) * s,
        "wo": jax.random.normal(ks[6], (E, E), jnp.float32) * s,
        "bo": jax.random.normal(ks[7], (1, E), jnp.float32) * s,
        "g1": jnp.ones((1, E), jnp.float32),
        "be1": jnp.zeros((1, E), jnp.float32),
        "w1": jax.random.normal(ks[8], (E, F), jnp.float32) * s,
        "b1": jnp.zeros((1, F), jnp.float32),
        "w2": jax.random.normal(ks[9], (F, E), jnp.float32) * s,
        "b2": jnp.zeros((1, E), jnp.float32),
        "g2": jnp.ones((1, E), jnp.float32),
        "be2": jnp.zeros((1, E), jnp.float32),
    }


def pack_params(layer_params):
    """Stack per-layer params along a leading layer axis; fuse Q|K|V."""
    def stack(name):
        return jnp.stack([p[name] for p in layer_params], axis=0)
    wqkv = jnp.stack(
        [jnp.concatenate([p["wq"], p["wk"], p["wv"]], axis=1) for p in layer_params], axis=0)
    bqkv = jnp.stack(
        [jnp.concatenate([p["bq"], p["bk"], p["bv"]], axis=1) for p in layer_params], axis=0)
    return {
        "wqkv": wqkv, "bqkv": bqkv,
        "wo": stack("wo"), "bo": stack("bo"),
        "g1": stack("g1"), "be1": stack("be1"),
        "w1": stack("w1"), "b1": stack("b1"),
        "w2": stack("w2"), "b2": stack("b2"),
        "g2": stack("g2"), "be2": stack("be2"),
    }


if __name__ == "__main__":
    # Small shapes consistent with the module's forward
    batch, seq_len = 2, 8
    vocab_size, embed_dim, n_heads, posff_dim, n_layers = 50, 32, 4, 64, 2

    root = jax.random.PRNGKey(0)
    k_tok, k_emb, k_layers = jax.random.split(root, 3)

    tokens = jax.random.randint(k_tok, (batch, seq_len), 0, vocab_size, dtype=jnp.int32)
    emb_weight = jax.random.normal(k_emb, (vocab_size, embed_dim), jnp.float32)
    layer_params = [
        init_layer_params(k, embed_dim, posff_dim)
        for k in jax.random.split(k_layers, n_layers)
    ]
    packed = pack_params(layer_params)

    out = encoder_forward(tokens, emb_weight, packed, n_heads)
    out = jax.block_until_ready(out)

    ref = encoder_forward_ref(tokens, emb_weight, layer_params, n_heads)
    ref = jax.block_until_ready(ref)

    assert out.shape == (batch, seq_len, embed_dim)
    # Tolerance covers the EUP approximate-reciprocal softmax normalization.
    assert jnp.allclose(out, ref, atol=5e-3, rtol=5e-3), "mismatch vs reference"

    print("KERNEL_OK")
</pallas_src>

<mosaic_0001>
module attributes {stable_mosaic.version = 11 : i64} {
  func.func @encoder_kernel(%arg0: i32, %arg1: memref<16x32xf32, #tpu.memory_space<vmem>>, %arg2: memref<1x32x96xf32, #tpu.memory_space<vmem>>, %arg3: memref<1x1x96xf32, #tpu.memory_space<vmem>>, %arg4: memref<1x32x32xf32, #tpu.memory_space<vmem>>, %arg5: memref<1x1x32xf32, #tpu.memory_space<vmem>>, %arg6: memref<1x1x32xf32, #tpu.memory_space<vmem>>, %arg7: memref<1x1x32xf32, #tpu.memory_space<vmem>>, %arg8: memref<1x32x64xf32, #tpu.memory_space<vmem>>, %arg9: memref<1x1x64xf32, #tpu.memory_space<vmem>>, %arg10: memref<1x64x32xf32, #tpu.memory_space<vmem>>, %arg11: memref<1x1x32xf32, #tpu.memory_space<vmem>>, %arg12: memref<1x1x32xf32, #tpu.memory_space<vmem>>, %arg13: memref<1x1x32xf32, #tpu.memory_space<vmem>>, %arg14: memref<16x32xf32, #tpu.memory_space<vmem>>, %arg15: memref<16x32xf32, #tpu.memory_space<vmem>>, %arg16: memref<16x32xf32, #tpu.memory_space<vmem>>) attributes {dimension_semantics = [#tpu.dimension_semantics<arbitrary>], iteration_bounds = array<i64: 2>, scalar_prefetch = 0 : i64, scratch_operands = 2 : i64, tpu.core_type = #tpu.core_type<tc>, window_params = [{pipeline_mode = #tpu.pipeline_mode<synchronous>, transform_indices = @transform_0, window_bounds = array<i64: 16, 32>}, {transform_indices = @transform_1, window_bounds = array<i64: 1, 32, 96>}, {transform_indices = @transform_2, window_bounds = array<i64: 1, 1, 96>}, {transform_indices = @transform_3, window_bounds = array<i64: 1, 32, 32>}, {transform_indices = @transform_4, window_bounds = array<i64: 1, 1, 32>}, {transform_indices = @transform_5, window_bounds = array<i64: 1, 1, 32>}, {transform_indices = @transform_6, window_bounds = array<i64: 1, 1, 32>}, {transform_indices = @transform_7, window_bounds = array<i64: 1, 32, 64>}, {transform_indices = @transform_8, window_bounds = array<i64: 1, 1, 64>}, {transform_indices = @transform_9, window_bounds = array<i64: 1, 64, 32>}, {transform_indices = @transform_10, window_bounds = array<i64: 1, 1, 32>}, {transform_indices = @transform_11, window_bounds = array<i64: 1, 1, 32>}, {transform_indices = @transform_12, window_bounds = array<i64: 1, 1, 32>}, {pipeline_mode = #tpu.pipeline_mode<synchronous>, transform_indices = @transform_13, window_bounds = array<i64: 16, 32>}]} {
    %c0_i32 = arith.constant 0 : i32
    %0 = arith.cmpi eq, %arg0, %c0_i32 : i32
    %1 = arith.extui %0 : i1 to i32
    %c0_i32_0 = arith.constant 0 : i32
    %2 = arith.cmpi ne, %1, %c0_i32_0 : i32
    scf.if %2 {
      %c0_110 = arith.constant 0 : index
      %c0_111 = arith.constant 0 : index
      %245 = vector.load %arg1[%c0_110, %c0_111] : memref<16x32xf32, #tpu.memory_space<vmem>>, vector<16x32xf32>
      %c0_112 = arith.constant 0 : index
      %c0_113 = arith.constant 0 : index
      %246 = vector.load %arg15[%c0_112, %c0_113] : memref<16x32xf32, #tpu.memory_space<vmem>>, vector<16x32xf32>
      tpu.vector_store %arg15[%c0_112, %c0_113], %245 {strides = array<i32>} : memref<16x32xf32, #tpu.memory_space<vmem>>, vector<16x32xf32>,
    } else {
    }
    %c0 = arith.constant 0 : index
    %c0_1 = arith.constant 0 : index
    %3 = vector.load %arg15[%c0, %c0_1] : memref<16x32xf32, #tpu.memory_space<vmem>>, vector<16x32xf32>
    %c0_2 = arith.constant 0 : index
    %c0_3 = arith.constant 0 : index
    %c0_4 = arith.constant 0 : index
    %4 = vector.load %arg2[%c0_2, %c0_3, %c0_4] : memref<1x32x96xf32, #tpu.memory_space<vmem>>, vector<1x32x96xf32>
    %5 = vector.shape_cast %4 : vector<1x32x96xf32> to vector<32x96xf32>
    %cst = arith.constant dense<0.000000e+00> : vector<16x96xf32>
    %6 = tpu.matmul %3, %5, %cst {dimension_numbers = #tpu.dot_dimension_numbers<[1], [0], [0], [1], [0, 0, 1, 1], [], []>} : vector<16x32xf32>, vector<32x96xf32>, vector<16x96xf32> -> vector<16x96xf32>
    %c0_5 = arith.constant 0 : index
    %c0_6 = arith.constant 0 : index
    %c0_7 = arith.constant 0 : index
    %7 = vector.load %arg3[%c0_5, %c0_6, %c0_7] : memref<1x1x96xf32, #tpu.memory_space<vmem>>, vector<1x1x96xf32>
    %8 = vector.shape_cast %7 : vector<1x1x96xf32> to vector<1x96xf32>
    %9 = vector.broadcast %8 : vector<1x96xf32> to vector<16x96xf32>
    %10 = arith.addf %6, %9 : vector<16x96xf32>
    %11 = vector.extract_strided_slice %10 {offsets = [0, 0], sizes = [8, 8], strides = [1, 1]} : vector<16x96xf32> to vector<8x8xf32>
    %12 = vector.extract_strided_slice %10 {offsets = [0, 32], sizes = [8, 8], strides = [1, 1]} : vector<16x96xf32> to vector<8x8xf32>
    %13 = vector.extract_strided_slice %10 {offsets = [0, 64], sizes = [8, 8], strides = [1, 1]} : vector<16x96xf32> to vector<8x8xf32>
    %14 = tpu.transpose %12, [1, 0] : vector<8x8xf32> -> vector<8x8xf32>
    %cst_8 = arith.constant dense<0.000000e+00> : vector<8x8xf32>
    %15 = tpu.matmul %11, %14, %cst_8 {dimension_numbers = #tpu.dot_dimension_numbers<[1], [0], [0], [1], [0, 0, 1, 1], [], []>} : vector<8x8xf32>, vector<8x8xf32>, vector<8x8xf32> -> vector<8x8xf32>
    %cst_9 = arith.constant 0.176776692 : f32
    %16 = vector.broadcast %cst_9 : f32 to vector<8x8xf32>
    %17 = arith.mulf %15, %16 : vector<8x8xf32>
    %cst_10 = arith.constant dense<0xFF800000> : vector<8xf32>
    %18 = vector.multi_reduction <maximumf>, %17, %cst_10 [1] : vector<8x8xf32> to vector<8xf32>
    %19 = vector.shape_cast %18 : vector<8xf32> to vector<8x1xf32>
    %20 = vector.broadcast %19 : vector<8x1xf32> to vector<8x8xf32>
    %21 = arith.subf %17, %20 : vector<8x8xf32>
    %22 = math.exp %21 : vector<8x8xf32>
    %cst_11 = arith.constant dense<0.000000e+00> : vector<8xf32>
    %23 = vector.multi_reduction <add>, %22, %cst_11 [1] : vector<8x8xf32> to vector<8xf32>
    %24 = vector.shape_cast %23 : vector<8xf32> to vector<8x1xf32>
    %25 = tpu.reciprocal %24 {approx = true} : vector<8x1xf32> -> vector<8x1xf32>
    %26 = vector.broadcast %25 : vector<8x1xf32> to vector<8x8xf32>
    %27 = arith.mulf %22, %26 : vector<8x8xf32>
    %cst_12 = arith.constant dense<0.000000e+00> : vector<8x8xf32>
    %28 = tpu.matmul %27, %13, %cst_12 {dimension_numbers = #tpu.dot_dimension_numbers<[1], [0], [0], [1], [0, 0, 1, 1], [], []>} : vector<8x8xf32>, vector<8x8xf32>, vector<8x8xf32> -> vector<8x8xf32>
    %c0_13 = arith.constant 0 : index
    %c0_14 = arith.constant 0 : index
    %29 = vector.load %arg16[%c0_13, %c0_14] : memref<16x32xf32, #tpu.memory_space<vmem>>, vector<8x8xf32>
    tpu.vector_store %arg16[%c0_13, %c0_14], %28 {strides = array<i32>} : memref<16x32xf32, #tpu.memory_space<vmem>>, vector<8x8xf32>,
    %30 = vector.extract_strided_slice %10 {offsets = [0, 8], sizes = [8, 8], strides = [1, 1]} : vector<16x96xf32> to vector<8x8xf32>
    %31 = vector.extract_strided_slice %10 {offsets = [0, 40], sizes = [8, 8], strides = [1, 1]} : vector<16x96xf32> to vector<8x8xf32>
    %32 = vector.extract_strided_slice %10 {offsets = [0, 72], sizes = [8, 8], strides = [1, 1]} : vector<16x96xf32> to vector<8x8xf32>
    %33 = tpu.transpose %31, [1, 0] : vector<8x8xf32> -> vector<8x8xf32>
    %cst_15 = arith.constant dense<0.000000e+00> : vector<8x8xf32>
    %34 = tpu.matmul %30, %33, %cst_15 {dimension_numbers = #tpu.dot_dimension_numbers<[1], [0], [0], [1], [0, 0, 1, 1], [], []>} : vector<8x8xf32>, vector<8x8xf32>, vector<8x8xf32> -> vector<8x8xf32>
    %cst_16 = arith.constant 0.176776692 : f32
    %35 = vector.broadcast %cst_16 : f32 to vector<8x8xf32>
    %36 = arith.mulf %34, %35 : vector<8x8xf32>
    %cst_17 = arith.constant dense<0xFF800000> : vector<8xf32>
    %37 = vector.multi_reduction <maximumf>, %36, %cst_17 [1] : vector<8x8xf32> to vector<8xf32>
    %38 = vector.shape_cast %37 : vector<8xf32> to vector<8x1xf32>
    %39 = vector.broadcast %38 : vector<8x1xf32> to vector<8x8xf32>
    %40 = arith.subf %36, %39 : vector<8x8xf32>
    %41 = math.exp %40 : vector<8x8xf32>
    %cst_18 = arith.constant dense<0.000000e+00> : vector<8xf32>
    %42 = vector.multi_reduction <add>, %41, %cst_18 [1] : vector<8x8xf32> to vector<8xf32>
    %43 = vector.shape_cast %42 : vector<8xf32> to vector<8x1xf32>
    %44 = tpu.reciprocal %43 {approx = true} : vector<8x1xf32> -> vector<8x1xf32>
    %45 = vector.broadcast %44 : vector<8x1xf32> to vector<8x8xf32>
    %46 = arith.mulf %41, %45 : vector<8x8xf32>
    %cst_19 = arith.constant dense<0.000000e+00> : vector<8x8xf32>
    %47 = tpu.matmul %46, %32, %cst_19 {dimension_numbers = #tpu.dot_dimension_numbers<[1], [0], [0], [1], [0, 0, 1, 1], [], []>} : vector<8x8xf32>, vector<8x8xf32>, vector<8x8xf32> -> vector<8x8xf32>
    %c0_20 = arith.constant 0 : index
    %c8 = arith.constant 8 : index
    %48 = vector.load %arg16[%c0_20, %c8] : memref<16x32xf32, #tpu.memory_space<vmem>>, vector<8x8xf32>
    tpu.vector_store %arg16[%c0_20, %c8], %47 {strides = array<i32>} : memref<16x32xf32, #tpu.memory_space<vmem>>, vector<8x8xf32>,
    %49 = vector.extract_strided_slice %10 {offsets = [0, 16], sizes = [8, 8], strides = [1, 1]} : vector<16x96xf32> to vector<8x8xf32>
    %50 = vector.extract_strided_slice %10 {offsets = [0, 48], sizes = [8, 8], strides = [1, 1]} : vector<16x96xf32> to vector<8x8xf32>
    %51 = vector.extract_strided_slice %10 {offsets = [0, 80], sizes = [8, 8], strides = [1, 1]} : vector<16x96xf32> to vector<8x8xf32>
    %52 = tpu.transpose %50, [1, 0] : vector<8x8xf32> -> vector<8x8xf32>
    %cst_21 = arith.constant dense<0.000000e+00> : vector<8x8xf32>
    %53 = tpu.matmul %49, %52, %cst_21 {dimension_numbers = #tpu.dot_dimension_numbers<[1], [0], [0], [1], [0, 0, 1, 1], [], []>} : vector<8x8xf32>, vector<8x8xf32>, vector<8x8xf32> -> vector<8x8xf32>
    %cst_22 = arith.constant 0.176776692 : f32
    %54 = vector.broadcast %cst_22 : f32 to vector<8x8xf32>
    %55 = arith.mulf %53, %54 : vector<8x8xf32>
    %cst_23 = arith.constant dense<0xFF800000> : vector<8xf32>
    %56 = vector.multi_reduction <maximumf>, %55, %cst_23 [1] : vector<8x8xf32> to vector<8xf32>
    %57 = vector.shape_cast %56 : vector<8xf32> to vector<8x1xf32>
    %58 = vector.broadcast %57 : vector<8x1xf32> to vector<8x8xf32>
    %59 = arith.subf %55, %58 : vector<8x8xf32>
    %60 = math.exp %59 : vector<8x8xf32>
    %cst_24 = arith.constant dense<0.000000e+00> : vector<8xf32>
    %61 = vector.multi_reduction <add>, %60, %cst_24 [1] : vector<8x8xf32> to vector<8xf32>
    %62 = vector.shape_cast %61 : vector<8xf32> to vector<8x1xf32>
    %63 = tpu.reciprocal %62 {approx = true} : vector<8x1xf32> -> vector<8x1xf32>
    %64 = vector.broadcast %63 : vector<8x1xf32> to vector<8x8xf32>
    %65 = arith.mulf %60, %64 : vector<8x8xf32>
    %cst_25 = arith.constant dense<0.000000e+00> : vector<8x8xf32>
    %66 = tpu.matmul %65, %51, %cst_25 {dimension_numbers = #tpu.dot_dimension_numbers<[1], [0], [0], [1], [0, 0, 1, 1], [], []>} : vector<8x8xf32>, vector<8x8xf32>, vector<8x8xf32> -> vector<8x8xf32>
    %c0_26 = arith.constant 0 : index
    %c16 = arith.constant 16 : index
    %67 = vector.load %arg16[%c0_26, %c16] : memref<16x32xf32, #tpu.memory_space<vmem>>, vector<8x8xf32>
    tpu.vector_store %arg16[%c0_26, %c16], %66 {strides = array<i32>} : memref<16x32xf32, #tpu.memory_space<vmem>>, vector<8x8xf32>,
    %68 = vector.extract_strided_slice %10 {offsets = [0, 24], sizes = [8, 8], strides = [1, 1]} : vector<16x96xf32> to vector<8x8xf32>
    %69 = vector.extract_strided_slice %10 {offsets = [0, 56], sizes = [8, 8], strides = [1, 1]} : vector<16x96xf32> to vector<8x8xf32>
    %70 = vector.extract_strided_slice %10 {offsets = [0, 88], sizes = [8, 8], strides = [1, 1]} : vector<16x96xf32> to vector<8x8xf32>
    %71 = tpu.transpose %69, [1, 0] : vector<8x8xf32> -> vector<8x8xf32>
    %cst_27 = arith.constant dense<0.000000e+00> : vector<8x8xf32>
    %72 = tpu.matmul %68, %71, %cst_27 {dimension_numbers = #tpu.dot_dimension_numbers<[1], [0], [0], [1], [0, 0, 1, 1], [], []>} : vector<8x8xf32>, vector<8x8xf32>, vector<8x8xf32> -> vector<8x8xf32>
    %cst_28 = arith.constant 0.176776692 : f32
    %73 = vector.broadcast %cst_28 : f32 to vector<8x8xf32>
    %74 = arith.mulf %72, %73 : vector<8x8xf32>
    %cst_29 = arith.constant dense<0xFF800000> : vector<8xf32>
    %75 = vector.multi_reduction <maximumf>, %74, %cst_29 [1] : vector<8x8xf32> to vector<8xf32>
    %76 = vector.shape_cast %75 : vector<8xf32> to vector<8x1xf32>
    %77 = vector.broadcast %76 : vector<8x1xf32> to vector<8x8xf32>
    %78 = arith.subf %74, %77 : vector<8x8xf32>
    %79 = math.exp %78 : vector<8x8xf32>
    %cst_30 = arith.constant dense<0.000000e+00> : vector<8xf32>
    %80 = vector.multi_reduction <add>, %79, %cst_30 [1] : vector<8x8xf32> to vector<8xf32>
    %81 = vector.shape_cast %80 : vector<8xf32> to vector<8x1xf32>
    %82 = tpu.reciprocal %81 {approx = true} : vector<8x1xf32> -> vector<8x1xf32>
    %83 = vector.broadcast %82 : vector<8x1xf32> to vector<8x8xf32>
    %84 = arith.mulf %79, %83 : vector<8x8xf32>
    %cst_31 = arith.constant dense<0.000000e+00> : vector<8x8xf32>
    %85 = tpu.matmul %84, %70, %cst_31 {dimension_numbers = #tpu.dot_dimension_numbers<[1], [0], [0], [1], [0, 0, 1, 1], [], []>} : vector<8x8xf32>, vector<8x8xf32>, vector<8x8xf32> -> vector<8x8xf32>
    %c0_32 = arith.constant 0 : index
    %c24 = arith.constant 24 : index
    %86 = vector.load %arg16[%c0_32, %c24] : memref<16x32xf32, #tpu.memory_space<vmem>>, vector<8x8xf32>
    tpu.vector_store %arg16[%c0_32, %c24], %85 {strides = array<i32>} : memref<16x32xf32, #tpu.memory_space<vmem>>, vector<8x8xf32>,
    %87 = vector.extract_strided_slice %10 {offsets = [8, 0], sizes = [8, 8], strides = [1, 1]} : vector<16x96xf32> to vector<8x8xf32>
    %88 = vector.extract_strided_slice %10 {offsets = [8, 32], sizes = [8, 8], strides = [1, 1]} : vector<16x96xf32> to vector<8x8xf32>
    %89 = vector.extract_strided_slice %10 {offsets = [8, 64], sizes = [8, 8], strides = [1, 1]} : vector<16x96xf32> to vector<8x8xf32>
    %90 = tpu.transpose %88, [1, 0] : vector<8x8xf32> -> vector<8x8xf32>
    %cst_33 = arith.constant dense<0.000000e+00> : vector<8x8xf32>
    %91 = tpu.matmul %87, %90, %cst_33 {dimension_numbers = #tpu.dot_dimension_numbers<[1], [0], [0], [1], [0, 0, 1, 1], [], []>} : vector<8x8xf32>, vector<8x8xf32>, vector<8x8xf32> -> vector<8x8xf32>
    %cst_34 = arith.constant 0.176776692 : f32
    %92 = vector.broadcast %cst_34 : f32 to vector<8x8xf32>
    %93 = arith.mulf %91, %92 : vector<8x8xf32>
    %cst_35 = arith.constant dense<0xFF800000> : vector<8xf32>
    %94 = vector.multi_reduction <maximumf>, %93, %cst_35 [1] : vector<8x8xf32> to vector<8xf32>
    %95 = vector.shape_cast %94 : vector<8xf32> to vector<8x1xf32>
    %96 = vector.broadcast %95 : vector<8x1xf32> to vector<8x8xf32>
    %97 = arith.subf %93, %96 : vector<8x8xf32>
    %98 = math.exp %97 : vector<8x8xf32>
    %cst_36 = arith.constant dense<0.000000e+00> : vector<8xf32>
    %99 = vector.multi_reduction <add>, %98, %cst_36 [1] : vector<8x8xf32> to vector<8xf32>
    %100 = vector.shape_cast %99 : vector<8xf32> to vector<8x1xf32>
    %101 = tpu.reciprocal %100 {approx = true} : vector<8x1xf32> -> vector<8x1xf32>
    %102 = vector.broadcast %101 : vector<8x1xf32> to vector<8x8xf32>
    %103 = arith.mulf %98, %102 : vector<8x8xf32>
    %cst_37 = arith.constant dense<0.000000e+00> : vector<8x8xf32>
    %104 = tpu.matmul %103, %89, %cst_37 {dimension_numbers = #tpu.dot_dimension_numbers<[1], [0], [0], [1], [0, 0, 1, 1], [], []>} : vector<8x8xf32>, vector<8x8xf32>, vector<8x8xf32> -> vector<8x8xf32>
    %c8_38 = arith.constant 8 : index
    %c0_39 = arith.constant 0 : index
    %105 = vector.load %arg16[%c8_38, %c0_39] : memref<16x32xf32, #tpu.memory_space<vmem>>, vector<8x8xf32>
    tpu.vector_store %arg16[%c8_38, %c0_39], %104 {strides = array<i32>} : memref<16x32xf32, #tpu.memory_space<vmem>>, vector<8x8xf32>,
    %106 = vector.extract_strided_slice %10 {offsets = [8, 8], sizes = [8, 8], strides = [1, 1]} : vector<16x96xf32> to vector<8x8xf32>
    %107 = vector.extract_strided_slice %10 {offsets = [8, 40], sizes = [8, 8], strides = [1, 1]} : vector<16x96xf32> to vector<8x8xf32>
    %108 = vector.extract_strided_slice %10 {offsets = [8, 72], sizes = [8, 8], strides = [1, 1]} : vector<16x96xf32> to vector<8x8xf32>
    %109 = tpu.transpose %107, [1, 0] : vector<8x8xf32> -> vector<8x8xf32>
    %cst_40 = arith.constant dense<0.000000e+00> : vector<8x8xf32>
    %110 = tpu.matmul %106, %109, %cst_40 {dimension_numbers = #tpu.dot_dimension_numbers<[1], [0], [0], [1], [0, 0, 1, 1], [], []>} : vector<8x8xf32>, vector<8x8xf32>, vector<8x8xf32> -> vector<8x8xf32>
    %cst_41 = arith.constant 0.176776692 : f32
    %111 = vector.broadcast %cst_41 : f32 to vector<8x8xf32>
    %112 = arith.mulf %110, %111 : vector<8x8xf32>
    %cst_42 = arith.constant dense<0xFF800000> : vector<8xf32>
    %113 = vector.multi_reduction <maximumf>, %112, %cst_42 [1] : vector<8x8xf32> to vector<8xf32>
    %114 = vector.shape_cast %113 : vector<8xf32> to vector<8x1xf32>
    %115 = vector.broadcast %114 : vector<8x1xf32> to vector<8x8xf32>
    %116 = arith.subf %112, %115 : vector<8x8xf32>
    %117 = math.exp %116 : vector<8x8xf32>
    %cst_43 = arith.constant dense<0.000000e+00> : vector<8xf32>
    %118 = vector.multi_reduction <add>, %117, %cst_43 [1] : vector<8x8xf32> to vector<8xf32>
    %119 = vector.shape_cast %118 : vector<8xf32> to vector<8x1xf32>
    %120 = tpu.reciprocal %119 {approx = true} : vector<8x1xf32> -> vector<8x1xf32>
    %121 = vector.broadcast %120 : vector<8x1xf32> to vector<8x8xf32>
    %122 = arith.mulf %117, %121 : vector<8x8xf32>
    %cst_44 = arith.constant dense<0.000000e+00> : vector<8x8xf32>
    %123 = tpu.matmul %122, %108, %cst_44 {dimension_numbers = #tpu.dot_dimension_numbers<[1], [0], [0], [1], [0, 0, 1, 1], [], []>} : vector<8x8xf32>, vector<8x8xf32>, vector<8x8xf32> -> vector<8x8xf32>
    %c8_45 = arith.constant 8 : index
    %c8_46 = arith.constant 8 : index
    %124 = vector.load %arg16[%c8_45, %c8_46] : memref<16x32xf32, #tpu.memory_space<vmem>>, vector<8x8xf32>
    tpu.vector_store %arg16[%c8_45, %c8_46], %123 {strides = array<i32>} : memref<16x32xf32, #tpu.memory_space<vmem>>, vector<8x8xf32>,
    %125 = vector.extract_strided_slice %10 {offsets = [8, 16], sizes = [8, 8], strides = [1, 1]} : vector<16x96xf32> to vector<8x8xf32>
    %126 = vector.extract_strided_slice %10 {offsets = [8, 48], sizes = [8, 8], strides = [1, 1]} : vector<16x96xf32> to vector<8x8xf32>
    %127 = vector.extract_strided_slice %10 {offsets = [8, 80], sizes = [8, 8], strides = [1, 1]} : vector<16x96xf32> to vector<8x8xf32>
    %128 = tpu.transpose %126, [1, 0] : vector<8x8xf32> -> vector<8x8xf32>
    %cst_47 = arith.constant dense<0.000000e+00> : vector<8x8xf32>
    %129 = tpu.matmul %125, %128, %cst_47 {dimension_numbers = #tpu.dot_dimension_numbers<[1], [0], [0], [1], [0, 0, 1, 1], [], []>} : vector<8x8xf32>, vector<8x8xf32>, vector<8x8xf32> -> vector<8x8xf32>
    %cst_48 = arith.constant 0.176776692 : f32
    %130 = vector.broadcast %cst_48 : f32 to vector<8x8xf32>
    %131 = arith.mulf %129, %130 : vector<8x8xf32>
    %cst_49 = arith.constant dense<0xFF800000> : vector<8xf32>
    %132 = vector.multi_reduction <maximumf>, %131, %cst_49 [1] : vector<8x8xf32> to vector<8xf32>
    %133 = vector.shape_cast %132 : vector<8xf32> to vector<8x1xf32>
    %134 = vector.broadcast %133 : vector<8x1xf32> to vector<8x8xf32>
    %135 = arith.subf %131, %134 : vector<8x8xf32>
    %136 = math.exp %135 : vector<8x8xf32>
    %cst_50 = arith.constant dense<0.000000e+00> : vector<8xf32>
    %137 = vector.multi_reduction <add>, %136, %cst_50 [1] : vector<8x8xf32> to vector<8xf32>
    %138 = vector.shape_cast %137 : vector<8xf32> to vector<8x1xf32>
    %139 = tpu.reciprocal %138 {approx = true} : vector<8x1xf32> -> vector<8x1xf32>
    %140 = vector.broadcast %139 : vector<8x1xf32> to vector<8x8xf32>
    %141 = arith.mulf %136, %140 : vector<8x8xf32>
    %cst_51 = arith.constant dense<0.000000e+00> : vector<8x8xf32>
    %142 = tpu.matmul %141, %127, %cst_51 {dimension_numbers = #tpu.dot_dimension_numbers<[1], [0], [0], [1], [0, 0, 1, 1], [], []>} : vector<8x8xf32>, vector<8x8xf32>, vector<8x8xf32> -> vector<8x8xf32>
    %c8_52 = arith.constant 8 : index
    %c16_53 = arith.constant 16 : index
    %143 = vector.load %arg16[%c8_52, %c16_53] : memref<16x32xf32, #tpu.memory_space<vmem>>, vector<8x8xf32>
    tpu.vector_store %arg16[%c8_52, %c16_53], %142 {strides = array<i32>} : memref<16x32xf32, #tpu.memory_space<vmem>>, vector<8x8xf32>,
    %144 = vector.extract_strided_slice %10 {offsets = [8, 24], sizes = [8, 8], strides = [1, 1]} : vector<16x96xf32> to vector<8x8xf32>
    %145 = vector.extract_strided_slice %10 {offsets = [8, 56], sizes = [8, 8], strides = [1, 1]} : vector<16x96xf32> to vector<8x8xf32>
    %146 = vector.extract_strided_slice %10 {offsets = [8, 88], sizes = [8, 8], strides = [1, 1]} : vector<16x96xf32> to vector<8x8xf32>
    %147 = tpu.transpose %145, [1, 0] : vector<8x8xf32> -> vector<8x8xf32>
    %cst_54 = arith.constant dense<0.000000e+00> : vector<8x8xf32>
    %148 = tpu.matmul %144, %147, %cst_54 {dimension_numbers = #tpu.dot_dimension_numbers<[1], [0], [0], [1], [0, 0, 1, 1], [], []>} : vector<8x8xf32>, vector<8x8xf32>, vector<8x8xf32> -> vector<8x8xf32>
    %cst_55 = arith.constant 0.176776692 : f32
    %149 = vector.broadcast %cst_55 : f32 to vector<8x8xf32>
    %150 = arith.mulf %148, %149 : vector<8x8xf32>
    %cst_56 = arith.constant dense<0xFF800000> : vector<8xf32>
    %151 = vector.multi_reduction <maximumf>, %150, %cst_56 [1] : vector<8x8xf32> to vector<8xf32>
    %152 = vector.shape_cast %151 : vector<8xf32> to vector<8x1xf32>
    %153 = vector.broadcast %152 : vector<8x1xf32> to vector<8x8xf32>
    %154 = arith.subf %150, %153 : vector<8x8xf32>
    %155 = math.exp %154 : vector<8x8xf32>
    %cst_57 = arith.constant dense<0.000000e+00> : vector<8xf32>
    %156 = vector.multi_reduction <add>, %155, %cst_57 [1] : vector<8x8xf32> to vector<8xf32>
    %157 = vector.shape_cast %156 : vector<8xf32> to vector<8x1xf32>
    %158 = tpu.reciprocal %157 {approx = true} : vector<8x1xf32> -> vector<8x1xf32>
    %159 = vector.broadcast %158 : vector<8x1xf32> to vector<8x8xf32>
    %160 = arith.mulf %155, %159 : vector<8x8xf32>
    %cst_58 = arith.constant dense<0.000000e+00> : vector<8x8xf32>
    %161 = tpu.matmul %160, %146, %cst_58 {dimension_numbers = #tpu.dot_dimension_numbers<[1], [0], [0], [1], [0, 0, 1, 1], [], []>} : vector<8x8xf32>, vector<8x8xf32>, vector<8x8xf32> -> vector<8x8xf32>
    %c8_59 = arith.constant 8 : index
    %c24_60 = arith.constant 24 : index
    %162 = vector.load %arg16[%c8_59, %c24_60] : memref<16x32xf32, #tpu.memory_space<vmem>>, vector<8x8xf32>
    tpu.vector_store %arg16[%c8_59, %c24_60], %161 {strides = array<i32>} : memref<16x32xf32, #tpu.memory_space<vmem>>, vector<8x8xf32>,
    %c0_61 = arith.constant 0 : index
    %c0_62 = arith.constant 0 : index
    %163 = vector.load %arg16[%c0_61, %c0_62] : memref<16x32xf32, #tpu.memory_space<vmem>>, vector<16x32xf32>
    %c0_63 = arith.constant 0 : index
    %c0_64 = arith.constant 0 : index
    %c0_65 = arith.constant 0 : index
    %164 = vector.load %arg4[%c0_63, %c0_64, %c0_65] : memref<1x32x32xf32, #tpu.memory_space<vmem>>, vector<1x32x32xf32>
    %165 = vector.shape_cast %164 : vector<1x32x32xf32> to vector<32x32xf32>
    %cst_66 = arith.constant dense<0.000000e+00> : vector<16x32xf32>
    %166 = tpu.matmul %163, %165, %cst_66 {dimension_numbers = #tpu.dot_dimension_numbers<[1], [0], [0], [1], [0, 0, 1, 1], [], []>} : vector<16x32xf32>, vector<32x32xf32>, vector<16x32xf32> -> vector<16x32xf32>
    %c0_67 = arith.constant 0 : index
    %c0_68 = arith.constant 0 : index
    %c0_69 = arith.constant 0 : index
    %167 = vector.load %arg5[%c0_67, %c0_68, %c0_69] : memref<1x1x32xf32, #tpu.memory_space<vmem>>, vector<1x1x32xf32>
    %168 = vector.shape_cast %167 : vector<1x1x32xf32> to vector<1x32xf32>
    %169 = vector.broadcast %168 : vector<1x32xf32> to vector<16x32xf32>
    %170 = arith.addf %166, %169 : vector<16x32xf32>
    %171 = arith.addf %3, %170 : vector<16x32xf32>
    %cst_70 = arith.constant dense<0.000000e+00> : vector<16xf32>
    %172 = vector.multi_reduction <add>, %171, %cst_70 [1] : vector<16x32xf32> to vector<16xf32>
    %173 = vector.shape_cast %172 : vector<16xf32> to vector<16x1xf32>
    %cst_71 = arith.constant 3.200000e+01 : f32
    %174 = vector.broadcast %cst_71 : f32 to vector<16x1xf32>
    %175 = arith.divf %173, %174 : vector<16x1xf32>
    %176 = vector.broadcast %175 : vector<16x1xf32> to vector<16x32xf32>
    %177 = arith.subf %171, %176 : vector<16x32xf32>
    %178 = arith.mulf %177, %177 : vector<16x32xf32>
    %cst_72 = arith.constant dense<0.000000e+00> : vector<16xf32>
    %179 = vector.multi_reduction <add>, %178, %cst_72 [1] : vector<16x32xf32> to vector<16xf32>
    %180 = vector.shape_cast %179 : vector<16xf32> to vector<16x1xf32>
    %cst_73 = arith.constant 3.200000e+01 : f32
    %181 = vector.broadcast %cst_73 : f32 to vector<16x1xf32>
    %182 = arith.divf %180, %181 : vector<16x1xf32>
    %183 = vector.broadcast %175 : vector<16x1xf32> to vector<16x32xf32>
    %184 = arith.subf %171, %183 : vector<16x32xf32>
    %cst_74 = arith.constant 9.99999974E-6 : f32
    %185 = vector.broadcast %cst_74 : f32 to vector<16x1xf32>
    %186 = arith.addf %182, %185 : vector<16x1xf32>
    %187 = math.rsqrt %186 : vector<16x1xf32>
    %188 = vector.broadcast %187 : vector<16x1xf32> to vector<16x32xf32>
    %189 = arith.mulf %184, %188 : vector<16x32xf32>
    %c0_75 = arith.constant 0 : index
    %c0_76 = arith.constant 0 : index
    %c0_77 = arith.constant 0 : index
    %190 = vector.load %arg6[%c0_75, %c0_76, %c0_77] : memref<1x1x32xf32, #tpu.memory_space<vmem>>, vector<1x1x32xf32>
    %191 = vector.shape_cast %190 : vector<1x1x32xf32> to vector<1x32xf32>
    %192 = vector.broadcast %191 : vector<1x32xf32> to vector<16x32xf32>
    %193 = arith.mulf %189, %192 : vector<16x32xf32>
    %c0_78 = arith.constant 0 : index
    %c0_79 = arith.constant 0 : index
    %c0_80 = arith.constant 0 : index
    %194 = vector.load %arg7[%c0_78, %c0_79, %c0_80] : memref<1x1x32xf32, #tpu.memory_space<vmem>>, vector<1x1x32xf32>
    %195 = vector.shape_cast %194 : vector<1x1x32xf32> to vector<1x32xf32>
    %196 = vector.broadcast %195 : vector<1x32xf32> to vector<16x32xf32>
    %197 = arith.addf %193, %196 : vector<16x32xf32>
    %c0_81 = arith.constant 0 : index
    %c0_82 = arith.constant 0 : index
    %c0_83 = arith.constant 0 : index
    %198 = vector.load %arg8[%c0_81, %c0_82, %c0_83] : memref<1x32x64xf32, #tpu.memory_space<vmem>>, vector<1x32x64xf32>
    %199 = vector.shape_cast %198 : vector<1x32x64xf32> to vector<32x64xf32>
    %cst_84 = arith.constant dense<0.000000e+00> : vector<16x64xf32>
    %200 = tpu.matmul %197, %199, %cst_84 {dimension_numbers = #tpu.dot_dimension_numbers<[1], [0], [0], [1], [0, 0, 1, 1], [], []>} : vector<16x32xf32>, vector<32x64xf32>, vector<16x64xf32> -> vector<16x64xf32>
    %c0_85 = arith.constant 0 : index
    %c0_86 = arith.constant 0 : index
    %c0_87 = arith.constant 0 : index
    %201 = vector.load %arg9[%c0_85, %c0_86, %c0_87] : memref<1x1x64xf32, #tpu.memory_space<vmem>>, vector<1x1x64xf32>
    %202 = vector.shape_cast %201 : vector<1x1x64xf32> to vector<1x64xf32>
    %203 = vector.broadcast %202 : vector<1x64xf32> to vector<16x64xf32>
    %204 = arith.addf %200, %203 : vector<16x64xf32>
    %cst_88 = arith.constant 0.000000e+00 : f32
    %205 = vector.broadcast %cst_88 : f32 to vector<16x64xf32>
    %206 = arith.maximumf %204, %205 : vector<16x64xf32>
    %c0_89 = arith.constant 0 : index
    %c0_90 = arith.constant 0 : index
    %c0_91 = arith.constant 0 : index
    %207 = vector.load %arg10[%c0_89, %c0_90, %c0_91] : memref<1x64x32xf32, #tpu.memory_space<vmem>>, vector<1x64x32xf32>
    %208 = vector.shape_cast %207 : vector<1x64x32xf32> to vector<64x32xf32>
    %cst_92 = arith.constant dense<0.000000e+00> : vector<16x32xf32>
    %209 = tpu.matmul %206, %208, %cst_92 {dimension_numbers = #tpu.dot_dimension_numbers<[1], [0], [0], [1], [0, 0, 1, 1], [], []>} : vector<16x64xf32>, vector<64x32xf32>, vector<16x32xf32> -> vector<16x32xf32>
    %c0_93 = arith.constant 0 : index
    %c0_94 = arith.constant 0 : index
    %c0_95 = arith.constant 0 : index
    %210 = vector.load %arg11[%c0_93, %c0_94, %c0_95] : memref<1x1x32xf32, #tpu.memory_space<vmem>>, vector<1x1x32xf32>
    %211 = vector.shape_cast %210 : vector<1x1x32xf32> to vector<1x32xf32>
    %212 = vector.broadcast %211 : vector<1x32xf32> to vector<16x32xf32>
    %213 = arith.addf %209, %212 : vector<16x32xf32>
    %214 = arith.addf %197, %213 : vector<16x32xf32>
    %cst_96 = arith.constant dense<0.000000e+00> : vector<16xf32>
    %215 = vector.multi_reduction <add>, %214, %cst_96 [1] : vector<16x32xf32> to vector<16xf32>
    %216 = vector.shape_cast %215 : vector<16xf32> to vector<16x1xf32>
    %cst_97 = arith.constant 3.200000e+01 : f32
    %217 = vector.broadcast %cst_97 : f32 to vector<16x1xf32>
    %218 = arith.divf %216, %217 : vector<16x1xf32>
    %219 = vector.broadcast %218 : vector<16x1xf32> to vector<16x32xf32>
    %220 = arith.subf %214, %219 : vector<16x32xf32>
    %221 = arith.mulf %220, %220 : vector<16x32xf32>
    %cst_98 = arith.constant dense<0.000000e+00> : vector<16xf32>
    %222 = vector.multi_reduction <add>, %221, %cst_98 [1] : vector<16x32xf32> to vector<16xf32>
    %223 = vector.shape_cast %222 : vector<16xf32> to vector<16x1xf32>
    %cst_99 = arith.constant 3.200000e+01 : f32
    %224 = vector.broadcast %cst_99 : f32 to vector<16x1xf32>
    %225 = arith.divf %223, %224 : vector<16x1xf32>
    %226 = vector.broadcast %218 : vector<16x1xf32> to vector<16x32xf32>
    %227 = arith.subf %214, %226 : vector<16x32xf32>
    %cst_100 = arith.constant 9.99999974E-6 : f32
    %228 = vector.broadcast %cst_100 : f32 to vector<16x1xf32>
    %229 = arith.addf %225, %228 : vector<16x1xf32>
    %230 = math.rsqrt %229 : vector<16x1xf32>
    %231 = vector.broadcast %230 : vector<16x1xf32> to vector<16x32xf32>
    %232 = arith.mulf %227, %231 : vector<16x32xf32>
    %c0_101 = arith.constant 0 : index
    %c0_102 = arith.constant 0 : index
    %c0_103 = arith.constant 0 : index
    %233 = vector.load %arg12[%c0_101, %c0_102, %c0_103] : memref<1x1x32xf32, #tpu.memory_space<vmem>>, vector<1x1x32xf32>
    %234 = vector.shape_cast %233 : vector<1x1x32xf32> to vector<1x32xf32>
    %235 = vector.broadcast %234 : vector<1x32xf32> to vector<16x32xf32>
    %236 = arith.mulf %232, %235 : vector<16x32xf32>
    %c0_104 = arith.constant 0 : index
    %c0_105 = arith.constant 0 : index
    %c0_106 = arith.constant 0 : index
    %237 = vector.load %arg13[%c0_104, %c0_105, %c0_106] : memref<1x1x32xf32, #tpu.memory_space<vmem>>, vector<1x1x32xf32>
    %238 = vector.shape_cast %237 : vector<1x1x32xf32> to vector<1x32xf32>
    %239 = vector.broadcast %238 : vector<1x32xf32> to vector<16x32xf32>
    %240 = arith.addf %236, %239 : vector<16x32xf32>
    %c0_107 = arith.constant 0 : index
    %c0_108 = arith.constant 0 : index
    %241 = vector.load %arg15[%c0_107, %c0_108] : memref<16x32xf32, #tpu.memory_space<vmem>>, vector<16x32xf32>
    tpu.vector_store %arg15[%c0_107, %c0_108], %240 {strides = array<i32>} : memref<16x32xf32, #tpu.memory_space<vmem>>, vector<16x32xf32>,
    %c1_i32 = arith.constant 1 : i32
    %242 = arith.cmpi eq, %arg0, %c1_i32 : i32
    %243 = arith.extui %242 : i1 to i32
    %c0_i32_109 = arith.constant 0 : i32
    %244 = arith.cmpi ne, %243, %c0_i32_109 : i32
    scf.if %244 {
      %c0_110 = arith.constant 0 : index
      %c0_111 = arith.constant 0 : index
      %245 = vector.load %arg14[%c0_110, %c0_111] : memref<16x32xf32, #tpu.memory_space<vmem>>, vector<16x32xf32>
      tpu.vector_store %arg14[%c0_110, %c0_111], %240 {strides = array<i32>} : memref<16x32xf32, #tpu.memory_space<vmem>>, vector<16x32xf32>,
    } else {
    }
    return
  }
  func.func @transform_0(%arg0: i32) -> (i32, i32) {
    %c0_i32 = arith.constant 0 : i32
    %c0_i32_0 = arith.constant 0 : i32
    %c0_i32_1 = arith.constant 0 : i32
    return %c0_i32, %c0_i32_0 : i32, i32
  }
  func.func @transform_1(%arg0: i32) -> (i32, i32, i32) {
    %c0_i32 = arith.constant 0 : i32
    %c0_i32_0 = arith.constant 0 : i32
    %c0_i32_1 = arith.constant 0 : i32
    return %arg0, %c0_i32, %c0_i32_0 : i32, i32, i32
  }
  func.func @transform_2(%arg0: i32) -> (i32, i32, i32) {
    %c0_i32 = arith.constant 0 : i32
    %c0_i32_0 = arith.constant 0 : i32
    %c0_i32_1 = arith.constant 0 : i32
    return %arg0, %c0_i32, %c0_i32_0 : i32, i32, i32
  }
  func.func @transform_3(%arg0: i32) -> (i32, i32, i32) {
    %c0_i32 = arith.constant 0 : i32
    %c0_i32_0 = arith.constant 0 : i32
    %c0_i32_1 = arith.constant 0 : i32
    return %arg0, %c0_i32, %c0_i32_0 : i32, i32, i32
  }
  func.func @transform_4(%arg0: i32) -> (i32, i32, i32) {
    %c0_i32 = arith.constant 0 : i32
    %c0_i32_0 = arith.constant 0 : i32
    %c0_i32_1 = arith.constant 0 : i32
    return %arg0, %c0_i32, %c0_i32_0 : i32, i32, i32
  }
  func.func @transform_5(%arg0: i32) -> (i32, i32, i32) {
    %c0_i32 = arith.constant 0 : i32
    %c0_i32_0 = arith.constant 0 : i32
    %c0_i32_1 = arith.constant 0 : i32
    return %arg0, %c0_i32, %c0_i32_0 : i32, i32, i32
  }
  func.func @transform_6(%arg0: i32) -> (i32, i32, i32) {
    %c0_i32 = arith.constant 0 : i32
    %c0_i32_0 = arith.constant 0 : i32
    %c0_i32_1 = arith.constant 0 : i32
    return %arg0, %c0_i32, %c0_i32_0 : i32, i32, i32
  }
  func.func @transform_7(%arg0: i32) -> (i32, i32, i32) {
    %c0_i32 = arith.constant 0 : i32
    %c0_i32_0 = arith.constant 0 : i32
    %c0_i32_1 = arith.constant 0 : i32
    return %arg0, %c0_i32, %c0_i32_0 : i32, i32, i32
  }
  func.func @transform_8(%arg0: i32) -> (i32, i32, i32) {
    %c0_i32 = arith.constant 0 : i32
    %c0_i32_0 = arith.constant 0 : i32
    %c0_i32_1 = arith.constant 0 : i32
    return %arg0, %c0_i32, %c0_i32_0 : i32, i32, i32
  }
  func.func @transform_9(%arg0: i32) -> (i32, i32, i32) {
    %c0_i32 = arith.constant 0 : i32
    %c0_i32_0 = arith.constant 0 : i32
    %c0_i32_1 = arith.constant 0 : i32
    return %arg0, %c0_i32, %c0_i32_0 : i32, i32, i32
  }
  func.func @transform_10(%arg0: i32) -> (i32, i32, i32) {
    %c0_i32 = arith.constant 0 : i32
    %c0_i32_0 = arith.constant 0 : i32
    %c0_i32_1 = arith.constant 0 : i32
    return %arg0, %c0_i32, %c0_i32_0 : i32, i32, i32
  }
  func.func @transform_11(%arg0: i32) -> (i32, i32, i32) {
    %c0_i32 = arith.constant 0 : i32
    %c0_i32_0 = arith.constant 0 : i32
    %c0_i32_1 = arith.constant 0 : i32
    return %arg0, %c0_i32, %c0_i32_0 : i32, i32, i32
  }
  func.func @transform_12(%arg0: i32) -> (i32, i32, i32) {
    %c0_i32 = arith.constant 0 : i32
    %c0_i32_0 = arith.constant 0 : i32
    %c0_i32_1 = arith.constant 0 : i32
    return %arg0, %c0_i32, %c0_i32_0 : i32, i32, i32
  }
  func.func @transform_13(%arg0: i32) -> (i32, i32) {
    %c0_i32 = arith.constant 0 : i32
    %c0_i32_0 = arith.constant 0 : i32
    %c0_i32_1 = arith.constant 0 : i32
    return %c0_i32, %c0_i32_0 : i32, i32
  }
}

</mosaic_0001>

<llo_original>
// kernel: tpu_custom_call.1
$region0: #{tpu_custom_call.1}
  #allocation0 [shape = 'u32[]', space=smem, size = 0x4, offset = 0x4, fixed_abs, tag = 'smem constant byte address 0x4 - core index']
  #allocation1 [shape = 'u32[144,128]{1,0:T(1,128)}', space=vmem, size = 0x12000, scoped, tag = 'internal scratch']
  #allocation2 [shape = 'f32[16,32]{1,0:T(8,128)}', space=vmem, size = 0x2000, scoped, tag = 'scratch operand']
  #allocation3 [shape = 'f32[16,32]{1,0:T(8,128)}', space=vmem, size = 0x2000, scoped, tag = 'scratch operand']
  %s0 = inlined_call_operand.hbm [shape: f32[16,32], index: 0, kind: input, shape index: {}]
  %s1 = inlined_call_operand.hbm [shape: f32[2,32,96], index: 1, kind: input, shape index: {}]
  %s2 = inlined_call_operand.hbm [shape: f32[2,1,96], index: 2, kind: input, shape index: {}]
  %s3 = inlined_call_operand.hbm [shape: f32[2,32,32], index: 3, kind: input, shape index: {}]
  %s4 = inlined_call_operand.hbm [shape: f32[2,1,32], index: 4, kind: input, shape index: {}]
  %s5 = inlined_call_operand.hbm [shape: f32[2,1,32], index: 5, kind: input, shape index: {}]
  %s6 = inlined_call_operand.hbm [shape: f32[2,1,32], index: 6, kind: input, shape index: {}]
  %s7 = inlined_call_operand.hbm [shape: f32[2,32,64], index: 7, kind: input, shape index: {}]
  %s8 = inlined_call_operand.hbm [shape: f32[2,1,64], index: 8, kind: input, shape index: {}]
  %s9 = inlined_call_operand.hbm [shape: f32[2,64,32], index: 9, kind: input, shape index: {}]
  %s10 = inlined_call_operand.hbm [shape: f32[2,1,32], index: 10, kind: input, shape index: {}]
  %s11 = inlined_call_operand.hbm [shape: f32[2,1,32], index: 11, kind: input, shape index: {}]
  %s12 = inlined_call_operand.hbm [shape: f32[2,1,32], index: 12, kind: input, shape index: {}]
  %s13 = inlined_call_operand.hbm [shape: f32[16,32], index: 13, kind: output, shape index: {}]
  %s14 = sld [smem:[#allocation0]]
  $region145: #{tpu_custom_call.1} parent=0
    _
  %s16 = ssub.s32 1, %s14
  %s17 = scalar_select 0, %s16, %s14
  $region1: #{tpu_custom_call.1} parent=0
    #allocation4 [shape = 'u8[8192]{0}', space=vmem, size = 0x2000, scoped, tag = 'input window, operand 0, single buffered']
    #allocation5 [shape = 's32[2]{0}', space=sflag, size = 0x8, scoped, tag = 'scoped memory for tpu_custom_call.1']
    #allocation6 [shape = 's32[2]{0}', space=sflag, size = 0x8, scoped, tag = 'scoped memory for tpu_custom_call.1']
    #allocation7 [shape = 'u8[32768]{0}', space=vmem, size = 0x8000, scoped, tag = 'input window, operand 1']
    #allocation8 [shape = 's32[2]{0}', space=sflag, size = 0x8, scoped, tag = 'scoped memory for tpu_custom_call.1']
    #allocation9 [shape = 'u8[1024]{0}', space=vmem, size = 0x400, scoped, tag = 'input window, operand 2']
    #allocation10 [shape = 'u8[32768]{0}', space=vmem, size = 0x8000, scoped, tag = 'input window, operand 3']
    #allocation11 [shape = 's32[2]{0}', space=sflag, size = 0x8, scoped, tag = 'scoped memory for tpu_custom_call.1']
    #allocation12 [shape = 'u8[1024]{0}', space=vmem, size = 0x400, scoped, tag = 'input window, operand 4']
    #allocation13 [shape = 'u8[1024]{0}', space=vmem, size = 0x400, scoped, tag = 'input window, operand 5']
    #allocation14 [shape = 's32[2]{0}', space=sflag, size = 0x8, scoped, tag = 'scoped memory for tpu_custom_call.1']
    #allocation15 [shape = 'u8[1024]{0}', space=vmem, size = 0x400, scoped, tag = 'input window, operand 6']
    #allocation16 [shape = 'u8[32768]{0}', space=vmem, size = 0x8000, scoped, tag = 'input window, operand 7']
    #allocation17 [shape = 's32[2]{0}', space=sflag, size = 0x8, scoped, tag = 'scoped memory for tpu_custom_call.1']
    #allocation18 [shape = 'u8[1024]{0}', space=vmem, size = 0x400, scoped, tag = 'input window, operand 8']
    #allocation19 [shape = 'u8[65536]{0}', space=vmem, size = 0x10000, scoped, tag = 'input window, operand 9']
    #allocation20 [shape = 's32[2]{0}', space=sflag, size = 0x8, scoped, tag = 'scoped memory for tpu_custom_call.1']
    #allocation21 [shape = 'u8[1024]{0}', space=vmem, size = 0x400, scoped, tag = 'input window, operand 10']
    #allocation22 [shape = 'u8[1024]{0}', space=vmem, size = 0x400, scoped, tag = 'input window, operand 11']
    #allocation23 [shape = 's32[2]{0}', space=sflag, size = 0x8, scoped, tag = 'scoped memory for tpu_custom_call.1']
    #allocation24 [shape = 'u8[1024]{0}', space=vmem, size = 0x400, scoped, tag = 'input window, operand 12']
    #allocation25 [shape = 'u8[8192]{0}', space=vmem, size = 0x2000, scoped, tag = 'output window, operand 0, single buffered']
    %18 = vsyncpa [#allocation5], 0
    %19 = vsyncpa [#allocation8], 0
    %s20 = scalar_lea.sflag [#allocation8], 1
    %21 = vsyncpa %s20, 0
    %22 = vsyncpa [#allocation11], 0
    %s23 = scalar_lea.sflag [#allocation11], 1
    %24 = vsyncpa %s23, 0
    %25 = vsyncpa [#allocation14], 0
    %s26 = scalar_lea.sflag [#allocation14], 1
    %27 = vsyncpa %s26, 0
    %28 = vsyncpa [#allocation17], 0
    %s29 = scalar_lea.sflag [#allocation17], 1
    %30 = vsyncpa %s29, 0
    %31 = vsyncpa [#allocation20], 0
    %s32 = scalar_lea.sflag [#allocation20], 1
    %33 = vsyncpa %s32, 0
    %34 = vsyncpa [#allocation23], 0
    %s35 = scalar_lea.sflag [#allocation23], 1
    %36 = vsyncpa %s35, 0
    %37 = vsyncpa [#allocation6], 0
    loop: start=0, step=1, limit=4
    $region2: #{tpu_custom_call.1} parent=1 // loop_pre_header
      _
    $region3: #{tpu_custom_call.1} parent=1 // loop_header
      %s39 = sphi 0, %s43
      %p40 = scmp.ge.s32.totalorder %s39, 4
      %s47 = sphi 0, %s47
      %s49 = sphi 0, %s47
      %s50 = sphi 0, %s49
      %s64 = sphi 0, %s50
      %s70 = sphi 0, %s72
      %s73 = sphi 0, %s70
      %s74 = sphi 0, %s73
      %s90 = sphi 0, %s74
      %s96 = sphi 0, %s98
      %s99 = sphi 0, %s96
      %s100 = sphi 0, %s99
      %s116 = sphi 0, %s100
      %s122 = sphi 0, %s124
      %s125 = sphi 0, %s122
      %s126 = sphi 0, %s125
      %s142 = sphi 0, %s126
      %s148 = sphi 0, %s150
      %s151 = sphi 0, %s148
      %s152 = sphi 0, %s151
      %s168 = sphi 0, %s152
      %s174 = sphi 0, %s176
      %s177 = sphi 0, %s174
      %s178 = sphi 0, %s177
      %s194 = sphi 0, %s178
      %s200 = sphi 0, %s202
      %s203 = sphi 0, %s200
      %s204 = sphi 0, %s203
      %s220 = sphi 0, %s204
      %s226 = sphi 0, %s228
      %s229 = sphi 0, %s226
      %s230 = sphi 0, %s229
      %s246 = sphi 0, %s230
      %s252 = sphi 0, %s254
      %s255 = sphi 0, %s252
      %s256 = sphi 0, %s255
      %s272 = sphi 0, %s256
      %s278 = sphi 0, %s280
      %s281 = sphi 0, %s278
      %s282 = sphi 0, %s281
      %s298 = sphi 0, %s282
      %s304 = sphi 0, %s306
      %s307 = sphi 0, %s304
      %s308 = sphi 0, %s307
      %s324 = sphi 0, %s308
      %s330 = sphi 0, %s332
      %s333 = sphi 0, %s330
      %s334 = sphi 0, %s333
      %s350 = sphi 0, %s334
      %s356 = sphi 0, %s358
      %s359 = sphi 0, %s356
      %s360 = sphi 0, %s359
      %s376 = sphi 0, %s360
      %s380 = sphi 0, %s380
      %s382 = sphi 0, %s380
      %s383 = sphi 0, %s382
      %s397 = sphi 0, %s383
    $region4: #{tpu_custom_call.1} parent=1 // loop_header_branch
      %42 = sbr.rel (%p40) target = $region8
    $region5: #{tpu_custom_call.1} parent=1 // loop_body
      %s44 = ssub.s32 %s39, 1
      %s45 = ssub.s32 %s39, 2
      %s46 = sadd.s32 %s39, 1
      %s48 = sadd.s32 %s47, 1
      %p51 = scmp.eq.s32.totalorder %s39, 1
      %p52 = scmp.ne.s32.totalorder %s47, %s49
      %p53 = scmp.eq.s32.totalorder %s39, 0
      %p54 = por %p52, %p53
      %p55 = scmp.ne.s32.totalorder %s47, %s49
      %p56 = scmp.eq.s32.totalorder %s44, 1
      %p57 = por %p55, %p56
      %p58 = scmp.ne.s32.totalorder %s49, %s50
      %p59 = scmp.eq.s32.totalorder %s44, 0
      %p60 = por %p58, %p59
      %p61 = scmp.ne.s32.totalorder %s49, %s50
      %p62 = scmp.eq.s32.totalorder %s45, 1
      %p63 = por %p61, %p62
      %p65 = scmp.ne.s32.totalorder %s50, %s64
      %p66 = scmp.eq.s32.totalorder %s45, 0
      %p67 = por %p65, %p66
      %s68 = ssub.s32 %s39, %s46
      %p69 = scmp.eq.s32.totalorder %s68, 0
      %s71 = sadd.s32 %s70, 1
      %s72 = scalar_select %p69, %s70, %s71
      %p75 = pneg %p69
      %p76 = scmp.eq.s32.totalorder %s39, 1
      %p77 = por %p75, %p76
      %p78 = scmp.ne.s32.totalorder %s70, %s73
      %p79 = scmp.eq.s32.totalorder %s39, 0
      %p80 = por %p78, %p79
      %p81 = scmp.ne.s32.totalorder %s70, %s73
      %p82 = scmp.eq.s32.totalorder %s44, 1
      %p83 = por %p81, %p82
      %p84 = scmp.ne.s32.totalorder %s73, %s74
      %p85 = scmp.eq.s32.totalorder %s44, 0
      %p86 = por %p84, %p85
      %p87 = scmp.ne.s32.totalorder %s73, %s74
      %p88 = scmp.eq.s32.totalorder %s45, 1
      %p89 = por %p87, %p88
      %p91 = scmp.ne.s32.totalorder %s74, %s90
      %p92 = scmp.eq.s32.totalorder %s45, 0
      %p93 = por %p91, %p92
      %s94 = ssub.s32 %s39, %s46
      %p95 = scmp.eq.s32.totalorder %s94, 0
      %s97 = sadd.s32 %s96, 1
      %s98 = scalar_select %p95, %s96, %s97
      %p101 = pneg %p95
      %p102 = scmp.eq.s32.totalorder %s39, 1
      %p103 = por %p101, %p102
      %p104 = scmp.ne.s32.totalorder %s96, %s99
      %p105 = scmp.eq.s32.totalorder %s39, 0
      %p106 = por %p104, %p105
      %p107 = scmp.ne.s32.totalorder %s96, %s99
      %p108 = scmp.eq.s32.totalorder %s44, 1
      %p109 = por %p107, %p108
      %p110 = scmp.ne.s32.totalorder %s99, %s100
      %p111 = scmp.eq.s32.totalorder %s44, 0
      %p112 = por %p110, %p111
      %p113 = scmp.ne.s32.totalorder %s99, %s100
      %p114 = scmp.eq.s32.totalorder %s45, 1
      %p115 = por %p113, %p114
      %p117 = scmp.ne.s32.totalorder %s100, %s116
      %p118 = scmp.eq.s32.totalorder %s45, 0
      %p119 = por %p117, %p118
      %s120 = ssub.s32 %s39, %s46
      %p121 = scmp.eq.s32.totalorder %s120, 0
      %s123 = sadd.s32 %s122, 1
      %s124 = scalar_select %p121, %s122, %s123
      %p127 = pneg %p121
      %p128 = scmp.eq.s32.totalorder %s39, 1
      %p129 = por %p127, %p128
      %p130 = scmp.ne.s32.totalorder %s122, %s125
      %p131 = scmp.eq.s32.totalorder %s39, 0
      %p132 = por %p130, %p131
      %p133 = scmp.ne.s32.totalorder %s122, %s125
      %p134 = scmp.eq.s32.totalorder %s44, 1
      %p135 = por %p133, %p134
      %p136 = scmp.ne.s32.totalorder %s125, %s126
      %p137 = scmp.eq.s32.totalorder %s44, 0
      %p138 = por %p136, %p137
      %p139 = scmp.ne.s32.totalorder %s125, %s126
      %p140 = scmp.eq.s32.totalorder %s45, 1
      %p141 = por %p139, %p140
      %p143 = scmp.ne.s32.totalorder %s126, %s142
      %p144 = scmp.eq.s32.totalorder %s45, 0
      %p145 = por %p143, %p144
      %s146 = ssub.s32 %s39, %s46
      %p147 = scmp.eq.s32.totalorder %s146, 0
      %s149 = sadd.s32 %s148, 1
      %s150 = scalar_select %p147, %s148, %s149
      %p153 = pneg %p147
      %p154 = scmp.eq.s32.totalorder %s39, 1
      %p155 = por %p153, %p154
      %p156 = scmp.ne.s32.totalorder %s148, %s151
      %p157 = scmp.eq.s32.totalorder %s39, 0
      %p158 = por %p156, %p157
      %p159 = scmp.ne.s32.totalorder %s148, %s151
      %p160 = scmp.eq.s32.totalorder %s44, 1
      %p161 = por %p159, %p160
      %p162 = scmp.ne.s32.totalorder %s151, %s152
      %p163 = scmp.eq.s32.totalorder %s44, 0
      %p164 = por %p162, %p163
      %p165 = scmp.ne.s32.totalorder %s151, %s152
      %p166 = scmp.eq.s32.totalorder %s45, 1
      %p167 = por %p165, %p166
      %p169 = scmp.ne.s32.totalorder %s152, %s168
      %p170 = scmp.eq.s32.totalorder %s45, 0
      %p171 = por %p169, %p170
      %s172 = ssub.s32 %s39, %s46
      %p173 = scmp.eq.s32.totalorder %s172, 0
      %s175 = sadd.s32 %s174, 1
      %s176 = scalar_select %p173, %s174, %s175
      %p179 = pneg %p173
      %p180 = scmp.eq.s32.totalorder %s39, 1
      %p181 = por %p179, %p180
      %p182 = scmp.ne.s32.totalorder %s174, %s177
      %p183 = scmp.eq.s32.totalorder %s39, 0
      %p184 = por %p182, %p183
      %p185 = scmp.ne.s32.totalorder %s174, %s177
      %p186 = scmp.eq.s32.totalorder %s44, 1
      %p187 = por %p185, %p186
      %p188 = scmp.ne.s32.totalorder %s177, %s178
      %p189 = scmp.eq.s32.totalorder %s44, 0
      %p190 = por %p188, %p189
      %p191 = scmp.ne.s32.totalorder %s177, %s178
      %p192 = scmp.eq.s32.totalorder %s45, 1
      %p193 = por %p191, %p192
      %p195 = scmp.ne.s32.totalorder %s178, %s194
      %p196 = scmp.eq.s32.totalorder %s45, 0
      %p197 = por %p195, %p196
      %s198 = ssub.s32 %s39, %s46
      %p199 = scmp.eq.s32.totalorder %s198, 0
      %s201 = sadd.s32 %s200, 1
      %s202 = scalar_select %p199, %s200, %s201
      %p205 = pneg %p199
      %p206 = scmp.eq.s32.totalorder %s39, 1
      %p207 = por %p205, %p206
      %p208 = scmp.ne.s32.totalorder %s200, %s203
      %p209 = scmp.eq.s32.totalorder %s39, 0
      %p210 = por %p208, %p209
      %p211 = scmp.ne.s32.totalorder %s200, %s203
      %p212 = scmp.eq.s32.totalorder %s44, 1
      %p213 = por %p211, %p212
      %p214 = scmp.ne.s32.totalorder %s203, %s204
      %p215 = scmp.eq.s32.totalorder %s44, 0
      %p216 = por %p214, %p215
      %p217 = scmp.ne.s32.totalorder %s203, %s204
      %p218 = scmp.eq.s32.totalorder %s45, 1
      %p219 = por %p217, %p218
      %p221 = scmp.ne.s32.totalorder %s204, %s220
      %p222 = scmp.eq.s32.totalorder %s45, 0
      %p223 = por %p221, %p222
      %s224 = ssub.s32 %s39, %s46
      %p225 = scmp.eq.s32.totalorder %s224, 0
      %s227 = sadd.s32 %s226, 1
      %s228 = scalar_select %p225, %s226, %s227
      %p231 = pneg %p225
      %p232 = scmp.eq.s32.totalorder %s39, 1
      %p233 = por %p231, %p232
      %p234 = scmp.ne.s32.totalorder %s226, %s229
      %p235 = scmp.eq.s32.totalorder %s39, 0
      %p236 = por %p234, %p235
      %p237 = scmp.ne.s32.totalorder %s226, %s229
      %p238 = scmp.eq.s32.totalorder %s44, 1
      %p239 = por %p237, %p238
      %p240 = scmp.ne.s32.totalorder %s229, %s230
      %p241 = scmp.eq.s32.totalorder %s44, 0
      %p242 = por %p240, %p241
      %p243 = scmp.ne.s32.totalorder %s229, %s230
      %p244 = scmp.eq.s32.totalorder %s45, 1
      %p245 = por %p243, %p244
      %p247 = scmp.ne.s32.totalorder %s230, %s246
      %p248 = scmp.eq.s32.totalorder %s45, 0
      %p249 = por %p247, %p248
      %s250 = ssub.s32 %s39, %s46
      %p251 = scmp.eq.s32.totalorder %s250, 0
      %s253 = sadd.s32 %s252, 1
      %s254 = scalar_select %p251, %s252, %s253
      %p257 = pneg %p251
      %p258 = scmp.eq.s32.totalorder %s39, 1
      %p259 = por %p257, %p258
      %p260 = scmp.ne.s32.totalorder %s252, %s255
      %p261 = scmp.eq.s32.totalorder %s39, 0
      %p262 = por %p260, %p261
      %p263 = scmp.ne.s32.totalorder %s252, %s255
      %p264 = scmp.eq.s32.totalorder %s44, 1
      %p265 = por %p263, %p264
      %p266 = scmp.ne.s32.totalorder %s255, %s256
      %p267 = scmp.eq.s32.totalorder %s44, 0
      %p268 = por %p266, %p267
      %p269 = scmp.ne.s32.totalorder %s255, %s256
      %p270 = scmp.eq.s32.totalorder %s45, 1
      %p271 = por %p269, %p270
      %p273 = scmp.ne.s32.totalorder %s256, %s272
      %p274 = scmp.eq.s32.totalorder %s45, 0
      %p275 = por %p273, %p274
      %s276 = ssub.s32 %s39, %s46
      %p277 = scmp.eq.s32.totalorder %s276, 0
      %s279 = sadd.s32 %s278, 1
      %s280 = scalar_select %p277, %s278, %s279
      %p283 = pneg %p277
      %p284 = scmp.eq.s32.totalorder %s39, 1
      %p285 = por %p283, %p284
      %p286 = scmp.ne.s32.totalorder %s278, %s281
      %p287 = scmp.eq.s32.totalorder %s39, 0
      %p288 = por %p286, %p287
      %p289 = scmp.ne.s32.totalorder %s278, %s281
      %p290 = scmp.eq.s32.totalorder %s44, 1
      %p291 = por %p289, %p290
      %p292 = scmp.ne.s32.totalorder %s281, %s282
      %p293 = scmp.eq.s32.totalorder %s44, 0
      %p294 = por %p292, %p293
      %p295 = scmp.ne.s32.totalorder %s281, %s282
      %p296 = scmp.eq.s32.totalorder %s45, 1
      %p297 = por %p295, %p296
      %p299 = scmp.ne.s32.totalorder %s282, %s298
      %p300 = scmp.eq.s32.totalorder %s45, 0
      %p301 = por %p299, %p300
      %s302 = ssub.s32 %s39, %s46
      %p303 = scmp.eq.s32.totalorder %s302, 0
      %s305 = sadd.s32 %s304, 1
      %s306 = scalar_select %p303, %s304, %s305
      %p309 = pneg %p303
      %p310 = scmp.eq.s32.totalorder %s39, 1
      %p311 = por %p309, %p310
      %p312 = scmp.ne.s32.totalorder %s304, %s307
      %p313 = scmp.eq.s32.totalorder %s39, 0
      %p314 = por %p312, %p313
      %p315 = scmp.ne.s32.totalorder %s304, %s307
      %p316 = scmp.eq.s32.totalorder %s44, 1
      %p317 = por %p315, %p316
      %p318 = scmp.ne.s32.totalorder %s307, %s308
      %p319 = scmp.eq.s32.totalorder %s44, 0
      %p320 = por %p318, %p319
      %p321 = scmp.ne.s32.totalorder %s307, %s308
      %p322 = scmp.eq.s32.totalorder %s45, 1
      %p323 = por %p321, %p322
      %p325 = scmp.ne.s32.totalorder %s308, %s324
      %p326 = scmp.eq.s32.totalorder %s45, 0
      %p327 = por %p325, %p326
      %s328 = ssub.s32 %s39, %s46
      %p329 = scmp.eq.s32.totalorder %s328, 0
      %s331 = sadd.s32 %s330, 1
      %s332 = scalar_select %p329, %s330, %s331
      %p335 = pneg %p329
      %p336 = scmp.eq.s32.totalorder %s39, 1
      %p337 = por %p335, %p336
      %p338 = scmp.ne.s32.totalorder %s330, %s333
      %p339 = scmp.eq.s32.totalorder %s39, 0
      %p340 = por %p338, %p339
      %p341 = scmp.ne.s32.totalorder %s330, %s333
      %p342 = scmp.eq.s32.totalorder %s44, 1
      %p343 = por %p341, %p342
      %p344 = scmp.ne.s32.totalorder %s333, %s334
      %p345 = scmp.eq.s32.totalorder %s44, 0
      %p346 = por %p344, %p345
      %p347 = scmp.ne.s32.totalorder %s333, %s334
      %p348 = scmp.eq.s32.totalorder %s45, 1
      %p349 = por %p347, %p348
      %p351 = scmp.ne.s32.totalorder %s334, %s350
      %p352 = scmp.eq.s32.totalorder %s45, 0
      %p353 = por %p351, %p352
      %s354 = ssub.s32 %s39, %s46
      %p355 = scmp.eq.s32.totalorder %s354, 0
      %s357 = sadd.s32 %s356, 1
      %s358 = scalar_select %p355, %s356, %s357
      %p361 = pneg %p355
      %p362 = scmp.eq.s32.totalorder %s39, 1
      %p363 = por %p361, %p362
      %p364 = scmp.ne.s32.totalorder %s356, %s359
      %p365 = scmp.eq.s32.totalorder %s39, 0
      %p366 = por %p364, %p365
      %p367 = scmp.ne.s32.totalorder %s356, %s359
      %p368 = scmp.eq.s32.totalorder %s44, 1
      %p369 = por %p367, %p368
      %p370 = scmp.ne.s32.totalorder %s359, %s360
      %p371 = scmp.eq.s32.totalorder %s44, 0
      %p372 = por %p370, %p371
      %p373 = scmp.ne.s32.totalorder %s359, %s360
      %p374 = scmp.eq.s32.totalorder %s45, 1
      %p375 = por %p373, %p374
      %p377 = scmp.ne.s32.totalorder %s360, %s376
      %p378 = scmp.eq.s32.totalorder %s45, 0
      %p379 = por %p377, %p378
      %s381 = sadd.s32 %s380, 1
      %p384 = scmp.eq.s32.totalorder %s39, 1
      %p385 = scmp.ne.s32.totalorder %s380, %s382
      %p386 = scmp.eq.s32.totalorder %s39, 0
      %p387 = por %p385, %p386
      %p388 = scmp.ne.s32.totalorder %s380, %s382
      %p389 = scmp.eq.s32.totalorder %s44, 1
      %p390 = por %p388, %p389
      %p391 = scmp.ne.s32.totalorder %s382, %s383
      %p392 = scmp.eq.s32.totalorder %s44, 0
      %p393 = por %p391, %p392
      %p394 = scmp.ne.s32.totalorder %s382, %s383
      %p395 = scmp.eq.s32.totalorder %s45, 1
      %p396 = por %p394, %p395
      %p398 = scmp.ne.s32.totalorder %s383, %s397
      %p399 = scmp.eq.s32.totalorder %s45, 0
      %p400 = por %p398, %p399
      %p401 = scmp.le.s32.totalorder 1, %s39
      %p402 = scmp.lt.s32.totalorder %s39, 3
      %p403 = pnand %p401, %p402
      %p404 = pneg %p403
      // Predicated region
      $region9: #{tpu_custom_call.1} parent=5 // pred_check
        _
      $region10: #{tpu_custom_call.1} parent=5 // pred_check_branch
        %406 = sbr.rel (%p403) target = $region12
      $region11: #{tpu_custom_call.1} parent=5 // pred_region
        %s407 = ssub.s32 %s39, 1
        // Predicated region
        $region13: #{tpu_custom_call.1} parent=11 // pred_check
          %p408 = pneg %p60
        $region14: #{tpu_custom_call.1} parent=11 // pred_check_branch
          %410 = sbr.rel (%p408) target = $region16
        $region15: #{tpu_custom_call.1} parent=11 // pred_region
          %s412 = ssub.s32 256, 256
          %413 = vsyncadd [#allocation5], %s412
          %s414 = sshll.u32 [#allocation4], 4
          %s415 = int_to_ptr.vmem [resolvable:$true] %s414
          %420 = dma.hbm_to_vmem [thread:$0]  %s0, 256, %s415, [#allocation5], 128, 128, 8
        $region16: #{tpu_custom_call.1} parent=11 // pred_fallthru
          _
      $region12: #{tpu_custom_call.1} parent=5 // pred_fallthru
        _
      %p421 = scmp.lt.s32.totalorder %s39, 2
      // Predicated region
      $region17: #{tpu_custom_call.1} parent=5 // pred_check
        %p422 = pneg %p421
      $region18: #{tpu_custom_call.1} parent=5 // pred_check_branch
        %424 = sbr.rel (%p422) target = $region20
      $region19: #{tpu_custom_call.1} parent=5 // pred_region
        // Predicated region
        $region21: #{tpu_custom_call.1} parent=19 // pred_check
          %p425 = pneg %p80
        $region22: #{tpu_custom_call.1} parent=19 // pred_check_branch
          %427 = sbr.rel (%p425) target = $region24
        $region23: #{tpu_custom_call.1} parent=19 // pred_region
          %s428 = sand.u32 %s39, 1
          %s429 = scalar_lea.sflag [#allocation8], %s428
          %s430 = sand.u32 %s70, 1
          %s431 = smul.addr %s430, 32
          %s432 = scalar_lea.vmem [#allocation7], %s431
          %s434 = ssub.s32 512, 512
          %435 = vsyncadd %s429, %s434
          %s436 = smul.addr %s39, 4
          %s437 = smul.addr %s436, 128
          %s438 = scalar_lea.hbm %s1, %s437
          %s439 = sshll.u32 %s432, 4
          %s440 = int_to_ptr.vmem [resolvable:$true] %s439
          %445 = dma.hbm_to_vmem [thread:$0]  %s438, 512, %s440, %s429, 128, 128, 8
        $region24: #{tpu_custom_call.1} parent=19 // pred_fallthru
          _
        // Predicated region
        $region25: #{tpu_custom_call.1} parent=19 // pred_check
          %p446 = pneg %p106
        $region26: #{tpu_custom_call.1} parent=19 // pred_check_branch
          %448 = sbr.rel (%p446) target = $region28
        $region27: #{tpu_custom_call.1} parent=19 // pred_region
          %s449 = sand.u32 %s39, 1
          %s450 = scalar_lea.sflag [#allocation8], %s449
          %s451 = sand.u32 %s96, 1
          %s452 = scalar_lea.vmem [#allocation9], %s451
          %s454 = ssub.s32 16, 16
          %455 = vsyncadd %s450, %s454
          %s456 = smul.addr %s39, 16
          %s457 = scalar_lea.hbm %s2, %s456
          %s459 = sshll.u32 %s452, 4
          %s460 = int_to_ptr.vmem [resolvable:$true] %s459
          %462 = dma.hbm_to_vmem [thread:$0]  %s457, 16, %s460, %s450
        $region28: #{tpu_custom_call.1} parent=19 // pred_fallthru
          _
        // Predicated region
        $region29: #{tpu_custom_call.1} parent=19 // pred_check
          %p463 = pneg %p132
        $region30: #{tpu_custom_call.1} parent=19 // pred_check_branch
          %465 = sbr.rel (%p463) target = $region32
        $region31: #{tpu_custom_call.1} parent=19 // pred_region
          %s466 = sand.u32 %s39, 1
          %s467 = scalar_lea.sflag [#allocation11], %s466
          %s468 = sand.u32 %s122, 1
          %s469 = smul.addr %s468, 32
          %s470 = scalar_lea.vmem [#allocation10], %s469
          %s472 = ssub.s32 512, 512
          %473 = vsyncadd %s467, %s472
          %s474 = smul.addr %s39, 4
          %s475 = smul.addr %s474, 128
          %s476 = scalar_lea.hbm %s3, %s475
          %s477 = sshll.u32 %s470, 4
          %s478 = int_to_ptr.vmem [resolvable:$true] %s477
          %483 = dma.hbm_to_vmem [thread:$0]  %s476, 512, %s478, %s467, 128, 128, 8
        $region32: #{tpu_custom_call.1} parent=19 // pred_fallthru
          _
        // Predicated region
        $region33: #{tpu_custom_call.1} parent=19 // pred_check
          %p484 = pneg %p158
        $region34: #{tpu_custom_call.1} parent=19 // pred_check_branch
          %486 = sbr.rel (%p484) target = $region36
        $region35: #{tpu_custom_call.1} parent=19 // pred_region
          %s487 = sand.u32 %s39, 1
          %s488 = scalar_lea.sflag [#allocation11], %s487
          %s489 = sand.u32 %s148, 1
          %s490 = scalar_lea.vmem [#allocation12], %s489
          %s492 = ssub.s32 16, 16
          %493 = vsyncadd %s488, %s492
          %s494 = smul.addr %s39, 16
          %s495 = scalar_lea.hbm %s4, %s494
          %s497 = sshll.u32 %s490, 4
          %s498 = int_to_ptr.vmem [resolvable:$true] %s497
          %500 = dma.hbm_to_vmem [thread:$0]  %s495, 16, %s498, %s488
        $region36: #{tpu_custom_call.1} parent=19 // pred_fallthru
          _
        // Predicated region
        $region37: #{tpu_custom_call.1} parent=19 // pred_check
          %p501 = pneg %p184
        $region38: #{tpu_custom_call.1} parent=19 // pred_check_branch
          %503 = sbr.rel (%p501) target = $region40
        $region39: #{tpu_custom_call.1} parent=19 // pred_region
          %s504 = sand.u32 %s39, 1
          %s505 = scalar_lea.sflag [#allocation14], %s504
          %s506 = sand.u32 %s174, 1
          %s507 = scalar_lea.vmem [#allocation13], %s506
          %s509 = ssub.s32 16, 16
          %510 = vsyncadd %s505, %s509
          %s511 = smul.addr %s39, 16
          %s512 = scalar_lea.hbm %s5, %s511
          %s514 = sshll.u32 %s507, 4
          %s515 = int_to_ptr.vmem [resolvable:$true] %s514
          %517 = dma.hbm_to_vmem [thread:$0]  %s512, 16, %s515, %s505
        $region40: #{tpu_custom_call.1} parent=19 // pred_fallthru
          _
        // Predicated region
        $region41: #{tpu_custom_call.1} parent=19 // pred_check
          %p518 = pneg %p210
        $region42: #{tpu_custom_call.1} parent=19 // pred_check_branch
          %520 = sbr.rel (%p518) target = $region44
        $region43: #{tpu_custom_call.1} parent=19 // pred_region
          %s521 = sand.u32 %s39, 1
          %s522 = scalar_lea.sflag [#allocation14], %s521
          %s523 = sand.u32 %s200, 1
          %s524 = scalar_lea.vmem [#allocation15], %s523
          %s526 = ssub.s32 16, 16
          %527 = vsyncadd %s522, %s526
          %s528 = smul.addr %s39, 16
          %s529 = scalar_lea.hbm %s6, %s528
          %s531 = sshll.u32 %s524, 4
          %s532 = int_to_ptr.vmem [resolvable:$true] %s531
          %534 = dma.hbm_to_vmem [thread:$0]  %s529, 16, %s532, %s522
        $region44: #{tpu_custom_call.1} parent=19 // pred_fallthru
          _
        // Predicated region
        $region45: #{tpu_custom_call.1} parent=19 // pred_check
          %p535 = pneg %p236
        $region46: #{tpu_custom_call.1} parent=19 // pred_check_branch
          %537 = sbr.rel (%p535) target = $region48
        $region47: #{tpu_custom_call.1} parent=19 // pred_region
          %s538 = sand.u32 %s39, 1
          %s539 = scalar_lea.sflag [#allocation17], %s538
          %s540 = sand.u32 %s226, 1
          %s541 = smul.addr %s540, 32
          %s542 = scalar_lea.vmem [#allocation16], %s541
          %s544 = ssub.s32 512, 512
          %545 = vsyncadd %s539, %s544
          %s546 = smul.addr %s39, 4
          %s547 = smul.addr %s546, 128
          %s548 = scalar_lea.hbm %s7, %s547
          %s549 = sshll.u32 %s542, 4
          %s550 = int_to_ptr.vmem [resolvable:$true] %s549
          %555 = dma.hbm_to_vmem [thread:$0]  %s548, 512, %s550, %s539, 128, 128, 8
        $region48: #{tpu_custom_call.1} parent=19 // pred_fallthru
          _
        // Predicated region
        $region49: #{tpu_custom_call.1} parent=19 // pred_check
          %p556 = pneg %p262
        $region50: #{tpu_custom_call.1} parent=19 // pred_check_branch
          %558 = sbr.rel (%p556) target = $region52
        $region51: #{tpu_custom_call.1} parent=19 // pred_region
          %s559 = sand.u32 %s39, 1
          %s560 = scalar_lea.sflag [#allocation17], %s559
          %s561 = sand.u32 %s252, 1
          %s562 = scalar_lea.vmem [#allocation18], %s561
          %s564 = ssub.s32 16, 16
          %565 = vsyncadd %s560, %s564
          %s566 = smul.addr %s39, 16
          %s567 = scalar_lea.hbm %s8, %s566
          %s569 = sshll.u32 %s562, 4
          %s570 = int_to_ptr.vmem [resolvable:$true] %s569
          %572 = dma.hbm_to_vmem [thread:$0]  %s567, 16, %s570, %s560
        $region52: #{tpu_custom_call.1} parent=19 // pred_fallthru
          _
        // Predicated region
        $region53: #{tpu_custom_call.1} parent=19 // pred_check
          %p573 = pneg %p288
        $region54: #{tpu_custom_call.1} parent=19 // pred_check_branch
          %575 = sbr.rel (%p573) target = $region56
        $region55: #{tpu_custom_call.1} parent=19 // pred_region
          %s576 = sand.u32 %s39, 1
          %s577 = scalar_lea.sflag [#allocation20], %s576
          %s578 = sand.u32 %s278, 1
          %s579 = smul.addr %s578, 64
          %s580 = scalar_lea.vmem [#allocation19], %s579
          %s582 = ssub.s32 1024, 1024
          %583 = vsyncadd %s577, %s582
          %s584 = smul.addr %s39, 8
          %s585 = smul.addr %s584, 128
          %s586 = scalar_lea.hbm %s9, %s585
          %s587 = sshll.u32 %s580, 4
          %s588 = int_to_ptr.vmem [resolvable:$true] %s587
          %593 = dma.hbm_to_vmem [thread:$0]  %s586, 1024, %s588, %s577, 128, 128, 8
        $region56: #{tpu_custom_call.1} parent=19 // pred_fallthru
          _
        // Predicated region
        $region57: #{tpu_custom_call.1} parent=19 // pred_check
          %p594 = pneg %p314
        $region58: #{tpu_custom_call.1} parent=19 // pred_check_branch
          %596 = sbr.rel (%p594) target = $region60
        $region59: #{tpu_custom_call.1} parent=19 // pred_region
          %s597 = sand.u32 %s39, 1
          %s598 = scalar_lea.sflag [#allocation20], %s597
          %s599 = sand.u32 %s304, 1
          %s600 = scalar_lea.vmem [#allocation21], %s599
          %s602 = ssub.s32 16, 16
          %603 = vsyncadd %s598, %s602
          %s604 = smul.addr %s39, 16
          %s605 = scalar_lea.hbm %s10, %s604
          %s607 = sshll.u32 %s600, 4
          %s608 = int_to_ptr.vmem [resolvable:$true] %s607
          %610 = dma.hbm_to_vmem [thread:$0]  %s605, 16, %s608, %s598
        $region60: #{tpu_custom_call.1} parent=19 // pred_fallthru
          _
        // Predicated region
        $region61: #{tpu_custom_call.1} parent=19 // pred_check
          %p611 = pneg %p340
        $region62: #{tpu_custom_call.1} parent=19 // pred_check_branch
          %613 = sbr.rel (%p611) target = $region64
        $region63: #{tpu_custom_call.1} parent=19 // pred_region
          %s614 = sand.u32 %s39, 1
          %s615 = scalar_lea.sflag [#allocation23], %s614
          %s616 = sand.u32 %s330, 1
          %s617 = scalar_lea.vmem [#allocation22], %s616
          %s619 = ssub.s32 16, 16
          %620 = vsyncadd %s615, %s619
          %s621 = smul.addr %s39, 16
          %s622 = scalar_lea.hbm %s11, %s621
          %s624 = sshll.u32 %s617, 4
          %s625 = int_to_ptr.vmem [resolvable:$true] %s624
          %627 = dma.hbm_to_vmem [thread:$0]  %s622, 16, %s625, %s615
        $region64: #{tpu_custom_call.1} parent=19 // pred_fallthru
          _
        // Predicated region
        $region65: #{tpu_custom_call.1} parent=19 // pred_check
          %p628 = pneg %p366
        $region66: #{tpu_custom_call.1} parent=19 // pred_check_branch
          %630 = sbr.rel (%p628) target = $region68
        $region67: #{tpu_custom_call.1} parent=19 // pred_region
          %s631 = sand.u32 %s39, 1
          %s632 = scalar_lea.sflag [#allocation23], %s631
          %s633 = sand.u32 %s356, 1
          %s634 = scalar_lea.vmem [#allocation24], %s633
          %s636 = ssub.s32 16, 16
          %637 = vsyncadd %s632, %s636
          %s638 = smul.addr %s39, 16
          %s639 = scalar_lea.hbm %s12, %s638
          %s641 = sshll.u32 %s634, 4
          %s642 = int_to_ptr.vmem [resolvable:$true] %s641
          %644 = dma.hbm_to_vmem [thread:$0]  %s639, 16, %s642, %s632
        $region68: #{tpu_custom_call.1} parent=19 // pred_fallthru
          _
      $region20: #{tpu_custom_call.1} parent=5 // pred_fallthru
        _
      %p645 = scmp.le.s32.totalorder 1, %s39
      %p646 = scmp.lt.s32.totalorder %s39, 3
      %p647 = pnand %p645, %p646
      %p648 = pneg %p647
      // Predicated region
      $region69: #{tpu_custom_call.1} parent=5 // pred_check
        _
      $region70: #{tpu_custom_call.1} parent=5 // pred_check_branch
        %650 = sbr.rel (%p647) target = $region72
      $region71: #{tpu_custom_call.1} parent=5 // pred_region
        %s651 = ssub.s32 %s39, 1
        // Predicated region
        $region73: #{tpu_custom_call.1} parent=71 // pred_check
          %p652 = pneg %p60
        $region74: #{tpu_custom_call.1} parent=71 // pred_check_branch
          %654 = sbr.rel (%p652) target = $region76
        $region75: #{tpu_custom_call.1} parent=71 // pred_region
          %655 = dma.done [#allocation5], 256
        $region76: #{tpu_custom_call.1} parent=71 // pred_fallthru
          _
        %s656 = sand.u32 %s44, 1
        %s657 = scalar_lea.sflag [#allocation8], %s656
        %s658 = sand.u32 %s73, 1
        %s659 = smul.addr %s658, 32
        %s660 = scalar_lea.vmem [#allocation7], %s659
        // Predicated region
        $region77: #{tpu_custom_call.1} parent=71 // pred_check
          %p661 = pneg %p86
        $region78: #{tpu_custom_call.1} parent=71 // pred_check_branch
          %663 = sbr.rel (%p661) target = $region80
        $region79: #{tpu_custom_call.1} parent=71 // pred_region
          %664 = dma.done %s657, 512
        $region80: #{tpu_custom_call.1} parent=71 // pred_fallthru
          _
        %s665 = sand.u32 %s44, 1
        %s666 = scalar_lea.sflag [#allocation8], %s665
        %s667 = sand.u32 %s99, 1
        %s668 = scalar_lea.vmem [#allocation9], %s667
        // Predicated region
        $region81: #{tpu_custom_call.1} parent=71 // pred_check
          %p669 = pneg %p112
        $region82: #{tpu_custom_call.1} parent=71 // pred_check_branch
          %671 = sbr.rel (%p669) target = $region84
        $region83: #{tpu_custom_call.1} parent=71 // pred_region
          %672 = dma.done %s666, 16
        $region84: #{tpu_custom_call.1} parent=71 // pred_fallthru
          _
        %s673 = sand.u32 %s44, 1
        %s674 = scalar_lea.sflag [#allocation11], %s673
        %s675 = sand.u32 %s125, 1
        %s676 = smul.addr %s675, 32
        %s677 = scalar_lea.vmem [#allocation10], %s676
        // Predicated region
        $region85: #{tpu_custom_call.1} parent=71 // pred_check
          %p678 = pneg %p138
        $region86: #{tpu_custom_call.1} parent=71 // pred_check_branch
          %680 = sbr.rel (%p678) target = $region88
        $region87: #{tpu_custom_call.1} parent=71 // pred_region
          %681 = dma.done %s674, 512
        $region88: #{tpu_custom_call.1} parent=71 // pred_fallthru
          _
        %s682 = sand.u32 %s44, 1
        %s683 = scalar_lea.sflag [#allocation11], %s682
        %s684 = sand.u32 %s151, 1
        %s685 = scalar_lea.vmem [#allocation12], %s684
        // Predicated region
        $region89: #{tpu_custom_call.1} parent=71 // pred_check
          %p686 = pneg %p164
        $region90: #{tpu_custom_call.1} parent=71 // pred_check_branch
          %688 = sbr.rel (%p686) target = $region92
        $region91: #{tpu_custom_call.1} parent=71 // pred_region
          %689 = dma.done %s683, 16
        $region92: #{tpu_custom_call.1} parent=71 // pred_fallthru
          _
        %s690 = sand.u32 %s44, 1
        %s691 = scalar_lea.sflag [#allocation14], %s690
        %s692 = sand.u32 %s177, 1
        %s693 = scalar_lea.vmem [#allocation13], %s692
        // Predicated region
        $region93: #{tpu_custom_call.1} parent=71 // pred_check
          %p694 = pneg %p190
        $region94: #{tpu_custom_call.1} parent=71 // pred_check_branch
          %696 = sbr.rel (%p694) target = $region96
        $region95: #{tpu_custom_call.1} parent=71 // pred_region
          %697 = dma.done %s691, 16
        $region96: #{tpu_custom_call.1} parent=71 // pred_fallthru
          _
        %s698 = sand.u32 %s44, 1
        %s699 = scalar_lea.sflag [#allocation14], %s698
        %s700 = sand.u32 %s203, 1
        %s701 = scalar_lea.vmem [#allocation15], %s700
        // Predicated region
        $region97: #{tpu_custom_call.1} parent=71 // pred_check
          %p702 = pneg %p216
        $region98: #{tpu_custom_call.1} parent=71 // pred_check_branch
          %704 = sbr.rel (%p702) target = $region100
        $region99: #{tpu_custom_call.1} parent=71 // pred_region
          %705 = dma.done %s699, 16
        $region100: #{tpu_custom_call.1} parent=71 // pred_fallthru
          _
        %s706 = sand.u32 %s44, 1
        %s707 = scalar_lea.sflag [#allocation17], %s706
        %s708 = sand.u32 %s229, 1
        %s709 = smul.addr %s708, 32
        %s710 = scalar_lea.vmem [#allocation16], %s709
        // Predicated region
        $region101: #{tpu_custom_call.1} parent=71 // pred_check
          %p711 = pneg %p242
        $region102: #{tpu_custom_call.1} parent=71 // pred_check_branch
          %713 = sbr.rel (%p711) target = $region104
        $region103: #{tpu_custom_call.1} parent=71 // pred_region
          %714 = dma.done %s707, 512
        $region104: #{tpu_custom_call.1} parent=71 // pred_fallthru
          _
        %s715 = sand.u32 %s44, 1
        %s716 = scalar_lea.sflag [#allocation17], %s715
        %s717 = sand.u32 %s255, 1
        %s718 = scalar_lea.vmem [#allocation18], %s717
        // Predicated region
        $region105: #{tpu_custom_call.1} parent=71 // pred_check
          %p719 = pneg %p268
        $region106: #{tpu_custom_call.1} parent=71 // pred_check_branch
          %721 = sbr.rel (%p719) target = $region108
        $region107: #{tpu_custom_call.1} parent=71 // pred_region
          %722 = dma.done %s716, 16
        $region108: #{tpu_custom_call.1} parent=71 // pred_fallthru
          _
        %s723 = sand.u32 %s44, 1
        %s724 = scalar_lea.sflag [#allocation20], %s723
        %s725 = sand.u32 %s281, 1
        %s726 = smul.addr %s725, 64
        %s727 = scalar_lea.vmem [#allocation19], %s726
        // Predicated region
        $region109: #{tpu_custom_call.1} parent=71 // pred_check
          %p728 = pneg %p294
        $region110: #{tpu_custom_call.1} parent=71 // pred_check_branch
          %730 = sbr.rel (%p728) target = $region112
        $region111: #{tpu_custom_call.1} parent=71 // pred_region
          %731 = dma.done %s724, 1024
        $region112: #{tpu_custom_call.1} parent=71 // pred_fallthru
          _
        %s732 = sand.u32 %s44, 1
        %s733 = scalar_lea.sflag [#allocation20], %s732
        %s734 = sand.u32 %s307, 1
        %s735 = scalar_lea.vmem [#allocation21], %s734
        // Predicated region
        $region113: #{tpu_custom_call.1} parent=71 // pred_check
          %p736 = pneg %p320
        $region114: #{tpu_custom_call.1} parent=71 // pred_check_branch
          %738 = sbr.rel (%p736) target = $region116
        $region115: #{tpu_custom_call.1} parent=71 // pred_region
          %739 = dma.done %s733, 16
        $region116: #{tpu_custom_call.1} parent=71 // pred_fallthru
          _
        %s740 = sand.u32 %s44, 1
        %s741 = scalar_lea.sflag [#allocation23], %s740
        %s742 = sand.u32 %s333, 1
        %s743 = scalar_lea.vmem [#allocation22], %s742
        // Predicated region
        $region117: #{tpu_custom_call.1} parent=71 // pred_check
          %p744 = pneg %p346
        $region118: #{tpu_custom_call.1} parent=71 // pred_check_branch
          %746 = sbr.rel (%p744) target = $region120
        $region119: #{tpu_custom_call.1} parent=71 // pred_region
          %747 = dma.done %s741, 16
        $region120: #{tpu_custom_call.1} parent=71 // pred_fallthru
          _
        %s748 = sand.u32 %s44, 1
        %s749 = scalar_lea.sflag [#allocation23], %s748
        %s750 = sand.u32 %s359, 1
        %s751 = scalar_lea.vmem [#allocation24], %s750
        // Predicated region
        $region121: #{tpu_custom_call.1} parent=71 // pred_check
          %p752 = pneg %p372
        $region122: #{tpu_custom_call.1} parent=71 // pred_check_branch
          %754 = sbr.rel (%p752) target = $region124
        $region123: #{tpu_custom_call.1} parent=71 // pred_region
          %755 = dma.done %s749, 16
        $region124: #{tpu_custom_call.1} parent=71 // pred_fallthru
          _
        %p756 = pneg %p60
        %p757 = pneg %p57
        %s758 = sand.u32 %s44, 1
        %s759 = scalar_lea.sflag [#allocation8], %s758
        %s760 = sand.u32 %s73, 1
        %s761 = smul.addr %s760, 32
        %s762 = scalar_lea.vmem [#allocation7], %s761
        %p763 = pneg %p86
        %p764 = pneg %p83
        %s765 = sand.u32 %s44, 1
        %s766 = scalar_lea.sflag [#allocation8], %s765
        %s767 = sand.u32 %s99, 1
        %s768 = scalar_lea.vmem [#allocation9], %s767
        %p769 = pneg %p112
        %p770 = pneg %p109
        %s771 = sand.u32 %s44, 1
        %s772 = scalar_lea.sflag [#allocation11], %s771
        %s773 = sand.u32 %s125, 1
        %s774 = smul.addr %s773, 32
        %s775 = scalar_lea.vmem [#allocation10], %s774
        %p776 = pneg %p138
        %p777 = pneg %p135
        %s778 = sand.u32 %s44, 1
        %s779 = scalar_lea.sflag [#allocation11], %s778
        %s780 = sand.u32 %s151, 1
        %s781 = scalar_lea.vmem [#allocation12], %s780
        %p782 = pneg %p164
        %p783 = pneg %p161
        %s784 = sand.u32 %s44, 1
        %s785 = scalar_lea.sflag [#allocation14], %s784
        %s786 = sand.u32 %s177, 1
        %s787 = scalar_lea.vmem [#allocation13], %s786
        %p788 = pneg %p190
        %p789 = pneg %p187
        %s790 = sand.u32 %s44, 1
        %s791 = scalar_lea.sflag [#allocation14], %s790
        %s792 = sand.u32 %s203, 1
        %s793 = scalar_lea.vmem [#allocation15], %s792
        %p794 = pneg %p216
        %p795 = pneg %p213
        %s796 = sand.u32 %s44, 1
        %s797 = scalar_lea.sflag [#allocation17], %s796
        %s798 = sand.u32 %s229, 1
        %s799 = smul.addr %s798, 32
        %s800 = scalar_lea.vmem [#allocation16], %s799
        %p801 = pneg %p242
        %p802 = pneg %p239
        %s803 = sand.u32 %s44, 1
        %s804 = scalar_lea.sflag [#allocation17], %s803
        %s805 = sand.u32 %s255, 1
        %s806 = scalar_lea.vmem [#allocation18], %s805
        %p807 = pneg %p268
        %p808 = pneg %p265
        %s809 = sand.u32 %s44, 1
        %s810 = scalar_lea.sflag [#allocation20], %s809
        %s811 = sand.u32 %s281, 1
        %s812 = smul.addr %s811, 64
        %s813 = scalar_lea.vmem [#allocation19], %s812
        %p814 = pneg %p294
        %p815 = pneg %p291
        %s816 = sand.u32 %s44, 1
        %s817 = scalar_lea.sflag [#allocation20], %s816
        %s818 = sand.u32 %s307, 1
        %s819 = scalar_lea.vmem [#allocation21], %s818
        %p820 = pneg %p320
        %p821 = pneg %p317
        %s822 = sand.u32 %s44, 1
        %s823 = scalar_lea.sflag [#allocation23], %s822
        %s824 = sand.u32 %s333, 1
        %s825 = scalar_lea.vmem [#allocation22], %s824
        %p826 = pneg %p346
        %p827 = pneg %p343
        %s828 = sand.u32 %s44, 1
        %s829 = scalar_lea.sflag [#allocation23], %s828
        %s830 = sand.u32 %s359, 1
        %s831 = scalar_lea.vmem [#allocation24], %s830
        %p832 = pneg %p372
        %p833 = pneg %p369
        %p834 = pneg %p393
        %p835 = pneg %p390
        %p836 = scmp.eq.s32.totalorder %s44, 0
        // Predicated region
        $region125: #{tpu_custom_call.1} parent=71 // pred_check
          %p837 = pneg %p836
        $region126: #{tpu_custom_call.1} parent=71 // pred_check_branch
          %839 = sbr.rel (%p837) target = $region128
        $region127: #{tpu_custom_call.1} parent=71 // pred_region
          %v840 = vld [vmem:[#allocation4] sm:$0xff]
          %v841 = vld [vmem:[#allocation4 + $0x8] sm:$0xff]
          %vm842 = vcmask 261120
          %843 = vst.msk [vmem:[#allocation2] sm:$0xff] %vm842, %v840
          %844 = vst.msk [vmem:[#allocation2 + $0x8] sm:$0xff] %vm842, %v841
        $region128: #{tpu_custom_call.1} parent=71 // pred_fallthru
          _
        %v845 = vld [vmem:[#allocation2] sm:$0xff]
        %v846 = vld [vmem:[#allocation2 + $0x8] sm:$0xff]
        %v847 = vld [vmem:[%s660] sm:$0xff]
        %v848 = vld [vmem:[%s660 + $0x8] sm:$0xff]
        %v849 = vld [vmem:[%s660 + $0x10] sm:$0xff]
        %v850 = vld [vmem:[%s660 + $0x18] sm:$0xff]
        %v851 = vld [vmem:[%s668] sm:$0x1]
        %v853 = vlaneseq
        %v854 = vshrl.u32 %v853, 7
        %v855 = vsub.s32 0, %v854
        %v856 = vrot.slane %v851, %v855
        %vm858 = vcmask 261120
        %v860 = vsel %vm858, %v845, 0
        %v863 = vsel %vm858, %v846, 0
        %865 = vmatprep.subr.mxu0 0.0
        %866 = vmatpush1.msra.mxu0 %v847
        %867 = vmatprep.subr.mxu0 0.0
        %868 = vmatpush1.msra.mxu0 %v848
        %869 = vmatprep.subr.mxu0 0.0
        %870 = vmatpush1.msra.mxu0 %v849
        %871 = vmatprep.subr.mxu0 0.0
        %872 = vmatpush1.msra.mxu0 %v850
        %873 = vmatprep.subr.mxu0 0.0
        %874 = vmatpush1.msra.mxu0 0.0
        %875 = vmatprep.subr.mxu0 0.0
        %876 = vmatpush1.msra.mxu0 0.0
        %877 = vmatprep.subr.mxu0 0.0
        %878 = vmatpush1.msra.mxu0 0.0
        %879 = vmatprep.subr.mxu0 0.0
        %880 = vmatpush1.msra.mxu0 0.0
        %881 = vmatprep.subr.mxu0 0.0
        %882 = vmatpush1.msra.mxu0 0.0
        %883 = vmatprep.subr.mxu0 0.0
        %884 = vmatpush1.msra.mxu0 0.0
        %885 = vmatprep.subr.mxu0 0.0
        %886 = vmatpush1.msra.mxu0 0.0
        %887 = vmatprep.subr.mxu0 0.0
        %888 = vmatpush1.msra.mxu0 0.0
        %889 = vmatprep.subr.mxu0 0.0
        %890 = vmatpush1.msra.mxu0 0.0
        %891 = vmatprep.subr.mxu0 0.0
        %892 = vmatpush1.msra.mxu0 0.0
        %893 = vmatprep.subr.mxu0 0.0
        %894 = vmatpush1.msra.mxu0 0.0
        %895 = vmatprep.subr.mxu0 0.0
        %896 = vmatpush1.msra.mxu0 0.0
        %897 = vmatprep.subr.mxu0 0.0
        %898 = vmatpush1.msra.mxu0 0.0
        %899 = vmatprep.subr.mxu0 0.0
        %900 = vmatpush1.msra.mxu0 0.0
        %901 = vmatprep.subr.mxu0 0.0
        %902 = vmatpush1.msra.mxu0 0.0
        %903 = vmatprep.subr.mxu0 0.0
        %904 = vmatpush1.msra.mxu0 0.0
        %905 = vmatprep.subr.mxu0 0.0
        %906 = vmatpush1.msra.mxu0 0.0
        %907 = vmatprep.subr.mxu0 0.0
        %908 = vmatpush1.msra.mxu0 0.0
        %909 = vmatprep.subr.mxu0 0.0
        %910 = vmatpush1.msra.mxu0 0.0
        %911 = vmatprep.subr.mxu0 0.0
        %912 = vmatpush1.msra.mxu0 0.0
        %913 = vmatprep.subr.mxu0 0.0
        %914 = vmatpush1.msra.mxu0 0.0
        %915 = vmatprep.subr.mxu0 0.0
        %916 = vmatpush1.msra.mxu0 0.0
        %917 = vmatprep.subr.mxu0 0.0
        %918 = vmatpush1.msra.mxu0 0.0
        %919 = vmatprep.subr.mxu0 0.0
        %920 = vmatpush1.msra.mxu0 0.0
        %921 = vmatprep.subr.mxu0 0.0
        %922 = vmatpush1.msra.mxu0 0.0
        %923 = vmatprep.subr.mxu0 0.0
        %924 = vmatpush1.msra.mxu0 0.0
        %925 = vmatprep.subr.mxu0 0.0
        %926 = vmatpush1.msra.mxu0 0.0
        %927 = vmatprep.subr.mxu0 0.0
        %928 = vmatpush1.msra.mxu0 0.0
        %929 = vmatprep.mubr.f32.mxu0 0.0
        %930 = vmatmul.mubr.f32.gmra.mrb[0].mxu0 %v860
        %v931 = vpop.f32.mrb[0].mxu0
        %v932 = vadd.f32 %v856, %v931
        %v933 = vpop.f32.mrb[0].mxu0
        %934 = vmatprep.mubr.f32.mxu0 0.0
        %935 = vmatmul.mubr.f32.gmra.mrb[0].mxu0 %v863
        %v936 = vpop.f32.mrb[0].mxu0
        %v937 = vadd.f32 %v856, %v936
        %v938 = vpop.f32.mrb[0].mxu0
        %939 = vdwg.mxu0
        %941 = vrot.lane.b32.xlu0 %v932, 96
        %v942 = vpop.permute.xlu0 %941
        %vm943 = vcmask 64512
        %v944 = vsel %vm943, %v932, 0
        %v946 = vsel %vm943, %v942, 0
        %948 = vmatprep.subr.mxu0 0.0
        %949 = vmatpush1.xpose.msra.mxu0 %v946
        %950 = vmatprep.subr.mxu0 0.0
        %951 = vmatpush1.xpose.msra.mxu0 0.0
        %952 = vmatprep.subr.mxu0 0.0
        %953 = vmatpush1.xpose.msra.mxu0 0.0
        %954 = vmatprep.subr.mxu0 0.0
        %955 = vmatpush1.xpose.msra.mxu0 0.0
        %956 = vmatprep.subr.mxu0 0.0
        %957 = vmatpush1.xpose.msra.mxu0 0.0
        %958 = vmatprep.subr.mxu0 0.0
        %959 = vmatpush1.xpose.msra.mxu0 0.0
        %960 = vmatprep.subr.mxu0 0.0
        %961 = vmatpush1.xpose.msra.mxu0 0.0
        %962 = vmatprep.subr.mxu0 0.0
        %963 = vmatpush1.xpose.msra.mxu0 0.0
        %964 = vmatprep.subr.mxu0 0.0
        %965 = vmatpush1.xpose.msra.mxu0 0.0
        %966 = vmatprep.subr.mxu0 0.0
        %967 = vmatpush1.xpose.msra.mxu0 0.0
        %968 = vmatprep.subr.mxu0 0.0
        %969 = vmatpush1.xpose.msra.mxu0 0.0
        %970 = vmatprep.subr.mxu0 0.0
        %971 = vmatpush1.xpose.msra.mxu0 0.0
        %972 = vmatprep.subr.mxu0 0.0
        %973 = vmatpush1.xpose.msra.mxu0 0.0
        %974 = vmatprep.subr.mxu0 0.0
        %975 = vmatpush1.xpose.msra.mxu0 0.0
        %976 = vmatprep.subr.mxu0 0.0
        %977 = vmatpush1.xpose.msra.mxu0 0.0
        %978 = vmatprep.subr.mxu0 0.0
        %979 = vmatpush1.xpose.msra.mxu0 0.0
        %980 = vmatprep.subr.mxu0 0.0
        %981 = vmatpush1.xpose.msra.mxu0 0.0
        %982 = vmatprep.subr.mxu0 0.0
        %983 = vmatpush1.xpose.msra.mxu0 0.0
        %984 = vmatprep.subr.mxu0 0.0
        %985 = vmatpush1.xpose.msra.mxu0 0.0
        %986 = vmatprep.subr.mxu0 0.0
        %987 = vmatpush1.xpose.msra.mxu0 0.0
        %988 = vmatprep.subr.mxu0 0.0
        %989 = vmatpush1.xpose.msra.mxu0 0.0
        %990 = vmatprep.subr.mxu0 0.0
        %991 = vmatpush1.xpose.msra.mxu0 0.0
        %992 = vmatprep.subr.mxu0 0.0
        %993 = vmatpush1.xpose.msra.mxu0 0.0
        %994 = vmatprep.subr.mxu0 0.0
        %995 = vmatpush1.xpose.msra.mxu0 0.0
        %996 = vmatprep.subr.mxu0 0.0
        %997 = vmatpush1.xpose.msra.mxu0 0.0
        %998 = vmatprep.subr.mxu0 0.0
        %999 = vmatpush1.xpose.msra.mxu0 0.0
        %1000 = vmatprep.subr.mxu0 0.0
        %1001 = vmatpush1.xpose.msra.mxu0 0.0
        %1002 = vmatprep.subr.mxu0 0.0
        %1003 = vmatpush1.xpose.msra.mxu0 0.0
        %1004 = vmatprep.subr.mxu0 0.0
        %1005 = vmatpush1.xpose.msra.mxu0 0.0
        %1006 = vmatprep.subr.mxu0 0.0
        %1007 = vmatpush1.xpose.msra.mxu0 0.0
        %1008 = vmatprep.subr.mxu0 0.0
        %1009 = vmatpush1.xpose.msra.mxu0 0.0
        %1010 = vmatprep.subr.mxu0 0.0
        %1011 = vmatpush1.xpose.msra.mxu0 0.0
        %1012 = vmatprep.mubr.f32.mxu0 0.0
        %1013 = vmatmul.mubr.f32.gmra.mrb[0].mxu0 %v944
        %v1014 = vpop.f32.mrb[0].mxu0
        %v1015 = vadd.f32 0.0, %v1014
        %v1016 = vpop.f32.mrb[0].mxu0
        %1017 = vdwg.mxu0
        %v1018 = vmul.f32 %v1015, 0.17677669
        %v1019 = vsel %vm943, %v1018, -inf
        %1020 = vmax.xlane.f32.xlu0 %v1019
        %v1021 = vpop.xlane.xlu0 %1020
        %v1022 = vsub.f32 %v1018, %v1021
        %v1023 = vmul.f32 %v1022, 1.442695
        %v1024 = vpow.pop %v1023
        %v1025 = vsel %vm943, %v1024, 0.0
        %1026 = vadd.xlane.f32.xlu0 %v1025
        %v1027 = vpop.xlane.xlu0 %1026
        %v1028 = vrcp.pop %v1027
        %v1029 = vmul.f32 %v1024, %v1028
        %1030 = vrot.lane.b32.xlu0 %v932, 64
        %v1031 = vpop.permute.xlu0 %1030
        %v1034 = vsel %vm943, %v1029, 0
        %1036 = vmatprep.subr.mxu0 0.0
        %1037 = vmatpush1.msra.mxu0 %v1031
        %1038 = vmatprep.subr.mxu0 0.0
        %1039 = vmatpush1.msra.mxu0 0.0
        %1040 = vmatprep.subr.mxu0 0.0
        %1041 = vmatpush1.msra.mxu0 0.0
        %1042 = vmatprep.subr.mxu0 0.0
        %1043 = vmatpush1.msra.mxu0 0.0
        %1044 = vmatprep.subr.mxu0 0.0
        %1045 = vmatpush1.msra.mxu0 0.0
        %1046 = vmatprep.subr.mxu0 0.0
        %1047 = vmatpush1.msra.mxu0 0.0
        %1048 = vmatprep.subr.mxu0 0.0
        %1049 = vmatpush1.msra.mxu0 0.0
        %1050 = vmatprep.subr.mxu0 0.0
        %1051 = vmatpush1.msra.mxu0 0.0
        %1052 = vmatprep.subr.mxu0 0.0
        %1053 = vmatpush1.msra.mxu0 0.0
        %1054 = vmatprep.subr.mxu0 0.0
        %1055 = vmatpush1.msra.mxu0 0.0
        %1056 = vmatprep.subr.mxu0 0.0
        %1057 = vmatpush1.msra.mxu0 0.0
        %1058 = vmatprep.subr.mxu0 0.0
        %1059 = vmatpush1.msra.mxu0 0.0
        %1060 = vmatprep.subr.mxu0 0.0
        %1061 = vmatpush1.msra.mxu0 0.0
        %1062 = vmatprep.subr.mxu0 0.0
        %1063 = vmatpush1.msra.mxu0 0.0
        %1064 = vmatprep.subr.mxu0 0.0
        %1065 = vmatpush1.msra.mxu0 0.0
        %1066 = vmatprep.subr.mxu0 0.0
        %1067 = vmatpush1.msra.mxu0 0.0
        %1068 = vmatprep.subr.mxu0 0.0
        %1069 = vmatpush1.msra.mxu0 0.0
        %1070 = vmatprep.subr.mxu0 0.0
        %1071 = vmatpush1.msra.mxu0 0.0
        %1072 = vmatprep.subr.mxu0 0.0
        %1073 = vmatpush1.msra.mxu0 0.0
        %1074 = vmatprep.subr.mxu0 0.0
        %1075 = vmatpush1.msra.mxu0 0.0
        %1076 = vmatprep.subr.mxu0 0.0
        %1077 = vmatpush1.msra.mxu0 0.0
        %1078 = vmatprep.subr.mxu0 0.0
        %1079 = vmatpush1.msra.mxu0 0.0
        %1080 = vmatprep.subr.mxu0 0.0
        %1081 = vmatpush1.msra.mxu0 0.0
        %1082 = vmatprep.subr.mxu0 0.0
        %1083 = vmatpush1.msra.mxu0 0.0
        %1084 = vmatprep.subr.mxu0 0.0
        %1085 = vmatpush1.msra.mxu0 0.0
        %1086 = vmatprep.subr.mxu0 0.0
        %1087 = vmatpush1.msra.mxu0 0.0
        %1088 = vmatprep.subr.mxu0 0.0
        %1089 = vmatpush1.msra.mxu0 0.0
        %1090 = vmatprep.subr.mxu0 0.0
        %1091 = vmatpush1.msra.mxu0 0.0
        %1092 = vmatprep.subr.mxu0 0.0
        %1093 = vmatpush1.msra.mxu0 0.0
        %1094 = vmatprep.subr.mxu0 0.0
        %1095 = vmatpush1.msra.mxu0 0.0
        %1096 = vmatprep.subr.mxu0 0.0
        %1097 = vmatpush1.msra.mxu0 0.0
        %1098 = vmatprep.subr.mxu0 0.0
        %1099 = vmatpush1.msra.mxu0 0.0
        %1100 = vmatprep.mubr.f32.mxu0 0.0
        %1101 = vmatmul.mubr.f32.gmra.mrb[0].mxu0 %v1034
        %v1102 = vpop.f32.mrb[0].mxu0
        %v1103 = vadd.f32 0.0, %v1102
        %v1104 = vpop.f32.mrb[0].mxu0
        %1105 = vdwg.mxu0
        %1106 = vst.msk [vmem:[#allocation3] sm:$0xff] %vm943, %v1103
        %1107 = vrot.lane.b32.xlu0 %v932, 120
        %v1108 = vpop.permute.xlu0 %1107
        %1109 = vrot.lane.b32.xlu0 %v932, 88
        %v1110 = vpop.permute.xlu0 %1109
        %v1111 = vsel %vm943, %v1108, 0
        %v1113 = vsel %vm943, %v1110, 0
        %1115 = vmatprep.subr.mxu0 0.0
        %1116 = vmatpush1.xpose.msra.mxu0 %v1113
        %1117 = vmatprep.subr.mxu0 0.0
        %1118 = vmatpush1.xpose.msra.mxu0 0.0
        %1119 = vmatprep.subr.mxu0 0.0
        %1120 = vmatpush1.xpose.msra.mxu0 0.0
        %1121 = vmatprep.subr.mxu0 0.0
        %1122 = vmatpush1.xpose.msra.mxu0 0.0
        %1123 = vmatprep.subr.mxu0 0.0
        %1124 = vmatpush1.xpose.msra.mxu0 0.0
        %1125 = vmatprep.subr.mxu0 0.0
        %1126 = vmatpush1.xpose.msra.mxu0 0.0
        %1127 = vmatprep.subr.mxu0 0.0
        %1128 = vmatpush1.xpose.msra.mxu0 0.0
        %1129 = vmatprep.subr.mxu0 0.0
        %1130 = vmatpush1.xpose.msra.mxu0 0.0
        %1131 = vmatprep.subr.mxu0 0.0
        %1132 = vmatpush1.xpose.msra.mxu0 0.0
        %1133 = vmatprep.subr.mxu0 0.0
        %1134 = vmatpush1.xpose.msra.mxu0 0.0
        %1135 = vmatprep.subr.mxu0 0.0
        %1136 = vmatpush1.xpose.msra.mxu0 0.0
        %1137 = vmatprep.subr.mxu0 0.0
        %1138 = vmatpush1.xpose.msra.mxu0 0.0
        %1139 = vmatprep.subr.mxu0 0.0
        %1140 = vmatpush1.xpose.msra.mxu0 0.0
        %1141 = vmatprep.subr.mxu0 0.0
        %1142 = vmatpush1.xpose.msra.mxu0 0.0
        %1143 = vmatprep.subr.mxu0 0.0
        %1144 = vmatpush1.xpose.msra.mxu0 0.0
        %1145 = vmatprep.subr.mxu0 0.0
        %1146 = vmatpush1.xpose.msra.mxu0 0.0
        %1147 = vmatprep.subr.mxu0 0.0
        %1148 = vmatpush1.xpose.msra.mxu0 0.0
        %1149 = vmatprep.subr.mxu0 0.0
        %1150 = vmatpush1.xpose.msra.mxu0 0.0
        %1151 = vmatprep.subr.mxu0 0.0
        %1152 = vmatpush1.xpose.msra.mxu0 0.0
        %1153 = vmatprep.subr.mxu0 0.0
        %1154 = vmatpush1.xpose.msra.mxu0 0.0
        %1155 = vmatprep.subr.mxu0 0.0
        %1156 = vmatpush1.xpose.msra.mxu0 0.0
        %1157 = vmatprep.subr.mxu0 0.0
        %1158 = vmatpush1.xpose.msra.mxu0 0.0
        %1159 = vmatprep.subr.mxu0 0.0
        %1160 = vmatpush1.xpose.msra.mxu0 0.0
        %1161 = vmatprep.subr.mxu0 0.0
        %1162 = vmatpush1.xpose.msra.mxu0 0.0
        %1163 = vmatprep.subr.mxu0 0.0
        %1164 = vmatpush1.xpose.msra.mxu0 0.0
        %1165 = vmatprep.subr.mxu0 0.0
        %1166 = vmatpush1.xpose.msra.mxu0 0.0
        %1167 = vmatprep.subr.mxu0 0.0
        %1168 = vmatpush1.xpose.msra.mxu0 0.0
        %1169 = vmatprep.subr.mxu0 0.0
        %1170 = vmatpush1.xpose.msra.mxu0 0.0
        %1171 = vmatprep.subr.mxu0 0.0
        %1172 = vmatpush1.xpose.msra.mxu0 0.0
        %1173 = vmatprep.subr.mxu0 0.0
        %1174 = vmatpush1.xpose.msra.mxu0 0.0
        %1175 = vmatprep.subr.mxu0 0.0
        %1176 = vmatpush1.xpose.msra.mxu0 0.0
        %1177 = vmatprep.subr.mxu0 0.0
        %1178 = vmatpush1.xpose.msra.mxu0 0.0
        %1179 = vmatprep.mubr.f32.mxu0 0.0
        %1180 = vmatmul.mubr.f32.gmra.mrb[0].mxu0 %v1111
        %v1181 = vpop.f32.mrb[0].mxu0
        %v1182 = vadd.f32 0.0, %v1181
        %v1183 = vpop.f32.mrb[0].mxu0
        %1184 = vdwg.mxu0
        %v1185 = vmul.f32 %v1182, 0.17677669
        %v1186 = vsel %vm943, %v1185, -inf
        %1187 = vmax.xlane.f32.xlu0 %v1186
        %v1188 = vpop.xlane.xlu0 %1187
        %v1189 = vsub.f32 %v1185, %v1188
        %v1190 = vmul.f32 %v1189, 1.442695
        %v1191 = vpow.pop %v1190
        %v1192 = vsel %vm943, %v1191, 0.0
        %1193 = vadd.xlane.f32.xlu0 %v1192
        %v1194 = vpop.xlane.xlu0 %1193
        %v1195 = vrcp.pop %v1194
        %v1196 = vmul.f32 %v1191, %v1195
        %1197 = vrot.lane.b32.xlu0 %v932, 56
        %v1198 = vpop.permute.xlu0 %1197
        %v1201 = vsel %vm943, %v1196, 0
        %1203 = vmatprep.subr.mxu0 0.0
        %1204 = vmatpush1.msra.mxu0 %v1198
        %1205 = vmatprep.subr.mxu0 0.0
        %1206 = vmatpush1.msra.mxu0 0.0
        %1207 = vmatprep.subr.mxu0 0.0
        %1208 = vmatpush1.msra.mxu0 0.0
        %1209 = vmatprep.subr.mxu0 0.0
        %1210 = vmatpush1.msra.mxu0 0.0
        %1211 = vmatprep.subr.mxu0 0.0
        %1212 = vmatpush1.msra.mxu0 0.0
        %1213 = vmatprep.subr.mxu0 0.0
        %1214 = vmatpush1.msra.mxu0 0.0
        %1215 = vmatprep.subr.mxu0 0.0
        %1216 = vmatpush1.msra.mxu0 0.0
        %1217 = vmatprep.subr.mxu0 0.0
        %1218 = vmatpush1.msra.mxu0 0.0
        %1219 = vmatprep.subr.mxu0 0.0
        %1220 = vmatpush1.msra.mxu0 0.0
        %1221 = vmatprep.subr.mxu0 0.0
        %1222 = vmatpush1.msra.mxu0 0.0
        %1223 = vmatprep.subr.mxu0 0.0
        %1224 = vmatpush1.msra.mxu0 0.0
        %1225 = vmatprep.subr.mxu0 0.0
        %1226 = vmatpush1.msra.mxu0 0.0
        %1227 = vmatprep.subr.mxu0 0.0
        %1228 = vmatpush1.msra.mxu0 0.0
        %1229 = vmatprep.subr.mxu0 0.0
        %1230 = vmatpush1.msra.mxu0 0.0
        %1231 = vmatprep.subr.mxu0 0.0
        %1232 = vmatpush1.msra.mxu0 0.0
        %1233 = vmatprep.subr.mxu0 0.0
        %1234 = vmatpush1.msra.mxu0 0.0
        %1235 = vmatprep.subr.mxu0 0.0
        %1236 = vmatpush1.msra.mxu0 0.0
        %1237 = vmatprep.subr.mxu0 0.0
        %1238 = vmatpush1.msra.mxu0 0.0
        %1239 = vmatprep.subr.mxu0 0.0
        %1240 = vmatpush1.msra.mxu0 0.0
        %1241 = vmatprep.subr.mxu0 0.0
        %1242 = vmatpush1.msra.mxu0 0.0
        %1243 = vmatprep.subr.mxu0 0.0
        %1244 = vmatpush1.msra.mxu0 0.0
        %1245 = vmatprep.subr.mxu0 0.0
        %1246 = vmatpush1.msra.mxu0 0.0
        %1247 = vmatprep.subr.mxu0 0.0
        %1248 = vmatpush1.msra.mxu0 0.0
        %1249 = vmatprep.subr.mxu0 0.0
        %1250 = vmatpush1.msra.mxu0 0.0
        %1251 = vmatprep.subr.mxu0 0.0
        %1252 = vmatpush1.msra.mxu0 0.0
        %1253 = vmatprep.subr.mxu0 0.0
        %1254 = vmatpush1.msra.mxu0 0.0
        %1255 = vmatprep.subr.mxu0 0.0
        %1256 = vmatpush1.msra.mxu0 0.0
        %1257 = vmatprep.subr.mxu0 0.0
        %1258 = vmatpush1.msra.mxu0 0.0
        %1259 = vmatprep.subr.mxu0 0.0
        %1260 = vmatpush1.msra.mxu0 0.0
        %1261 = vmatprep.subr.mxu0 0.0
        %1262 = vmatpush1.msra.mxu0 0.0
        %1263 = vmatprep.subr.mxu0 0.0
        %1264 = vmatpush1.msra.mxu0 0.0
        %1265 = vmatprep.subr.mxu0 0.0
        %1266 = vmatpush1.msra.mxu0 0.0
        %1267 = vmatprep.mubr.f32.mxu0 0.0
        %1268 = vmatmul.mubr.f32.gmra.mrb[0].mxu0 %v1201
        %v1269 = vpop.f32.mrb[0].mxu0
        %v1270 = vadd.f32 0.0, %v1269
        %v1271 = vpop.f32.mrb[0].mxu0
        %1272 = vdwg.mxu0
        %1274 = vrot.lane.b32.xlu0 %v1270, 8
        %v1275 = vpop.permute.xlu0 %1274
        %vm1277 = vcmask 130112
        %1278 = vst.msk [vmem:[#allocation3] sm:$0xff] %vm1277, %v1275
        %1279 = vrot.lane.b32.xlu0 %v932, 112
        %v1280 = vpop.permute.xlu0 %1279
        %1281 = vrot.lane.b32.xlu0 %v932, 80
        %v1282 = vpop.permute.xlu0 %1281
        %v1283 = vsel %vm943, %v1280, 0
        %v1285 = vsel %vm943, %v1282, 0
        %1287 = vmatprep.subr.mxu0 0.0
        %1288 = vmatpush1.xpose.msra.mxu0 %v1285
        %1289 = vmatprep.subr.mxu0 0.0
        %1290 = vmatpush1.xpose.msra.mxu0 0.0
        %1291 = vmatprep.subr.mxu0 0.0
        %1292 = vmatpush1.xpose.msra.mxu0 0.0
        %1293 = vmatprep.subr.mxu0 0.0
        %1294 = vmatpush1.xpose.msra.mxu0 0.0
        %1295 = vmatprep.subr.mxu0 0.0
        %1296 = vmatpush1.xpose.msra.mxu0 0.0
        %1297 = vmatprep.subr.mxu0 0.0
        %1298 = vmatpush1.xpose.msra.mxu0 0.0
        %1299 = vmatprep.subr.mxu0 0.0
        %1300 = vmatpush1.xpose.msra.mxu0 0.0
        %1301 = vmatprep.subr.mxu0 0.0
        %1302 = vmatpush1.xpose.msra.mxu0 0.0
        %1303 = vmatprep.subr.mxu0 0.0
        %1304 = vmatpush1.xpose.msra.mxu0 0.0
        %1305 = vmatprep.subr.mxu0 0.0
        %1306 = vmatpush1.xpose.msra.mxu0 0.0
        %1307 = vmatprep.subr.mxu0 0.0
        %1308 = vmatpush1.xpose.msra.mxu0 0.0
        %1309 = vmatprep.subr.mxu0 0.0
        %1310 = vmatpush1.xpose.msra.mxu0 0.0
        %1311 = vmatprep.subr.mxu0 0.0
        %1312 = vmatpush1.xpose.msra.mxu0 0.0
        %1313 = vmatprep.subr.mxu0 0.0
        %1314 = vmatpush1.xpose.msra.mxu0 0.0
        %1315 = vmatprep.subr.mxu0 0.0
        %1316 = vmatpush1.xpose.msra.mxu0 0.0
        %1317 = vmatprep.subr.mxu0 0.0
        %1318 = vmatpush1.xpose.msra.mxu0 0.0
        %1319 = vmatprep.subr.mxu0 0.0
        %1320 = vmatpush1.xpose.msra.mxu0 0.0
        %1321 = vmatprep.subr.mxu0 0.0
        %1322 = vmatpush1.xpose.msra.mxu0 0.0
        %1323 = vmatprep.subr.mxu0 0.0
        %1324 = vmatpush1.xpose.msra.mxu0 0.0
        %1325 = vmatprep.subr.mxu0 0.0
        %1326 = vmatpush1.xpose.msra.mxu0 0.0
        %1327 = vmatprep.subr.mxu0 0.0
        %1328 = vmatpush1.xpose.msra.mxu0 0.0
        %1329 = vmatprep.subr.mxu0 0.0
        %1330 = vmatpush1.xpose.msra.mxu0 0.0
        %1331 = vmatprep.subr.mxu0 0.0
        %1332 = vmatpush1.xpose.msra.mxu0 0.0
        %1333 = vmatprep.subr.mxu0 0.0
        %1334 = vmatpush1.xpose.msra.mxu0 0.0
        %1335 = vmatprep.subr.mxu0 0.0
        %1336 = vmatpush1.xpose.msra.mxu0 0.0
        %1337 = vmatprep.subr.mxu0 0.0
        %1338 = vmatpush1.xpose.msra.mxu0 0.0
        %1339 = vmatprep.subr.mxu0 0.0
        %1340 = vmatpush1.xpose.msra.mxu0 0.0
        %1341 = vmatprep.subr.mxu0 0.0
        %1342 = vmatpush1.xpose.msra.mxu0 0.0
        %1343 = vmatprep.subr.mxu0 0.0
        %1344 = vmatpush1.xpose.msra.mxu0 0.0
        %1345 = vmatprep.subr.mxu0 0.0
        %1346 = vmatpush1.xpose.msra.mxu0 0.0
        %1347 = vmatprep.subr.mxu0 0.0
        %1348 = vmatpush1.xpose.msra.mxu0 0.0
        %1349 = vmatprep.subr.mxu0 0.0
        %1350 = vmatpush1.xpose.msra.mxu0 0.0
        %1351 = vmatprep.mubr.f32.mxu0 0.0
        %1352 = vmatmul.mubr.f32.gmra.mrb[0].mxu0 %v1283
        %v1353 = vpop.f32.mrb[0].mxu0
        %v1354 = vadd.f32 0.0, %v1353
        %v1355 = vpop.f32.mrb[0].mxu0
        %1356 = vdwg.mxu0
        %v1357 = vmul.f32 %v1354, 0.17677669
        %v1358 = vsel %vm943, %v1357, -inf
        %1359 = vmax.xlane.f32.xlu0 %v1358
        %v1360 = vpop.xlane.xlu0 %1359
        %v1361 = vsub.f32 %v1357, %v1360
        %v1362 = vmul.f32 %v1361, 1.442695
        %v1363 = vpow.pop %v1362
        %v1364 = vsel %vm943, %v1363, 0.0
        %1365 = vadd.xlane.f32.xlu0 %v1364
        %v1366 = vpop.xlane.xlu0 %1365
        %v1367 = vrcp.pop %v1366
        %v1368 = vmul.f32 %v1363, %v1367
        %1369 = vrot.lane.b32.xlu0 %v932, 48
        %v1370 = vpop.permute.xlu0 %1369
        %v1373 = vsel %vm943, %v1368, 0
        %1375 = vmatprep.subr.mxu0 0.0
        %1376 = vmatpush1.msra.mxu0 %v1370
        %1377 = vmatprep.subr.mxu0 0.0
        %1378 = vmatpush1.msra.mxu0 0.0
        %1379 = vmatprep.subr.mxu0 0.0
        %1380 = vmatpush1.msra.mxu0 0.0
        %1381 = vmatprep.subr.mxu0 0.0
        %1382 = vmatpush1.msra.mxu0 0.0
        %1383 = vmatprep.subr.mxu0 0.0
        %1384 = vmatpush1.msra.mxu0 0.0
        %1385 = vmatprep.subr.mxu0 0.0
        %1386 = vmatpush1.msra.mxu0 0.0
        %1387 = vmatprep.subr.mxu0 0.0
        %1388 = vmatpush1.msra.mxu0 0.0
        %1389 = vmatprep.subr.mxu0 0.0
        %1390 = vmatpush1.msra.mxu0 0.0
        %1391 = vmatprep.subr.mxu0 0.0
        %1392 = vmatpush1.msra.mxu0 0.0
        %1393 = vmatprep.subr.mxu0 0.0
        %1394 = vmatpush1.msra.mxu0 0.0
        %1395 = vmatprep.subr.mxu0 0.0
        %1396 = vmatpush1.msra.mxu0 0.0
        %1397 = vmatprep.subr.mxu0 0.0
        %1398 = vmatpush1.msra.mxu0 0.0
        %1399 = vmatprep.subr.mxu0 0.0
        %1400 = vmatpush1.msra.mxu0 0.0
        %1401 = vmatprep.subr.mxu0 0.0
        %1402 = vmatpush1.msra.mxu0 0.0
        %1403 = vmatprep.subr.mxu0 0.0
        %1404 = vmatpush1.msra.mxu0 0.0
        %1405 = vmatprep.subr.mxu0 0.0
        %1406 = vmatpush1.msra.mxu0 0.0
        %1407 = vmatprep.subr.mxu0 0.0
        %1408 = vmatpush1.msra.mxu0 0.0
        %1409 = vmatprep.subr.mxu0 0.0
        %1410 = vmatpush1.msra.mxu0 0.0
        %1411 = vmatprep.subr.mxu0 0.0
        %1412 = vmatpush1.msra.mxu0 0.0
        %1413 = vmatprep.subr.mxu0 0.0
        %1414 = vmatpush1.msra.mxu0 0.0
        %1415 = vmatprep.subr.mxu0 0.0
        %1416 = vmatpush1.msra.mxu0 0.0
        %1417 = vmatprep.subr.mxu0 0.0
        %1418 = vmatpush1.msra.mxu0 0.0
        %1419 = vmatprep.subr.mxu0 0.0
        %1420 = vmatpush1.msra.mxu0 0.0
        %1421 = vmatprep.subr.mxu0 0.0
        %1422 = vmatpush1.msra.mxu0 0.0
        %1423 = vmatprep.subr.mxu0 0.0
        %1424 = vmatpush1.msra.mxu0 0.0
        %1425 = vmatprep.subr.mxu0 0.0
        %1426 = vmatpush1.msra.mxu0 0.0
        %1427 = vmatprep.subr.mxu0 0.0
        %1428 = vmatpush1.msra.mxu0 0.0
        %1429 = vmatprep.subr.mxu0 0.0
        %1430 = vmatpush1.msra.mxu0 0.0
        %1431 = vmatprep.subr.mxu0 0.0
        %1432 = vmatpush1.msra.mxu0 0.0
        %1433 = vmatprep.subr.mxu0 0.0
        %1434 = vmatpush1.msra.mxu0 0.0
        %1435 = vmatprep.subr.mxu0 0.0
        %1436 = vmatpush1.msra.mxu0 0.0
        %1437 = vmatprep.subr.mxu0 0.0
        %1438 = vmatpush1.msra.mxu0 0.0
        %1439 = vmatprep.mubr.f32.mxu0 0.0
        %1440 = vmatmul.mubr.f32.gmra.mrb[0].mxu0 %v1373
        %v1441 = vpop.f32.mrb[0].mxu0
        %v1442 = vadd.f32 0.0, %v1441
        %v1443 = vpop.f32.mrb[0].mxu0
        %1444 = vdwg.mxu0
        %1446 = vrot.lane.b32.xlu0 %v1442, 16
        %v1447 = vpop.permute.xlu0 %1446
        %vm1449 = vcmask 195712
        %1450 = vst.msk [vmem:[#allocation3] sm:$0xff] %vm1449, %v1447
        %1451 = vrot.lane.b32.xlu0 %v932, 104
        %v1452 = vpop.permute.xlu0 %1451
        %1453 = vrot.lane.b32.xlu0 %v932, 72
        %v1454 = vpop.permute.xlu0 %1453
        %v1455 = vsel %vm943, %v1452, 0
        %v1457 = vsel %vm943, %v1454, 0
        %1459 = vmatprep.subr.mxu0 0.0
        %1460 = vmatpush1.xpose.msra.mxu0 %v1457
        %1461 = vmatprep.subr.mxu0 0.0
        %1462 = vmatpush1.xpose.msra.mxu0 0.0
        %1463 = vmatprep.subr.mxu0 0.0
        %1464 = vmatpush1.xpose.msra.mxu0 0.0
        %1465 = vmatprep.subr.mxu0 0.0
        %1466 = vmatpush1.xpose.msra.mxu0 0.0
        %1467 = vmatprep.subr.mxu0 0.0
        %1468 = vmatpush1.xpose.msra.mxu0 0.0
        %1469 = vmatprep.subr.mxu0 0.0
        %1470 = vmatpush1.xpose.msra.mxu0 0.0
        %1471 = vmatprep.subr.mxu0 0.0
        %1472 = vmatpush1.xpose.msra.mxu0 0.0
        %1473 = vmatprep.subr.mxu0 0.0
        %1474 = vmatpush1.xpose.msra.mxu0 0.0
        %1475 = vmatprep.subr.mxu0 0.0
        %1476 = vmatpush1.xpose.msra.mxu0 0.0
        %1477 = vmatprep.subr.mxu0 0.0
        %1478 = vmatpush1.xpose.msra.mxu0 0.0
        %1479 = vmatprep.subr.mxu0 0.0
        %1480 = vmatpush1.xpose.msra.mxu0 0.0
        %1481 = vmatprep.subr.mxu0 0.0
        %1482 = vmatpush1.xpose.msra.mxu0 0.0
        %1483 = vmatprep.subr.mxu0 0.0
        %1484 = vmatpush1.xpose.msra.mxu0 0.0
        %1485 = vmatprep.subr.mxu0 0.0
        %1486 = vmatpush1.xpose.msra.mxu0 0.0
        %1487 = vmatprep.subr.mxu0 0.0
        %1488 = vmatpush1.xpose.msra.mxu0 0.0
        %1489 = vmatprep.subr.mxu0 0.0
        %1490 = vmatpush1.xpose.msra.mxu0 0.0
        %1491 = vmatprep.subr.mxu0 0.0
        %1492 = vmatpush1.xpose.msra.mxu0 0.0
        %1493 = vmatprep.subr.mxu0 0.0
        %1494 = vmatpush1.xpose.msra.mxu0 0.0
        %1495 = vmatprep.subr.mxu0 0.0
        %1496 = vmatpush1.xpose.msra.mxu0 0.0
        %1497 = vmatprep.subr.mxu0 0.0
        %1498 = vmatpush1.xpose.msra.mxu0 0.0
        %1499 = vmatprep.subr.mxu0 0.0
        %1500 = vmatpush1.xpose.msra.mxu0 0.0
        %1501 = vmatprep.subr.mxu0 0.0
        %1502 = vmatpush1.xpose.msra.mxu0 0.0
        %1503 = vmatprep.subr.mxu0 0.0
        %1504 = vmatpush1.xpose.msra.mxu0 0.0
        %1505 = vmatprep.subr.mxu0 0.0
        %1506 = vmatpush1.xpose.msra.mxu0 0.0
        %1507 = vmatprep.subr.mxu0 0.0
        %1508 = vmatpush1.xpose.msra.mxu0 0.0
        %1509 = vmatprep.subr.mxu0 0.0
        %1510 = vmatpush1.xpose.msra.mxu0 0.0
        %1511 = vmatprep.subr.mxu0 0.0
        %1512 = vmatpush1.xpose.msra.mxu0 0.0
        %1513 = vmatprep.subr.mxu0 0.0
        %1514 = vmatpush1.xpose.msra.mxu0 0.0
        %1515 = vmatprep.subr.mxu0 0.0
        %1516 = vmatpush1.xpose.msra.mxu0 0.0
        %1517 = vmatprep.subr.mxu0 0.0
        %1518 = vmatpush1.xpose.msra.mxu0 0.0
        %1519 = vmatprep.subr.mxu0 0.0
        %1520 = vmatpush1.xpose.msra.mxu0 0.0
        %1521 = vmatprep.subr.mxu0 0.0
        %1522 = vmatpush1.xpose.msra.mxu0 0.0
        %1523 = vmatprep.mubr.f32.mxu0 0.0
        %1524 = vmatmul.mubr.f32.gmra.mrb[0].mxu0 %v1455
        %v1525 = vpop.f32.mrb[0].mxu0
        %v1526 = vadd.f32 0.0, %v1525
        %v1527 = vpop.f32.mrb[0].mxu0
        %1528 = vdwg.mxu0
        %v1529 = vmul.f32 %v1526, 0.17677669
        %v1530 = vsel %vm943, %v1529, -inf
        %1531 = vmax.xlane.f32.xlu0 %v1530
        %v1532 = vpop.xlane.xlu0 %1531
        %v1533 = vsub.f32 %v1529, %v1532
        %v1534 = vmul.f32 %v1533, 1.442695
        %v1535 = vpow.pop %v1534
        %v1536 = vsel %vm943, %v1535, 0.0
        %1537 = vadd.xlane.f32.xlu0 %v1536
        %v1538 = vpop.xlane.xlu0 %1537
        %v1539 = vrcp.pop %v1538
        %v1540 = vmul.f32 %v1535, %v1539
        %1541 = vrot.lane.b32.xlu0 %v932, 40
        %v1542 = vpop.permute.xlu0 %1541
        %v1545 = vsel %vm943, %v1540, 0
        %1547 = vmatprep.subr.mxu0 0.0
        %1548 = vmatpush1.msra.mxu0 %v1542
        %1549 = vmatprep.subr.mxu0 0.0
        %1550 = vmatpush1.msra.mxu0 0.0
        %1551 = vmatprep.subr.mxu0 0.0
        %1552 = vmatpush1.msra.mxu0 0.0
        %1553 = vmatprep.subr.mxu0 0.0
        %1554 = vmatpush1.msra.mxu0 0.0
        %1555 = vmatprep.subr.mxu0 0.0
        %1556 = vmatpush1.msra.mxu0 0.0
        %1557 = vmatprep.subr.mxu0 0.0
        %1558 = vmatpush1.msra.mxu0 0.0
        %1559 = vmatprep.subr.mxu0 0.0
        %1560 = vmatpush1.msra.mxu0 0.0
        %1561 = vmatprep.subr.mxu0 0.0
        %1562 = vmatpush1.msra.mxu0 0.0
        %1563 = vmatprep.subr.mxu0 0.0
        %1564 = vmatpush1.msra.mxu0 0.0
        %1565 = vmatprep.subr.mxu0 0.0
        %1566 = vmatpush1.msra.mxu0 0.0
        %1567 = vmatprep.subr.mxu0 0.0
        %1568 = vmatpush1.msra.mxu0 0.0
        %1569 = vmatprep.subr.mxu0 0.0
        %1570 = vmatpush1.msra.mxu0 0.0
        %1571 = vmatprep.subr.mxu0 0.0
        %1572 = vmatpush1.msra.mxu0 0.0
        %1573 = vmatprep.subr.mxu0 0.0
        %1574 = vmatpush1.msra.mxu0 0.0
        %1575 = vmatprep.subr.mxu0 0.0
        %1576 = vmatpush1.msra.mxu0 0.0
        %1577 = vmatprep.subr.mxu0 0.0
        %1578 = vmatpush1.msra.mxu0 0.0
        %1579 = vmatprep.subr.mxu0 0.0
        %1580 = vmatpush1.msra.mxu0 0.0
        %1581 = vmatprep.subr.mxu0 0.0
        %1582 = vmatpush1.msra.mxu0 0.0
        %1583 = vmatprep.subr.mxu0 0.0
        %1584 = vmatpush1.msra.mxu0 0.0
        %1585 = vmatprep.subr.mxu0 0.0
        %1586 = vmatpush1.msra.mxu0 0.0
        %1587 = vmatprep.subr.mxu0 0.0
        %1588 = vmatpush1.msra.mxu0 0.0
        %1589 = vmatprep.subr.mxu0 0.0
        %1590 = vmatpush1.msra.mxu0 0.0
        %1591 = vmatprep.subr.mxu0 0.0
        %1592 = vmatpush1.msra.mxu0 0.0
        %1593 = vmatprep.subr.mxu0 0.0
        %1594 = vmatpush1.msra.mxu0 0.0
        %1595 = vmatprep.subr.mxu0 0.0
        %1596 = vmatpush1.msra.mxu0 0.0
        %1597 = vmatprep.subr.mxu0 0.0
        %1598 = vmatpush1.msra.mxu0 0.0
        %1599 = vmatprep.subr.mxu0 0.0
        %1600 = vmatpush1.msra.mxu0 0.0
        %1601 = vmatprep.subr.mxu0 0.0
        %1602 = vmatpush1.msra.mxu0 0.0
        %1603 = vmatprep.subr.mxu0 0.0
        %1604 = vmatpush1.msra.mxu0 0.0
        %1605 = vmatprep.subr.mxu0 0.0
        %1606 = vmatpush1.msra.mxu0 0.0
        %1607 = vmatprep.subr.mxu0 0.0
        %1608 = vmatpush1.msra.mxu0 0.0
        %1609 = vmatprep.subr.mxu0 0.0
        %1610 = vmatpush1.msra.mxu0 0.0
        %1611 = vmatprep.mubr.f32.mxu0 0.0
        %1612 = vmatmul.mubr.f32.gmra.mrb[0].mxu0 %v1545
        %v1613 = vpop.f32.mrb[0].mxu0
        %v1614 = vadd.f32 0.0, %v1613
        %v1615 = vpop.f32.mrb[0].mxu0
        %1616 = vdwg.mxu0
        %1618 = vrot.lane.b32.xlu0 %v1614, 24
        %v1619 = vpop.permute.xlu0 %1618
        %vm1621 = vcmask 261312
        %1622 = vst.msk [vmem:[#allocation3] sm:$0xff] %vm1621, %v1619
        %1624 = vrot.lane.b32.xlu0 %v937, 96
        %v1625 = vpop.permute.xlu0 %1624
        %v1626 = vsel %vm943, %v937, 0
        %v1628 = vsel %vm943, %v1625, 0
        %1630 = vmatprep.subr.mxu0 0.0
        %1631 = vmatpush1.xpose.msra.mxu0 %v1628
        %1632 = vmatprep.subr.mxu0 0.0
        %1633 = vmatpush1.xpose.msra.mxu0 0.0
        %1634 = vmatprep.subr.mxu0 0.0
        %1635 = vmatpush1.xpose.msra.mxu0 0.0
        %1636 = vmatprep.subr.mxu0 0.0
        %1637 = vmatpush1.xpose.msra.mxu0 0.0
        %1638 = vmatprep.subr.mxu0 0.0
        %1639 = vmatpush1.xpose.msra.mxu0 0.0
        %1640 = vmatprep.subr.mxu0 0.0
        %1641 = vmatpush1.xpose.msra.mxu0 0.0
        %1642 = vmatprep.subr.mxu0 0.0
        %1643 = vmatpush1.xpose.msra.mxu0 0.0
        %1644 = vmatprep.subr.mxu0 0.0
        %1645 = vmatpush1.xpose.msra.mxu0 0.0
        %1646 = vmatprep.subr.mxu0 0.0
        %1647 = vmatpush1.xpose.msra.mxu0 0.0
        %1648 = vmatprep.subr.mxu0 0.0
        %1649 = vmatpush1.xpose.msra.mxu0 0.0
        %1650 = vmatprep.subr.mxu0 0.0
        %1651 = vmatpush1.xpose.msra.mxu0 0.0
        %1652 = vmatprep.subr.mxu0 0.0
        %1653 = vmatpush1.xpose.msra.mxu0 0.0
        %1654 = vmatprep.subr.mxu0 0.0
        %1655 = vmatpush1.xpose.msra.mxu0 0.0
        %1656 = vmatprep.subr.mxu0 0.0
        %1657 = vmatpush1.xpose.msra.mxu0 0.0
        %1658 = vmatprep.subr.mxu0 0.0
        %1659 = vmatpush1.xpose.msra.mxu0 0.0
        %1660 = vmatprep.subr.mxu0 0.0
        %1661 = vmatpush1.xpose.msra.mxu0 0.0
        %1662 = vmatprep.subr.mxu0 0.0
        %1663 = vmatpush1.xpose.msra.mxu0 0.0
        %1664 = vmatprep.subr.mxu0 0.0
        %1665 = vmatpush1.xpose.msra.mxu0 0.0
        %1666 = vmatprep.subr.mxu0 0.0
        %1667 = vmatpush1.xpose.msra.mxu0 0.0
        %1668 = vmatprep.subr.mxu0 0.0
        %1669 = vmatpush1.xpose.msra.mxu0 0.0
        %1670 = vmatprep.subr.mxu0 0.0
        %1671 = vmatpush1.xpose.msra.mxu0 0.0
        %1672 = vmatprep.subr.mxu0 0.0
        %1673 = vmatpush1.xpose.msra.mxu0 0.0
        %1674 = vmatprep.subr.mxu0 0.0
        %1675 = vmatpush1.xpose.msra.mxu0 0.0
        %1676 = vmatprep.subr.mxu0 0.0
        %1677 = vmatpush1.xpose.msra.mxu0 0.0
        %1678 = vmatprep.subr.mxu0 0.0
        %1679 = vmatpush1.xpose.msra.mxu0 0.0
        %1680 = vmatprep.subr.mxu0 0.0
        %1681 = vmatpush1.xpose.msra.mxu0 0.0
        %1682 = vmatprep.subr.mxu0 0.0
        %1683 = vmatpush1.xpose.msra.mxu0 0.0
        %1684 = vmatprep.subr.mxu0 0.0
        %1685 = vmatpush1.xpose.msra.mxu0 0.0
        %1686 = vmatprep.subr.mxu0 0.0
        %1687 = vmatpush1.xpose.msra.mxu0 0.0
        %1688 = vmatprep.subr.mxu0 0.0
        %1689 = vmatpush1.xpose.msra.mxu0 0.0
        %1690 = vmatprep.subr.mxu0 0.0
        %1691 = vmatpush1.xpose.msra.mxu0 0.0
        %1692 = vmatprep.subr.mxu0 0.0
        %1693 = vmatpush1.xpose.msra.mxu0 0.0
        %1694 = vmatprep.mubr.f32.mxu0 0.0
        %1695 = vmatmul.mubr.f32.gmra.mrb[0].mxu0 %v1626
        %v1696 = vpop.f32.mrb[0].mxu0
        %v1697 = vadd.f32 0.0, %v1696
        %v1698 = vpop.f32.mrb[0].mxu0
        %1699 = vdwg.mxu0
        %v1700 = vmul.f32 %v1697, 0.17677669
        %v1701 = vsel %vm943, %v1700, -inf
        %1702 = vmax.xlane.f32.xlu0 %v1701
        %v1703 = vpop.xlane.xlu0 %1702
        %v1704 = vsub.f32 %v1700, %v1703
        %v1705 = vmul.f32 %v1704, 1.442695
        %v1706 = vpow.pop %v1705
        %v1707 = vsel %vm943, %v1706, 0.0
        %1708 = vadd.xlane.f32.xlu0 %v1707
        %v1709 = vpop.xlane.xlu0 %1708
        %v1710 = vrcp.pop %v1709
        %v1711 = vmul.f32 %v1706, %v1710
        %1712 = vrot.lane.b32.xlu0 %v937, 64
        %v1713 = vpop.permute.xlu0 %1712
        %v1716 = vsel %vm943, %v1711, 0
        %1718 = vmatprep.subr.mxu0 0.0
        %1719 = vmatpush1.msra.mxu0 %v1713
        %1720 = vmatprep.subr.mxu0 0.0
        %1721 = vmatpush1.msra.mxu0 0.0
        %1722 = vmatprep.subr.mxu0 0.0
        %1723 = vmatpush1.msra.mxu0 0.0
        %1724 = vmatprep.subr.mxu0 0.0
        %1725 = vmatpush1.msra.mxu0 0.0
        %1726 = vmatprep.subr.mxu0 0.0
        %1727 = vmatpush1.msra.mxu0 0.0
        %1728 = vmatprep.subr.mxu0 0.0
        %1729 = vmatpush1.msra.mxu0 0.0
        %1730 = vmatprep.subr.mxu0 0.0
        %1731 = vmatpush1.msra.mxu0 0.0
        %1732 = vmatprep.subr.mxu0 0.0
        %1733 = vmatpush1.msra.mxu0 0.0
        %1734 = vmatprep.subr.mxu0 0.0
        %1735 = vmatpush1.msra.mxu0 0.0
        %1736 = vmatprep.subr.mxu0 0.0
        %1737 = vmatpush1.msra.mxu0 0.0
        %1738 = vmatprep.subr.mxu0 0.0
        %1739 = vmatpush1.msra.mxu0 0.0
        %1740 = vmatprep.subr.mxu0 0.0
        %1741 = vmatpush1.msra.mxu0 0.0
        %1742 = vmatprep.subr.mxu0 0.0
        %1743 = vmatpush1.msra.mxu0 0.0
        %1744 = vmatprep.subr.mxu0 0.0
        %1745 = vmatpush1.msra.mxu0 0.0
        %1746 = vmatprep.subr.mxu0 0.0
        %1747 = vmatpush1.msra.mxu0 0.0
        %1748 = vmatprep.subr.mxu0 0.0
        %1749 = vmatpush1.msra.mxu0 0.0
        %1750 = vmatprep.subr.mxu0 0.0
        %1751 = vmatpush1.msra.mxu0 0.0
        %1752 = vmatprep.subr.mxu0 0.0
        %1753 = vmatpush1.msra.mxu0 0.0
        %1754 = vmatprep.subr.mxu0 0.0
        %1755 = vmatpush1.msra.mxu0 0.0
        %1756 = vmatprep.subr.mxu0 0.0
        %1757 = vmatpush1.msra.mxu0 0.0
        %1758 = vmatprep.subr.mxu0 0.0
        %1759 = vmatpush1.msra.mxu0 0.0
        %1760 = vmatprep.subr.mxu0 0.0
        %1761 = vmatpush1.msra.mxu0 0.0
        %1762 = vmatprep.subr.mxu0 0.0
        %1763 = vmatpush1.msra.mxu0 0.0
        %1764 = vmatprep.subr.mxu0 0.0
        %1765 = vmatpush1.msra.mxu0 0.0
        %1766 = vmatprep.subr.mxu0 0.0
        %1767 = vmatpush1.msra.mxu0 0.0
        %1768 = vmatprep.subr.mxu0 0.0
        %1769 = vmatpush1.msra.mxu0 0.0
        %1770 = vmatprep.subr.mxu0 0.0
        %1771 = vmatpush1.msra.mxu0 0.0
        %1772 = vmatprep.subr.mxu0 0.0
        %1773 = vmatpush1.msra.mxu0 0.0
        %1774 = vmatprep.subr.mxu0 0.0
        %1775 = vmatpush1.msra.mxu0 0.0
        %1776 = vmatprep.subr.mxu0 0.0
        %1777 = vmatpush1.msra.mxu0 0.0
        %1778 = vmatprep.subr.mxu0 0.0
        %1779 = vmatpush1.msra.mxu0 0.0
        %1780 = vmatprep.subr.mxu0 0.0
        %1781 = vmatpush1.msra.mxu0 0.0
        %1782 = vmatprep.mubr.f32.mxu0 0.0
        %1783 = vmatmul.mubr.f32.gmra.mrb[0].mxu0 %v1716
        %v1784 = vpop.f32.mrb[0].mxu0
        %v1785 = vadd.f32 0.0, %v1784
        %v1786 = vpop.f32.mrb[0].mxu0
        %1787 = vdwg.mxu0
        %1788 = vst.msk [vmem:[#allocation3 + $0x8] sm:$0xff] %vm943, %v1785
        %1789 = vrot.lane.b32.xlu0 %v937, 120
        %v1790 = vpop.permute.xlu0 %1789
        %1791 = vrot.lane.b32.xlu0 %v937, 88
        %v1792 = vpop.permute.xlu0 %1791
        %v1793 = vsel %vm943, %v1790, 0
        %v1795 = vsel %vm943, %v1792, 0
        %1797 = vmatprep.subr.mxu0 0.0
        %1798 = vmatpush1.xpose.msra.mxu0 %v1795
        %1799 = vmatprep.subr.mxu0 0.0
        %1800 = vmatpush1.xpose.msra.mxu0 0.0
        %1801 = vmatprep.subr.mxu0 0.0
        %1802 = vmatpush1.xpose.msra.mxu0 0.0
        %1803 = vmatprep.subr.mxu0 0.0
        %1804 = vmatpush1.xpose.msra.mxu0 0.0
        %1805 = vmatprep.subr.mxu0 0.0
        %1806 = vmatpush1.xpose.msra.mxu0 0.0
        %1807 = vmatprep.subr.mxu0 0.0
        %1808 = vmatpush1.xpose.msra.mxu0 0.0
        %1809 = vmatprep.subr.mxu0 0.0
        %1810 = vmatpush1.xpose.msra.mxu0 0.0
        %1811 = vmatprep.subr.mxu0 0.0
        %1812 = vmatpush1.xpose.msra.mxu0 0.0
        %1813 = vmatprep.subr.mxu0 0.0
        %1814 = vmatpush1.xpose.msra.mxu0 0.0
        %1815 = vmatprep.subr.mxu0 0.0
        %1816 = vmatpush1.xpose.msra.mxu0 0.0
        %1817 = vmatprep.subr.mxu0 0.0
        %1818 = vmatpush1.xpose.msra.mxu0 0.0
        %1819 = vmatprep.subr.mxu0 0.0
        %1820 = vmatpush1.xpose.msra.mxu0 0.0
        %1821 = vmatprep.subr.mxu0 0.0
        %1822 = vmatpush1.xpose.msra.mxu0 0.0
        %1823 = vmatprep.subr.mxu0 0.0
        %1824 = vmatpush1.xpose.msra.mxu0 0.0
        %1825 = vmatprep.subr.mxu0 0.0
        %1826 = vmatpush1.xpose.msra.mxu0 0.0
        %1827 = vmatprep.subr.mxu0 0.0
        %1828 = vmatpush1.xpose.msra.mxu0 0.0
        %1829 = vmatprep.subr.mxu0 0.0
        %1830 = vmatpush1.xpose.msra.mxu0 0.0
        %1831 = vmatprep.subr.mxu0 0.0
        %1832 = vmatpush1.xpose.msra.mxu0 0.0
        %1833 = vmatprep.subr.mxu0 0.0
        %1834 = vmatpush1.xpose.msra.mxu0 0.0
        %1835 = vmatprep.subr.mxu0 0.0
        %1836 = vmatpush1.xpose.msra.mxu0 0.0
        %1837 = vmatprep.subr.mxu0 0.0
        %1838 = vmatpush1.xpose.msra.mxu0 0.0
        %1839 = vmatprep.subr.mxu0 0.0
        %1840 = vmatpush1.xpose.msra.mxu0 0.0
        %1841 = vmatprep.subr.mxu0 0.0
        %1842 = vmatpush1.xpose.msra.mxu0 0.0
        %1843 = vmatprep.subr.mxu0 0.0
        %1844 = vmatpush1.xpose.msra.mxu0 0.0
        %1845 = vmatprep.subr.mxu0 0.0
        %1846 = vmatpush1.xpose.msra.mxu0 0.0
        %1847 = vmatprep.subr.mxu0 0.0
        %1848 = vmatpush1.xpose.msra.mxu0 0.0
        %1849 = vmatprep.subr.mxu0 0.0
        %1850 = vmatpush1.xpose.msra.mxu0 0.0
        %1851 = vmatprep.subr.mxu0 0.0
        %1852 = vmatpush1.xpose.msra.mxu0 0.0
        %1853 = vmatprep.subr.mxu0 0.0
        %1854 = vmatpush1.xpose.msra.mxu0 0.0
        %1855 = vmatprep.subr.mxu0 0.0
        %1856 = vmatpush1.xpose.msra.mxu0 0.0
        %1857 = vmatprep.subr.mxu0 0.0
        %1858 = vmatpush1.xpose.msra.mxu0 0.0
        %1859 = vmatprep.subr.mxu0 0.0
        %1860 = vmatpush1.xpose.msra.mxu0 0.0
        %1861 = vmatprep.mubr.f32.mxu0 0.0
        %1862 = vmatmul.mubr.f32.gmra.mrb[0].mxu0 %v1793
        %v1863 = vpop.f32.mrb[0].mxu0
        %v1864 = vadd.f32 0.0, %v1863
        %v1865 = vpop.f32.mrb[0].mxu0
        %1866 = vdwg.mxu0
        %v1867 = vmul.f32 %v1864, 0.17677669
        %v1868 = vsel %vm943, %v1867, -inf
        %1869 = vmax.xlane.f32.xlu0 %v1868
        %v1870 = vpop.xlane.xlu0 %1869
        %v1871 = vsub.f32 %v1867, %v1870
        %v1872 = vmul.f32 %v1871, 1.442695
        %v1873 = vpow.pop %v1872
        %v1874 = vsel %vm943, %v1873, 0.0
        %1875 = vadd.xlane.f32.xlu0 %v1874
        %v1876 = vpop.xlane.xlu0 %1875
        %v1877 = vrcp.pop %v1876
        %v1878 = vmul.f32 %v1873, %v1877
        %1879 = vrot.lane.b32.xlu0 %v937, 56
        %v1880 = vpop.permute.xlu0 %1879
        %v1883 = vsel %vm943, %v1878, 0
        %1885 = vmatprep.subr.mxu0 0.0
        %1886 = vmatpush1.msra.mxu0 %v1880
        %1887 = vmatprep.subr.mxu0 0.0
        %1888 = vmatpush1.msra.mxu0 0.0
        %1889 = vmatprep.subr.mxu0 0.0
        %1890 = vmatpush1.msra.mxu0 0.0
        %1891 = vmatprep.subr.mxu0 0.0
        %1892 = vmatpush1.msra.mxu0 0.0
        %1893 = vmatprep.subr.mxu0 0.0
        %1894 = vmatpush1.msra.mxu0 0.0
        %1895 = vmatprep.subr.mxu0 0.0
        %1896 = vmatpush1.msra.mxu0 0.0
        %1897 = vmatprep.subr.mxu0 0.0
        %1898 = vmatpush1.msra.mxu0 0.0
        %1899 = vmatprep.subr.mxu0 0.0
        %1900 = vmatpush1.msra.mxu0 0.0
        %1901 = vmatprep.subr.mxu0 0.0
        %1902 = vmatpush1.msra.mxu0 0.0
        %1903 = vmatprep.subr.mxu0 0.0
        %1904 = vmatpush1.msra.mxu0 0.0
        %1905 = vmatprep.subr.mxu0 0.0
        %1906 = vmatpush1.msra.mxu0 0.0
        %1907 = vmatprep.subr.mxu0 0.0
        %1908 = vmatpush1.msra.mxu0 0.0
        %1909 = vmatprep.subr.mxu0 0.0
        %1910 = vmatpush1.msra.mxu0 0.0
        %1911 = vmatprep.subr.mxu0 0.0
        %1912 = vmatpush1.msra.mxu0 0.0
        %1913 = vmatprep.subr.mxu0 0.0
        %1914 = vmatpush1.msra.mxu0 0.0
        %1915 = vmatprep.subr.mxu0 0.0
        %1916 = vmatpush1.msra.mxu0 0.0
        %1917 = vmatprep.subr.mxu0 0.0
        %1918 = vmatpush1.msra.mxu0 0.0
        %1919 = vmatprep.subr.mxu0 0.0
        %1920 = vmatpush1.msra.mxu0 0.0
        %1921 = vmatprep.subr.mxu0 0.0
        %1922 = vmatpush1.msra.mxu0 0.0
        %1923 = vmatprep.subr.mxu0 0.0
        %1924 = vmatpush1.msra.mxu0 0.0
        %1925 = vmatprep.subr.mxu0 0.0
        %1926 = vmatpush1.msra.mxu0 0.0
        %1927 = vmatprep.subr.mxu0 0.0
        %1928 = vmatpush1.msra.mxu0 0.0
        %1929 = vmatprep.subr.mxu0 0.0
        %1930 = vmatpush1.msra.mxu0 0.0
        %1931 = vmatprep.subr.mxu0 0.0
        %1932 = vmatpush1.msra.mxu0 0.0
        %1933 = vmatprep.subr.mxu0 0.0
        %1934 = vmatpush1.msra.mxu0 0.0
        %1935 = vmatprep.subr.mxu0 0.0
        %1936 = vmatpush1.msra.mxu0 0.0
        %1937 = vmatprep.subr.mxu0 0.0
        %1938 = vmatpush1.msra.mxu0 0.0
        %1939 = vmatprep.subr.mxu0 0.0
        %1940 = vmatpush1.msra.mxu0 0.0
        %1941 = vmatprep.subr.mxu0 0.0
        %1942 = vmatpush1.msra.mxu0 0.0
        %1943 = vmatprep.subr.mxu0 0.0
        %1944 = vmatpush1.msra.mxu0 0.0
        %1945 = vmatprep.subr.mxu0 0.0
        %1946 = vmatpush1.msra.mxu0 0.0
        %1947 = vmatprep.subr.mxu0 0.0
        %1948 = vmatpush1.msra.mxu0 0.0
        %1949 = vmatprep.mubr.f32.mxu0 0.0
        %1950 = vmatmul.mubr.f32.gmra.mrb[0].mxu0 %v1883
        %v1951 = vpop.f32.mrb[0].mxu0
        %v1952 = vadd.f32 0.0, %v1951
        %v1953 = vpop.f32.mrb[0].mxu0
        %1954 = vdwg.mxu0
        %1956 = vrot.lane.b32.xlu0 %v1952, 8
        %v1957 = vpop.permute.xlu0 %1956
        %1959 = vst.msk [vmem:[#allocation3 + $0x8] sm:$0xff] %vm1277, %v1957
        %1960 = vrot.lane.b32.xlu0 %v937, 112
        %v1961 = vpop.permute.xlu0 %1960
        %1962 = vrot.lane.b32.xlu0 %v937, 80
        %v1963 = vpop.permute.xlu0 %1962
        %v1964 = vsel %vm943, %v1961, 0
        %v1966 = vsel %vm943, %v1963, 0
        %1968 = vmatprep.subr.mxu0 0.0
        %1969 = vmatpush1.xpose.msra.mxu0 %v1966
        %1970 = vmatprep.subr.mxu0 0.0
        %1971 = vmatpush1.xpose.msra.mxu0 0.0
        %1972 = vmatprep.subr.mxu0 0.0
        %1973 = vmatpush1.xpose.msra.mxu0 0.0
        %1974 = vmatprep.subr.mxu0 0.0
        %1975 = vmatpush1.xpose.msra.mxu0 0.0
        %1976 = vmatprep.subr.mxu0 0.0
        %1977 = vmatpush1.xpose.msra.mxu0 0.0
        %1978 = vmatprep.subr.mxu0 0.0
        %1979 = vmatpush1.xpose.msra.mxu0 0.0
        %1980 = vmatprep.subr.mxu0 0.0
        %1981 = vmatpush1.xpose.msra.mxu0 0.0
        %1982 = vmatprep.subr.mxu0 0.0
        %1983 = vmatpush1.xpose.msra.mxu0 0.0
        %1984 = vmatprep.subr.mxu0 0.0
        %1985 = vmatpush1.xpose.msra.mxu0 0.0
        %1986 = vmatprep.subr.mxu0 0.0
        %1987 = vmatpush1.xpose.msra.mxu0 0.0
        %1988 = vmatprep.subr.mxu0 0.0
        %1989 = vmatpush1.xpose.msra.mxu0 0.0
        %1990 = vmatprep.subr.mxu0 0.0
        %1991 = vmatpush1.xpose.msra.mxu0 0.0
        %1992 = vmatprep.subr.mxu0 0.0
        %1993 = vmatpush1.xpose.msra.mxu0 0.0
        %1994 = vmatprep.subr.mxu0 0.0
        %1995 = vmatpush1.xpose.msra.mxu0 0.0
        %1996 = vmatprep.subr.mxu0 0.0
        %1997 = vmatpush1.xpose.msra.mxu0 0.0
        %1998 = vmatprep.subr.mxu0 0.0
        %1999 = vmatpush1.xpose.msra.mxu0 0.0
        %2000 = vmatprep.subr.mxu0 0.0
        %2001 = vmatpush1.xpose.msra.mxu0 0.0
        %2002 = vmatprep.subr.mxu0 0.0
        %2003 = vmatpush1.xpose.msra.mxu0 0.0
        %2004 = vmatprep.subr.mxu0 0.0
        %2005 = vmatpush1.xpose.msra.mxu0 0.0
        %2006 = vmatprep.subr.mxu0 0.0
        %2007 = vmatpush1.xpose.msra.mxu0 0.0
        %2008 = vmatprep.subr.mxu0 0.0
        %2009 = vmatpush1.xpose.msra.mxu0 0.0
        %2010 = vmatprep.subr.mxu0 0.0
        %2011 = vmatpush1.xpose.msra.mxu0 0.0
        %2012 = vmatprep.subr.mxu0 0.0
        %2013 = vmatpush1.xpose.msra.mxu0 0.0
        %2014 = vmatprep.subr.mxu0 0.0
        %2015 = vmatpush1.xpose.msra.mxu0 0.0
        %2016 = vmatprep.subr.mxu0 0.0
        %2017 = vmatpush1.xpose.msra.mxu0 0.0
        %2018 = vmatprep.subr.mxu0 0.0
        %2019 = vmatpush1.xpose.msra.mxu0 0.0
        %2020 = vmatprep.subr.mxu0 0.0
        %2021 = vmatpush1.xpose.msra.mxu0 0.0
        %2022 = vmatprep.subr.mxu0 0.0
        %2023 = vmatpush1.xpose.msra.mxu0 0.0
        %2024 = vmatprep.subr.mxu0 0.0
        %2025 = vmatpush1.xpose.msra.mxu0 0.0
        %2026 = vmatprep.subr.mxu0 0.0
        %2027 = vmatpush1.xpose.msra.mxu0 0.0
        %2028 = vmatprep.subr.mxu0 0.0
        %2029 = vmatpush1.xpose.msra.mxu0 0.0
        %2030 = vmatprep.subr.mxu0 0.0
        %2031 = vmatpush1.xpose.msra.mxu0 0.0
        %2032 = vmatprep.mubr.f32.mxu0 0.0
        %2033 = vmatmul.mubr.f32.gmra.mrb[0].mxu0 %v1964
        %v2034 = vpop.f32.mrb[0].mxu0
        %v2035 = vadd.f32 0.0, %v2034
        %v2036 = vpop.f32.mrb[0].mxu0
        %2037 = vdwg.mxu0
        %v2038 = vmul.f32 %v2035, 0.17677669
        %v2039 = vsel %vm943, %v2038, -inf
        %2040 = vmax.xlane.f32.xlu0 %v2039
        %v2041 = vpop.xlane.xlu0 %2040
        %v2042 = vsub.f32 %v2038, %v2041
        %v2043 = vmul.f32 %v2042, 1.442695
        %v2044 = vpow.pop %v2043
        %v2045 = vsel %vm943, %v2044, 0.0
        %2046 = vadd.xlane.f32.xlu0 %v2045
        %v2047 = vpop.xlane.xlu0 %2046
        %v2048 = vrcp.pop %v2047
        %v2049 = vmul.f32 %v2044, %v2048
        %2050 = vrot.lane.b32.xlu0 %v937, 48
        %v2051 = vpop.permute.xlu0 %2050
        %v2054 = vsel %vm943, %v2049, 0
        %2056 = vmatprep.subr.mxu0 0.0
        %2057 = vmatpush1.msra.mxu0 %v2051
        %2058 = vmatprep.subr.mxu0 0.0
        %2059 = vmatpush1.msra.mxu0 0.0
        %2060 = vmatprep.subr.mxu0 0.0
        %2061 = vmatpush1.msra.mxu0 0.0
        %2062 = vmatprep.subr.mxu0 0.0
        %2063 = vmatpush1.msra.mxu0 0.0
        %2064 = vmatprep.subr.mxu0 0.0
        %2065 = vmatpush1.msra.mxu0 0.0
        %2066 = vmatprep.subr.mxu0 0.0
        %2067 = vmatpush1.msra.mxu0 0.0
        %2068 = vmatprep.subr.mxu0 0.0
        %2069 = vmatpush1.msra.mxu0 0.0
        %2070 = vmatprep.subr.mxu0 0.0
        %2071 = vmatpush1.msra.mxu0 0.0
        %2072 = vmatprep.subr.mxu0 0.0
        %2073 = vmatpush1.msra.mxu0 0.0
        %2074 = vmatprep.subr.mxu0 0.0
        %2075 = vmatpush1.msra.mxu0 0.0
        %2076 = vmatprep.subr.mxu0 0.0
        %2077 = vmatpush1.msra.mxu0 0.0
        %2078 = vmatprep.subr.mxu0 0.0
        %2079 = vmatpush1.msra.mxu0 0.0
        %2080 = vmatprep.subr.mxu0 0.0
        %2081 = vmatpush1.msra.mxu0 0.0
        %2082 = vmatprep.subr.mxu0 0.0
        %2083 = vmatpush1.msra.mxu0 0.0
        %2084 = vmatprep.subr.mxu0 0.0
        %2085 = vmatpush1.msra.mxu0 0.0
        %2086 = vmatprep.subr.mxu0 0.0
        %2087 = vmatpush1.msra.mxu0 0.0
        %2088 = vmatprep.subr.mxu0 0.0
        %2089 = vmatpush1.msra.mxu0 0.0
        %2090 = vmatprep.subr.mxu0 0.0
        %2091 = vmatpush1.msra.mxu0 0.0
        %2092 = vmatprep.subr.mxu0 0.0
        %2093 = vmatpush1.msra.mxu0 0.0
        %2094 = vmatprep.subr.mxu0 0.0
        %2095 = vmatpush1.msra.mxu0 0.0
        %2096 = vmatprep.subr.mxu0 0.0
        %2097 = vmatpush1.msra.mxu0 0.0
        %2098 = vmatprep.subr.mxu0 0.0
        %2099 = vmatpush1.msra.mxu0 0.0
        %2100 = vmatprep.subr.mxu0 0.0
        %2101 = vmatpush1.msra.mxu0 0.0
        %2102 = vmatprep.subr.mxu0 0.0
        %2103 = vmatpush1.msra.mxu0 0.0
        %2104 = vmatprep.subr.mxu0 0.0
        %2105 = vmatpush1.msra.mxu0 0.0
        %2106 = vmatprep.subr.mxu0 0.0
        %2107 = vmatpush1.msra.mxu0 0.0
        %2108 = vmatprep.subr.mxu0 0.0
        %2109 = vmatpush1.msra.mxu0 0.0
        %2110 = vmatprep.subr.mxu0 0.0
        %2111 = vmatpush1.msra.mxu0 0.0
        %2112 = vmatprep.subr.mxu0 0.0
        %2113 = vmatpush1.msra.mxu0 0.0
        %2114 = vmatprep.subr.mxu0 0.0
        %2115 = vmatpush1.msra.mxu0 0.0
        %2116 = vmatprep.subr.mxu0 0.0
        %2117 = vmatpush1.msra.mxu0 0.0
        %2118 = vmatprep.subr.mxu0 0.0
        %2119 = vmatpush1.msra.mxu0 0.0
        %2120 = vmatprep.mubr.f32.mxu0 0.0
        %2121 = vmatmul.mubr.f32.gmra.mrb[0].mxu0 %v2054
        %v2122 = vpop.f32.mrb[0].mxu0
        %v2123 = vadd.f32 0.0, %v2122
        %v2124 = vpop.f32.mrb[0].mxu0
        %2125 = vdwg.mxu0
        %2127 = vrot.lane.b32.xlu0 %v2123, 16
        %v2128 = vpop.permute.xlu0 %2127
        %2130 = vst.msk [vmem:[#allocation3 + $0x8] sm:$0xff] %vm1449, %v2128
        %2131 = vrot.lane.b32.xlu0 %v937, 104
        %v2132 = vpop.permute.xlu0 %2131
        %2133 = vrot.lane.b32.xlu0 %v937, 72
        %v2134 = vpop.permute.xlu0 %2133
        %v2135 = vsel %vm943, %v2132, 0
        %v2137 = vsel %vm943, %v2134, 0
        %2139 = vmatprep.subr.mxu0 0.0
        %2140 = vmatpush1.xpose.msra.mxu0 %v2137
        %2141 = vmatprep.subr.mxu0 0.0
        %2142 = vmatpush1.xpose.msra.mxu0 0.0
        %2143 = vmatprep.subr.mxu0 0.0
        %2144 = vmatpush1.xpose.msra.mxu0 0.0
        %2145 = vmatprep.subr.mxu0 0.0
        %2146 = vmatpush1.xpose.msra.mxu0 0.0
        %2147 = vmatprep.subr.mxu0 0.0
        %2148 = vmatpush1.xpose.msra.mxu0 0.0
        %2149 = vmatprep.subr.mxu0 0.0
        %2150 = vmatpush1.xpose.msra.mxu0 0.0
        %2151 = vmatprep.subr.mxu0 0.0
        %2152 = vmatpush1.xpose.msra.mxu0 0.0
        %2153 = vmatprep.subr.mxu0 0.0
        %2154 = vmatpush1.xpose.msra.mxu0 0.0
        %2155 = vmatprep.subr.mxu0 0.0
        %2156 = vmatpush1.xpose.msra.mxu0 0.0
        %2157 = vmatprep.subr.mxu0 0.0
        %2158 = vmatpush1.xpose.msra.mxu0 0.0
        %2159 = vmatprep.subr.mxu0 0.0
        %2160 = vmatpush1.xpose.msra.mxu0 0.0
        %2161 = vmatprep.subr.mxu0 0.0
        %2162 = vmatpush1.xpose.msra.mxu0 0.0
        %2163 = vmatprep.subr.mxu0 0.0
        %2164 = vmatpush1.xpose.msra.mxu0 0.0
        %2165 = vmatprep.subr.mxu0 0.0
        %2166 = vmatpush1.xpose.msra.mxu0 0.0
        %2167 = vmatprep.subr.mxu0 0.0
        %2168 = vmatpush1.xpose.msra.mxu0 0.0
        %2169 = vmatprep.subr.mxu0 0.0
        %2170 = vmatpush1.xpose.msra.mxu0 0.0
        %2171 = vmatprep.subr.mxu0 0.0
        %2172 = vmatpush1.xpose.msra.mxu0 0.0
        %2173 = vmatprep.subr.mxu0 0.0
        %2174 = vmatpush1.xpose.msra.mxu0 0.0
        %2175 = vmatprep.subr.mxu0 0.0
        %2176 = vmatpush1.xpose.msra.mxu0 0.0
        %2177 = vmatprep.subr.mxu0 0.0
        %2178 = vmatpush1.xpose.msra.mxu0 0.0
        %2179 = vmatprep.subr.mxu0 0.0
        %2180 = vmatpush1.xpose.msra.mxu0 0.0
        %2181 = vmatprep.subr.mxu0 0.0
        %2182 = vmatpush1.xpose.msra.mxu0 0.0
        %2183 = vmatprep.subr.mxu0 0.0
        %2184 = vmatpush1.xpose.msra.mxu0 0.0
        %2185 = vmatprep.subr.mxu0 0.0
        %2186 = vmatpush1.xpose.msra.mxu0 0.0
        %2187 = vmatprep.subr.mxu0 0.0
        %2188 = vmatpush1.xpose.msra.mxu0 0.0
        %2189 = vmatprep.subr.mxu0 0.0
        %2190 = vmatpush1.xpose.msra.mxu0 0.0
        %2191 = vmatprep.subr.mxu0 0.0
        %2192 = vmatpush1.xpose.msra.mxu0 0.0
        %2193 = vmatprep.subr.mxu0 0.0
        %2194 = vmatpush1.xpose.msra.mxu0 0.0
        %2195 = vmatprep.subr.mxu0 0.0
        %2196 = vmatpush1.xpose.msra.mxu0 0.0
        %2197 = vmatprep.subr.mxu0 0.0
        %2198 = vmatpush1.xpose.msra.mxu0 0.0
        %2199 = vmatprep.subr.mxu0 0.0
        %2200 = vmatpush1.xpose.msra.mxu0 0.0
        %2201 = vmatprep.subr.mxu0 0.0
        %2202 = vmatpush1.xpose.msra.mxu0 0.0
        %2203 = vmatprep.mubr.f32.mxu0 0.0
        %2204 = vmatmul.mubr.f32.gmra.mrb[0].mxu0 %v2135
        %v2205 = vpop.f32.mrb[0].mxu0
        %v2206 = vadd.f32 0.0, %v2205
        %v2207 = vpop.f32.mrb[0].mxu0
        %2208 = vdwg.mxu0
        %v2209 = vmul.f32 %v2206, 0.17677669
        %v2210 = vsel %vm943, %v2209, -inf
        %2211 = vmax.xlane.f32.xlu0 %v2210
        %v2212 = vpop.xlane.xlu0 %2211
        %v2213 = vsub.f32 %v2209, %v2212
        %v2214 = vmul.f32 %v2213, 1.442695
        %v2215 = vpow.pop %v2214
        %v2216 = vsel %vm943, %v2215, 0.0
        %2217 = vadd.xlane.f32.xlu0 %v2216
        %v2218 = vpop.xlane.xlu0 %2217
        %v2219 = vrcp.pop %v2218
        %v2220 = vmul.f32 %v2215, %v2219
        %2221 = vrot.lane.b32.xlu0 %v937, 40
        %v2222 = vpop.permute.xlu0 %2221
        %v2225 = vsel %vm943, %v2220, 0
        %2227 = vmatprep.subr.mxu0 0.0
        %2228 = vmatpush1.msra.mxu0 %v2222
        %2229 = vmatprep.subr.mxu0 0.0
        %2230 = vmatpush1.msra.mxu0 0.0
        %2231 = vmatprep.subr.mxu0 0.0
        %2232 = vmatpush1.msra.mxu0 0.0
        %2233 = vmatprep.subr.mxu0 0.0
        %2234 = vmatpush1.msra.mxu0 0.0
        %2235 = vmatprep.subr.mxu0 0.0
        %2236 = vmatpush1.msra.mxu0 0.0
        %2237 = vmatprep.subr.mxu0 0.0
        %2238 = vmatpush1.msra.mxu0 0.0
        %2239 = vmatprep.subr.mxu0 0.0
        %2240 = vmatpush1.msra.mxu0 0.0
        %2241 = vmatprep.subr.mxu0 0.0
        %2242 = vmatpush1.msra.mxu0 0.0
        %2243 = vmatprep.subr.mxu0 0.0
        %2244 = vmatpush1.msra.mxu0 0.0
        %2245 = vmatprep.subr.mxu0 0.0
        %2246 = vmatpush1.msra.mxu0 0.0
        %2247 = vmatprep.subr.mxu0 0.0
        %2248 = vmatpush1.msra.mxu0 0.0
        %2249 = vmatprep.subr.mxu0 0.0
        %2250 = vmatpush1.msra.mxu0 0.0
        %2251 = vmatprep.subr.mxu0 0.0
        %2252 = vmatpush1.msra.mxu0 0.0
        %2253 = vmatprep.subr.mxu0 0.0
        %2254 = vmatpush1.msra.mxu0 0.0
        %2255 = vmatprep.subr.mxu0 0.0
        %2256 = vmatpush1.msra.mxu0 0.0
        %2257 = vmatprep.subr.mxu0 0.0
        %2258 = vmatpush1.msra.mxu0 0.0
        %2259 = vmatprep.subr.mxu0 0.0
        %2260 = vmatpush1.msra.mxu0 0.0
        %2261 = vmatprep.subr.mxu0 0.0
        %2262 = vmatpush1.msra.mxu0 0.0
        %2263 = vmatprep.subr.mxu0 0.0
        %2264 = vmatpush1.msra.mxu0 0.0
        %2265 = vmatprep.subr.mxu0 0.0
        %2266 = vmatpush1.msra.mxu0 0.0
        %2267 = vmatprep.subr.mxu0 0.0
        %2268 = vmatpush1.msra.mxu0 0.0
        %2269 = vmatprep.subr.mxu0 0.0
        %2270 = vmatpush1.msra.mxu0 0.0
        %2271 = vmatprep.subr.mxu0 0.0
        %2272 = vmatpush1.msra.mxu0 0.0
        %2273 = vmatprep.subr.mxu0 0.0
        %2274 = vmatpush1.msra.mxu0 0.0
        %2275 = vmatprep.subr.mxu0 0.0
        %2276 = vmatpush1.msra.mxu0 0.0
        %2277 = vmatprep.subr.mxu0 0.0
        %2278 = vmatpush1.msra.mxu0 0.0
        %2279 = vmatprep.subr.mxu0 0.0
        %2280 = vmatpush1.msra.mxu0 0.0
        %2281 = vmatprep.subr.mxu0 0.0
        %2282 = vmatpush1.msra.mxu0 0.0
        %2283 = vmatprep.subr.mxu0 0.0
        %2284 = vmatpush1.msra.mxu0 0.0
        %2285 = vmatprep.subr.mxu0 0.0
        %2286 = vmatpush1.msra.mxu0 0.0
        %2287 = vmatprep.subr.mxu0 0.0
        %2288 = vmatpush1.msra.mxu0 0.0
        %2289 = vmatprep.subr.mxu0 0.0
        %2290 = vmatpush1.msra.mxu0 0.0
        %2291 = vmatprep.mubr.f32.mxu0 0.0
        %2292 = vmatmul.mubr.f32.gmra.mrb[0].mxu0 %v2225
        %v2293 = vpop.f32.mrb[0].mxu0
        %v2294 = vadd.f32 0.0, %v2293
        %v2295 = vpop.f32.mrb[0].mxu0
        %2296 = vdwg.mxu0
        %2298 = vrot.lane.b32.xlu0 %v2294, 24
        %v2299 = vpop.permute.xlu0 %2298
        %2301 = vst.msk [vmem:[#allocation3 + $0x8] sm:$0xff] %vm1621, %v2299
        %v2302 = vld [vmem:[#allocation3] sm:$0xff]
        %v2303 = vld [vmem:[#allocation3 + $0x8] sm:$0xff]
        %v2304 = vld [vmem:[%s677] sm:$0xff]
        %v2305 = vld [vmem:[%s677 + $0x8] sm:$0xff]
        %v2306 = vld [vmem:[%s677 + $0x10] sm:$0xff]
        %v2307 = vld [vmem:[%s677 + $0x18] sm:$0xff]
        %v2308 = vld [vmem:[%s685] sm:$0x1]
        %v2310 = vlaneseq
        %v2311 = vshrl.u32 %v2310, 7
        %v2312 = vsub.s32 0, %v2311
        %v2313 = vrot.slane %v2308, %v2312
        %v2316 = vsel %vm858, %v2302, 0
        %v2319 = vsel %vm858, %v2303, 0
        %2321 = vmatprep.subr.mxu0 0.0
        %2322 = vmatpush1.msra.mxu0 %v2304
        %2323 = vmatprep.subr.mxu0 0.0
        %2324 = vmatpush1.msra.mxu0 %v2305
        %2325 = vmatprep.subr.mxu0 0.0
        %2326 = vmatpush1.msra.mxu0 %v2306
        %2327 = vmatprep.subr.mxu0 0.0
        %2328 = vmatpush1.msra.mxu0 %v2307
        %2329 = vmatprep.subr.mxu0 0.0
        %2330 = vmatpush1.msra.mxu0 0.0
        %2331 = vmatprep.subr.mxu0 0.0
        %2332 = vmatpush1.msra.mxu0 0.0
        %2333 = vmatprep.subr.mxu0 0.0
        %2334 = vmatpush1.msra.mxu0 0.0
        %2335 = vmatprep.subr.mxu0 0.0
        %2336 = vmatpush1.msra.mxu0 0.0
        %2337 = vmatprep.subr.mxu0 0.0
        %2338 = vmatpush1.msra.mxu0 0.0
        %2339 = vmatprep.subr.mxu0 0.0
        %2340 = vmatpush1.msra.mxu0 0.0
        %2341 = vmatprep.subr.mxu0 0.0
        %2342 = vmatpush1.msra.mxu0 0.0
        %2343 = vmatprep.subr.mxu0 0.0
        %2344 = vmatpush1.msra.mxu0 0.0
        %2345 = vmatprep.subr.mxu0 0.0
        %2346 = vmatpush1.msra.mxu0 0.0
        %2347 = vmatprep.subr.mxu0 0.0
        %2348 = vmatpush1.msra.mxu0 0.0
        %2349 = vmatprep.subr.mxu0 0.0
        %2350 = vmatpush1.msra.mxu0 0.0
        %2351 = vmatprep.subr.mxu0 0.0
        %2352 = vmatpush1.msra.mxu0 0.0
        %2353 = vmatprep.subr.mxu0 0.0
        %2354 = vmatpush1.msra.mxu0 0.0
        %2355 = vmatprep.subr.mxu0 0.0
        %2356 = vmatpush1.msra.mxu0 0.0
        %2357 = vmatprep.subr.mxu0 0.0
        %2358 = vmatpush1.msra.mxu0 0.0
        %2359 = vmatprep.subr.mxu0 0.0
        %2360 = vmatpush1.msra.mxu0 0.0
        %2361 = vmatprep.subr.mxu0 0.0
        %2362 = vmatpush1.msra.mxu0 0.0
        %2363 = vmatprep.subr.mxu0 0.0
        %2364 = vmatpush1.msra.mxu0 0.0
        %2365 = vmatprep.subr.mxu0 0.0
        %2366 = vmatpush1.msra.mxu0 0.0
        %2367 = vmatprep.subr.mxu0 0.0
        %2368 = vmatpush1.msra.mxu0 0.0
        %2369 = vmatprep.subr.mxu0 0.0
        %2370 = vmatpush1.msra.mxu0 0.0
        %2371 = vmatprep.subr.mxu0 0.0
        %2372 = vmatpush1.msra.mxu0 0.0
        %2373 = vmatprep.subr.mxu0 0.0
        %2374 = vmatpush1.msra.mxu0 0.0
        %2375 = vmatprep.subr.mxu0 0.0
        %2376 = vmatpush1.msra.mxu0 0.0
        %2377 = vmatprep.subr.mxu0 0.0
        %2378 = vmatpush1.msra.mxu0 0.0
        %2379 = vmatprep.subr.mxu0 0.0
        %2380 = vmatpush1.msra.mxu0 0.0
        %2381 = vmatprep.subr.mxu0 0.0
        %2382 = vmatpush1.msra.mxu0 0.0
        %2383 = vmatprep.subr.mxu0 0.0
        %2384 = vmatpush1.msra.mxu0 0.0
        %2385 = vmatprep.mubr.f32.mxu0 0.0
        %2386 = vmatmul.mubr.f32.gmra.mrb[0].mxu0 %v2316
        %v2387 = vpop.f32.mrb[0].mxu0
        %v2388 = vadd.f32 %v2313, %v2387
        %v2389 = vpop.f32.mrb[0].mxu0
        %2390 = vmatprep.mubr.f32.mxu0 0.0
        %2391 = vmatmul.mubr.f32.gmra.mrb[0].mxu0 %v2319
        %v2392 = vpop.f32.mrb[0].mxu0
        %v2393 = vadd.f32 %v2313, %v2392
        %v2394 = vpop.f32.mrb[0].mxu0
        %2395 = vdwg.mxu0
        %v2396 = vadd.f32 %v845, %v2388
        %v2397 = vadd.f32 %v846, %v2393
        %v2398 = vsel %vm858, %v2396, 0.0
        %2399 = vadd.xlane.f32.xlu0 %v2398
        %v2400 = vpop.xlane.xlu0 %2399
        %v2401 = vsel %vm858, %v2397, 0.0
        %2402 = vadd.xlane.f32.xlu0 %v2401
        %v2403 = vpop.xlane.xlu0 %2402
        %v2404 = vrcp.pop 32.0
        %v2405 = vmul.f32 %v2400, %v2404
        %v2406 = vmul.f32 %v2403, %v2404
        %v2407 = vsub.f32 %v2396, %v2405
        %v2408 = vsub.f32 %v2397, %v2406
        %v2409 = vmul.f32 %v2407, %v2407
        %v2410 = vmul.f32 %v2408, %v2408
        %v2411 = vsel %vm858, %v2409, 0.0
        %2412 = vadd.xlane.f32.xlu0 %v2411
        %v2413 = vpop.xlane.xlu0 %2412
        %v2414 = vsel %vm858, %v2410, 0.0
        %2415 = vadd.xlane.f32.xlu0 %v2414
        %v2416 = vpop.xlane.xlu0 %2415
        %v2417 = vmul.f32 %v2413, %v2404
        %v2418 = vmul.f32 %v2416, %v2404
        %v2419 = vadd.f32 %v2417, 1e-05
        %v2420 = vadd.f32 %v2418, 1e-05
        %v2421 = vrsqrt.pop %v2419
        %v2422 = vrsqrt.pop %v2420
        %v2423 = vmul.f32 %v2407, %v2421
        %v2424 = vmul.f32 %v2408, %v2422
        %v2425 = vld [vmem:[%s693] sm:$0x1]
        %v2427 = vlaneseq
        %v2428 = vshrl.u32 %v2427, 7
        %v2429 = vsub.s32 0, %v2428
        %v2430 = vrot.slane %v2425, %v2429
        %v2432 = vmul.f32 %v2423, %v2430
        %v2433 = vmul.f32 %v2424, %v2430
        %v2434 = vld [vmem:[%s701] sm:$0x1]
        %v2436 = vlaneseq
        %v2437 = vshrl.u32 %v2436, 7
        %v2438 = vsub.s32 0, %v2437
        %v2439 = vrot.slane %v2434, %v2438
        %v2441 = vadd.f32 %v2432, %v2439
        %v2442 = vadd.f32 %v2433, %v2439
        %v2443 = vld [vmem:[%s710] sm:$0xff]
        %v2444 = vld [vmem:[%s710 + $0x8] sm:$0xff]
        %v2445 = vld [vmem:[%s710 + $0x10] sm:$0xff]
        %v2446 = vld [vmem:[%s710 + $0x18] sm:$0xff]
        %v2447 = vld [vmem:[%s718] sm:$0x1]
        %v2449 = vlaneseq
        %v2450 = vshrl.u32 %v2449, 7
        %v2451 = vsub.s32 0, %v2450
        %v2452 = vrot.slane %v2447, %v2451
        %v2455 = vsel %vm858, %v2441, 0
        %v2458 = vsel %vm858, %v2442, 0
        %2460 = vmatprep.subr.mxu0 0.0
        %2461 = vmatpush1.msra.mxu0 %v2443
        %2462 = vmatprep.subr.mxu0 0.0
        %2463 = vmatpush1.msra.mxu0 %v2444
        %2464 = vmatprep.subr.mxu0 0.0
        %2465 = vmatpush1.msra.mxu0 %v2445
        %2466 = vmatprep.subr.mxu0 0.0
        %2467 = vmatpush1.msra.mxu0 %v2446
        %2468 = vmatprep.subr.mxu0 0.0
        %2469 = vmatpush1.msra.mxu0 0.0
        %2470 = vmatprep.subr.mxu0 0.0
        %2471 = vmatpush1.msra.mxu0 0.0
        %2472 = vmatprep.subr.mxu0 0.0
        %2473 = vmatpush1.msra.mxu0 0.0
        %2474 = vmatprep.subr.mxu0 0.0
        %2475 = vmatpush1.msra.mxu0 0.0
        %2476 = vmatprep.subr.mxu0 0.0
        %2477 = vmatpush1.msra.mxu0 0.0
        %2478 = vmatprep.subr.mxu0 0.0
        %2479 = vmatpush1.msra.mxu0 0.0
        %2480 = vmatprep.subr.mxu0 0.0
        %2481 = vmatpush1.msra.mxu0 0.0
        %2482 = vmatprep.subr.mxu0 0.0
        %2483 = vmatpush1.msra.mxu0 0.0
        %2484 = vmatprep.subr.mxu0 0.0
        %2485 = vmatpush1.msra.mxu0 0.0
        %2486 = vmatprep.subr.mxu0 0.0
        %2487 = vmatpush1.msra.mxu0 0.0
        %2488 = vmatprep.subr.mxu0 0.0
        %2489 = vmatpush1.msra.mxu0 0.0
        %2490 = vmatprep.subr.mxu0 0.0
        %2491 = vmatpush1.msra.mxu0 0.0
        %2492 = vmatprep.subr.mxu0 0.0
        %2493 = vmatpush1.msra.mxu0 0.0
        %2494 = vmatprep.subr.mxu0 0.0
        %2495 = vmatpush1.msra.mxu0 0.0
        %2496 = vmatprep.subr.mxu0 0.0
        %2497 = vmatpush1.msra.mxu0 0.0
        %2498 = vmatprep.subr.mxu0 0.0
        %2499 = vmatpush1.msra.mxu0 0.0
        %2500 = vmatprep.subr.mxu0 0.0
        %2501 = vmatpush1.msra.mxu0 0.0
        %2502 = vmatprep.subr.mxu0 0.0
        %2503 = vmatpush1.msra.mxu0 0.0
        %2504 = vmatprep.subr.mxu0 0.0
        %2505 = vmatpush1.msra.mxu0 0.0
        %2506 = vmatprep.subr.mxu0 0.0
        %2507 = vmatpush1.msra.mxu0 0.0
        %2508 = vmatprep.subr.mxu0 0.0
        %2509 = vmatpush1.msra.mxu0 0.0
        %2510 = vmatprep.subr.mxu0 0.0
        %2511 = vmatpush1.msra.mxu0 0.0
        %2512 = vmatprep.subr.mxu0 0.0
        %2513 = vmatpush1.msra.mxu0 0.0
        %2514 = vmatprep.subr.mxu0 0.0
        %2515 = vmatpush1.msra.mxu0 0.0
        %2516 = vmatprep.subr.mxu0 0.0
        %2517 = vmatpush1.msra.mxu0 0.0
        %2518 = vmatprep.subr.mxu0 0.0
        %2519 = vmatpush1.msra.mxu0 0.0
        %2520 = vmatprep.subr.mxu0 0.0
        %2521 = vmatpush1.msra.mxu0 0.0
        %2522 = vmatprep.subr.mxu0 0.0
        %2523 = vmatpush1.msra.mxu0 0.0
        %2524 = vmatprep.mubr.f32.mxu0 0.0
        %2525 = vmatmul.mubr.f32.gmra.mrb[0].mxu0 %v2455
        %v2526 = vpop.f32.mrb[0].mxu0
        %v2527 = vadd.f32 %v2452, %v2526
        %v2528 = vpop.f32.mrb[0].mxu0
        %2529 = vmatprep.mubr.f32.mxu0 0.0
        %2530 = vmatmul.mubr.f32.gmra.mrb[0].mxu0 %v2458
        %v2531 = vpop.f32.mrb[0].mxu0
        %v2532 = vadd.f32 %v2452, %v2531
        %v2533 = vpop.f32.mrb[0].mxu0
        %2534 = vdwg.mxu0
        %v2535 = vmax.f32 %v2527, 0.0
        %v2536 = vmax.f32 %v2532, 0.0
        %v2537 = vld [vmem:[%s727] sm:$0xff]
        %v2538 = vld [vmem:[%s727 + $0x8] sm:$0xff]
        %v2539 = vld [vmem:[%s727 + $0x10] sm:$0xff]
        %v2540 = vld [vmem:[%s727 + $0x18] sm:$0xff]
        %v2541 = vld [vmem:[%s727 + $0x20] sm:$0xff]
        %v2542 = vld [vmem:[%s727 + $0x28] sm:$0xff]
        %v2543 = vld [vmem:[%s727 + $0x30] sm:$0xff]
        %v2544 = vld [vmem:[%s727 + $0x38] sm:$0xff]
        %v2545 = vld [vmem:[%s735] sm:$0x1]
        %v2547 = vlaneseq
        %v2548 = vshrl.u32 %v2547, 7
        %v2549 = vsub.s32 0, %v2548
        %v2550 = vrot.slane %v2545, %v2549
        %vm2552 = vcmask 523264
        %v2554 = vsel %vm2552, %v2535, 0
        %v2557 = vsel %vm2552, %v2536, 0
        %2559 = vmatprep.subr.mxu0 0.0
        %2560 = vmatpush1.msra.mxu0 %v2537
        %2561 = vmatprep.subr.mxu0 0.0
        %2562 = vmatpush1.msra.mxu0 %v2538
        %2563 = vmatprep.subr.mxu0 0.0
        %2564 = vmatpush1.msra.mxu0 %v2539
        %2565 = vmatprep.subr.mxu0 0.0
        %2566 = vmatpush1.msra.mxu0 %v2540
        %2567 = vmatprep.subr.mxu0 0.0
        %2568 = vmatpush1.msra.mxu0 %v2541
        %2569 = vmatprep.subr.mxu0 0.0
        %2570 = vmatpush1.msra.mxu0 %v2542
        %2571 = vmatprep.subr.mxu0 0.0
        %2572 = vmatpush1.msra.mxu0 %v2543
        %2573 = vmatprep.subr.mxu0 0.0
        %2574 = vmatpush1.msra.mxu0 %v2544
        %2575 = vmatprep.subr.mxu0 0.0
        %2576 = vmatpush1.msra.mxu0 0.0
        %2577 = vmatprep.subr.mxu0 0.0
        %2578 = vmatpush1.msra.mxu0 0.0
        %2579 = vmatprep.subr.mxu0 0.0
        %2580 = vmatpush1.msra.mxu0 0.0
        %2581 = vmatprep.subr.mxu0 0.0
        %2582 = vmatpush1.msra.mxu0 0.0
        %2583 = vmatprep.subr.mxu0 0.0
        %2584 = vmatpush1.msra.mxu0 0.0
        %2585 = vmatprep.subr.mxu0 0.0
        %2586 = vmatpush1.msra.mxu0 0.0
        %2587 = vmatprep.subr.mxu0 0.0
        %2588 = vmatpush1.msra.mxu0 0.0
        %2589 = vmatprep.subr.mxu0 0.0
        %2590 = vmatpush1.msra.mxu0 0.0
        %2591 = vmatprep.subr.mxu0 0.0
        %2592 = vmatpush1.msra.mxu0 0.0
        %2593 = vmatprep.subr.mxu0 0.0
        %2594 = vmatpush1.msra.mxu0 0.0
        %2595 = vmatprep.subr.mxu0 0.0
        %2596 = vmatpush1.msra.mxu0 0.0
        %2597 = vmatprep.subr.mxu0 0.0
        %2598 = vmatpush1.msra.mxu0 0.0
        %2599 = vmatprep.subr.mxu0 0.0
        %2600 = vmatpush1.msra.mxu0 0.0
        %2601 = vmatprep.subr.mxu0 0.0
        %2602 = vmatpush1.msra.mxu0 0.0
        %2603 = vmatprep.subr.mxu0 0.0
        %2604 = vmatpush1.msra.mxu0 0.0
        %2605 = vmatprep.subr.mxu0 0.0
        %2606 = vmatpush1.msra.mxu0 0.0
        %2607 = vmatprep.subr.mxu0 0.0
        %2608 = vmatpush1.msra.mxu0 0.0
        %2609 = vmatprep.subr.mxu0 0.0
        %2610 = vmatpush1.msra.mxu0 0.0
        %2611 = vmatprep.subr.mxu0 0.0
        %2612 = vmatpush1.msra.mxu0 0.0
        %2613 = vmatprep.subr.mxu0 0.0
        %2614 = vmatpush1.msra.mxu0 0.0
        %2615 = vmatprep.subr.mxu0 0.0
        %2616 = vmatpush1.msra.mxu0 0.0
        %2617 = vmatprep.subr.mxu0 0.0
        %2618 = vmatpush1.msra.mxu0 0.0
        %2619 = vmatprep.subr.mxu0 0.0
        %2620 = vmatpush1.msra.mxu0 0.0
        %2621 = vmatprep.subr.mxu0 0.0
        %2622 = vmatpush1.msra.mxu0 0.0
        %2623 = vmatprep.mubr.f32.mxu0 0.0
        %2624 = vmatmul.mubr.f32.gmra.mrb[0].mxu0 %v2554
        %v2625 = vpop.f32.mrb[0].mxu0
        %v2626 = vadd.f32 %v2550, %v2625
        %v2627 = vpop.f32.mrb[0].mxu0
        %2628 = vmatprep.mubr.f32.mxu0 0.0
        %2629 = vmatmul.mubr.f32.gmra.mrb[0].mxu0 %v2557
        %v2630 = vpop.f32.mrb[0].mxu0
        %v2631 = vadd.f32 %v2550, %v2630
        %v2632 = vpop.f32.mrb[0].mxu0
        %2633 = vdwg.mxu0
        %v2634 = vadd.f32 %v2441, %v2626
        %v2635 = vadd.f32 %v2442, %v2631
        %v2636 = vsel %vm858, %v2634, 0.0
        %2637 = vadd.xlane.f32.xlu0 %v2636
        %v2638 = vpop.xlane.xlu0 %2637
        %v2639 = vsel %vm858, %v2635, 0.0
        %2640 = vadd.xlane.f32.xlu0 %v2639
        %v2641 = vpop.xlane.xlu0 %2640
        %v2642 = vmul.f32 %v2638, %v2404
        %v2643 = vmul.f32 %v2641, %v2404
        %v2644 = vsub.f32 %v2634, %v2642
        %v2645 = vsub.f32 %v2635, %v2643
        %v2646 = vmul.f32 %v2644, %v2644
        %v2647 = vmul.f32 %v2645, %v2645
        %v2648 = vsel %vm858, %v2646, 0.0
        %2649 = vadd.xlane.f32.xlu0 %v2648
        %v2650 = vpop.xlane.xlu0 %2649
        %v2651 = vsel %vm858, %v2647, 0.0
        %2652 = vadd.xlane.f32.xlu0 %v2651
        %v2653 = vpop.xlane.xlu0 %2652
        %v2654 = vmul.f32 %v2650, %v2404
        %v2655 = vmul.f32 %v2653, %v2404
        %v2656 = vadd.f32 %v2654, 1e-05
        %v2657 = vadd.f32 %v2655, 1e-05
        %v2658 = vrsqrt.pop %v2656
        %v2659 = vrsqrt.pop %v2657
        %v2660 = vmul.f32 %v2644, %v2658
        %v2661 = vmul.f32 %v2645, %v2659
        %v2662 = vld [vmem:[%s743] sm:$0x1]
        %v2664 = vlaneseq
        %v2665 = vshrl.u32 %v2664, 7
        %v2666 = vsub.s32 0, %v2665
        %v2667 = vrot.slane %v2662, %v2666
        %v2669 = vmul.f32 %v2660, %v2667
        %v2670 = vmul.f32 %v2661, %v2667
        %v2671 = vld [vmem:[%s751] sm:$0x1]
        %v2673 = vlaneseq
        %v2674 = vshrl.u32 %v2673, 7
        %v2675 = vsub.s32 0, %v2674
        %v2676 = vrot.slane %v2671, %v2675
        %v2678 = vadd.f32 %v2669, %v2676
        %v2679 = vadd.f32 %v2670, %v2676
        %2680 = vst.msk [vmem:[#allocation2] sm:$0xff] %vm858, %v2678
        %2681 = vst.msk [vmem:[#allocation2 + $0x8] sm:$0xff] %vm858, %v2679
        %p2682 = scmp.eq.s32.totalorder %s44, 1
        // Predicated region
        $region129: #{tpu_custom_call.1} parent=71 // pred_check
          %p2683 = pneg %p2682
        $region130: #{tpu_custom_call.1} parent=71 // pred_check_branch
          %2685 = sbr.rel (%p2683) target = $region132
        $region131: #{tpu_custom_call.1} parent=71 // pred_region
          %2686 = vst.msk [vmem:[#allocation25] sm:$0xff] %vm858, %v2678
          %2687 = vst.msk [vmem:[#allocation25 + $0x8] sm:$0xff] %vm858, %v2679
        $region132: #{tpu_custom_call.1} parent=71 // pred_fallthru
          _
        // Predicated region
        $region133: #{tpu_custom_call.1} parent=71 // pred_check
          %p2688 = pneg %p390
        $region134: #{tpu_custom_call.1} parent=71 // pred_check_branch
          %2690 = sbr.rel (%p2688) target = $region136
        $region135: #{tpu_custom_call.1} parent=71 // pred_region
          %s2692 = ssub.s32 256, 256
          %2693 = vsyncadd [#allocation6], %s2692
          %s2694 = sshll.u32 [#allocation25], 4
          %s2695 = int_to_ptr.vmem [resolvable:$true] %s2694
          %2700 = dma.vmem_to_hbm [thread:$0]  %s2695, 256, %s13, [#allocation6], 128, 128, 8
        $region136: #{tpu_custom_call.1} parent=71 // pred_fallthru
          _
        // Predicated region
        $region137: #{tpu_custom_call.1} parent=71 // pred_check
          %p2701 = pneg %p390
        $region138: #{tpu_custom_call.1} parent=71 // pred_check_branch
          %2703 = sbr.rel (%p2701) target = $region140
        $region139: #{tpu_custom_call.1} parent=71 // pred_region
          %2704 = dma.done [#allocation6], 256
        $region140: #{tpu_custom_call.1} parent=71 // pred_fallthru
          _
      $region72: #{tpu_custom_call.1} parent=5 // pred_fallthru
        _
      %p2705 = scmp.le.s32.totalorder 2, %s39
      // Predicated region
      $region141: #{tpu_custom_call.1} parent=5 // pred_check
        %p2706 = pneg %p2705
      $region142: #{tpu_custom_call.1} parent=5 // pred_check_branch
        %2708 = sbr.rel (%p2706) target = $region144
      $region143: #{tpu_custom_call.1} parent=5 // pred_region
        %s2709 = ssub.s32 %s39, 2
      $region144: #{tpu_custom_call.1} parent=5 // pred_fallthru
        _
    $region6: #{tpu_custom_call.1} parent=1 // loop_footer
      %s43 = sadd.s32 1, %s39
    $region7: #{tpu_custom_call.1} parent=1 // loop_footer_branch
      %38 = sbr.rel target = $region3
    $region8: #{tpu_custom_call.1} parent=1 // loop_exit
      _
    %2710 = vsyncpa [#allocation5], 1
    %s2711 = scalar_lea.sflag [#allocation5], 1
    %2712 = vsyncpa %s2711, 1
    %2713 = vsyncpa [#allocation8], 1
    %s2714 = scalar_lea.sflag [#allocation8], 1
    %2715 = vsyncpa %s2714, 1
    %2716 = vsyncpa [#allocation11], 1
    %s2717 = scalar_lea.sflag [#allocation11], 1
    %2718 = vsyncpa %s2717, 1
    %2719 = vsyncpa [#allocation14], 1
    %s2720 = scalar_lea.sflag [#allocation14], 1
    %2721 = vsyncpa %s2720, 1
    %2722 = vsyncpa [#allocation17], 1
    %s2723 = scalar_lea.sflag [#allocation17], 1
    %2724 = vsyncpa %s2723, 1
    %2725 = vsyncpa [#allocation20], 1
    %s2726 = scalar_lea.sflag [#allocation20], 1
    %2727 = vsyncpa %s2726, 1
    %2728 = vsyncpa [#allocation23], 1
    %s2729 = scalar_lea.sflag [#allocation23], 1
    %2730 = vsyncpa %s2729, 1
    %2731 = vsyncpa [#allocation6], 1
    %s2732 = scalar_lea.sflag [#allocation6], 1
    %2733 = vsyncpa %s2732, 1

</llo_original>
